<compile_context>
chip_gen: v7x
topology: tpu7x:2x2x1
jax: 0.10.0
libtpu: 0.0.40
codegen_flags: <defaults>
</compile_context>

<pallas_src>
import jax
import jax.numpy as jnp
from jax.experimental import pallas as pl
from jax.experimental.pallas import tpu as pltpu  # noqa: F401  (TPU backend)

# ---- model configuration (small, consistent with the module) ----------------
B, N, D = 2, 16, 32          # batch, tokens, hidden dim
H, DH = 4, 8                 # heads, head dim (H * DH == D)
M, DC = 16, 32               # context tokens, context dim
INNER = 4 * D                # GEGLU inner dim (ff_mult = 4)
EPS = 1e-5                   # nn.LayerNorm default eps
NEG = -1e30                  # additive mask value

# NOTE on weight convention: weights are stored (fan_in, fan_out) and the kernel
# computes x @ W.  PyTorch nn.Linear stores (out, in) and computes x @ W.T — any
# real checkpoint must be transposed before being fed to this kernel.


# ---- kernel ------------------------------------------------------------------
def _block_kernel(x_ref, ctx_ref, wsq_ref, vecs_ref, ffw1_ref, ffb1_ref, ffw2_ref,
                  rsel_ref, rsum_ref, hmask_ref, sbias_ref, cbias_ref, out_ref):
    d = x_ref.shape[-1]

    x = x_ref[...]            # (B*N, D)
    ctx = ctx_ref[...]        # (B*M, DC)
    rsel = rsel_ref[...]      # (B*H*N, B*N) 0/1 row-replication selector (head-major rows)
    rsum = rsum_ref[...]      # (B*N, B*H*N) 0/1 head-sum selector (= rsel.T)
    hmask = hmask_ref[...]    # (B*H*N, D)   0/1 per-row head lane mask
    sbias = sbias_ref[...]    # (B*H*N, B*N) additive batch mask (0 / -1e30), self-attn
    cbias = cbias_ref[...]    # (B*H*N, B*M) additive batch mask, cross-attn
    vecs = vecs_ref[...]      # (7, D) packed bias rows (LN bias already folded in)

    bq1, bk1, bv1 = vecs[0:1, :], vecs[1:2, :], vecs[2:3, :]
    bo1, bq2, bo2, bff2 = vecs[3:4, :], vecs[4:5, :], vecs[5:6, :], vecs[6:7, :]

    # LN affine is folded into the downstream weights host-side: stats only here.
    def ln(h):
        mu = jnp.mean(h, axis=-1, keepdims=True)
        var = jnp.mean(jnp.square(h - mu), axis=-1, keepdims=True)
        return (h - mu) * jax.lax.rsqrt(var + EPS)

    def softmax_masked(s, bias):
        s = s + bias                                     # single additive mask
        s = s - jnp.max(s, axis=-1, keepdims=True)
        p = jnp.exp(s)
        # reciprocal on the EUP slot instead of a VALU divide
        return p * pl.reciprocal(jnp.sum(p, axis=-1, keepdims=True), approx=True)

    def attend(q, k, v, w_o, b_o, bias):
        # q/k/v: (rows, D) with all heads in lanes.  Head-major expansion of Q via
        # one selector matmul + one lane-mask multiply; everything else is plain
        # full-width matmuls — no per-head slices, concats or tiny transposes.
        q_hm = jnp.dot(rsel, q, preferred_element_type=jnp.float32) * hmask   # (BHN, D)
        s = jax.lax.dot_general(q_hm, k, (((1,), (1,)), ((), ())),
                                preferred_element_type=jnp.float32)           # (BHN, rows_kv)
        p = softmax_masked(s, bias)                                           # per-(b,h,n) softmax
        o_full = jnp.dot(p, v, preferred_element_type=jnp.float32)            # (BHN, D)
        # head-sum selector re-interleaves each head's DH lanes back into (B*N, D)
        o_heads = jnp.dot(rsum, o_full * hmask, preferred_element_type=jnp.float32)
        return jnp.dot(o_heads, w_o, preferred_element_type=jnp.float32) + b_o

    # stacked (8D, D) square weights; static sublane-aligned slices (zero-cost views)
    wq1 = wsq_ref[0 * d:1 * d, :]
    wk1 = wsq_ref[1 * d:2 * d, :]
    wv1 = wsq_ref[2 * d:3 * d, :]
    wo1 = wsq_ref[3 * d:4 * d, :]
    wq2 = wsq_ref[4 * d:5 * d, :]
    wk2 = wsq_ref[5 * d:6 * d, :]
    wv2 = wsq_ref[6 * d:7 * d, :]
    wo2 = wsq_ref[7 * d:8 * d, :]

    # 1) self-attention + residual (LN1 affine + dh^-0.5 already folded into wq1/bq1 etc.)
    h1 = ln(x)
    q1 = jnp.dot(h1, wq1, preferred_element_type=jnp.float32) + bq1
    k1 = jnp.dot(h1, wk1, preferred_element_type=jnp.float32) + bk1
    v1 = jnp.dot(h1, wv1, preferred_element_type=jnp.float32) + bv1
    x = x + attend(q1, k1, v1, wo1, bo1, sbias)

    # 2) cross-attention + residual (K/V from the raw context, no LayerNorm)
    h2 = ln(x)
    q2 = jnp.dot(h2, wq2, preferred_element_type=jnp.float32) + bq2
    k2 = jnp.dot(ctx, wk2, preferred_element_type=jnp.float32)
    v2 = jnp.dot(ctx, wv2, preferred_element_type=jnp.float32)
    x = x + attend(q2, k2, v2, wo2, bo2, cbias)

    # 3) GEGLU feed-forward + residual (LN3 affine folded into ffw1/ffb1)
    h3 = ln(x)
    proj = jnp.dot(h3, ffw1_ref[...], preferred_element_type=jnp.float32) + ffb1_ref[...]
    inner = proj.shape[-1] // 2
    val, gate = proj[:, :inner], proj[:, inner:]          # 128-lane-aligned split
    # TODO(synk): PyTorch F.gelu default is the exact erf form; tanh approximation
    # is used (EUP tanh is guaranteed to lower in Mosaic).
    ff = jnp.dot(val * jax.nn.gelu(gate, approximate=True), ffw2_ref[...],
                 preferred_element_type=jnp.float32) + bff2

    out_ref[...] = x + ff


# ---- host-side parameter folding / packing ----------------------------------
def pack_params(params):
    """Fold LN affine + attention scale into weights; stack small operands."""
    scale = DH ** -0.5
    n1g, n1b = params["n1g"], params["n1b"]
    n2g, n2b = params["n2g"], params["n2b"]
    n3g, n3b = params["n3g"], params["n3b"]

    wq1 = params["a1_wq"] * n1g.T * scale                 # LN1 gain + scale folded in
    wk1 = params["a1_wk"] * n1g.T
    wv1 = params["a1_wv"] * n1g.T
    wo1 = params["a1_wo"]
    wq2 = params["a2_wq"] * n2g.T * scale                 # LN2 gain + scale folded in
    wk2 = params["a2_wk"]                                 # context is not LayerNormed
    wv2 = params["a2_wv"]
    wo2 = params["a2_wo"]
    wsq = jnp.concatenate([wq1, wk1, wv1, wo1, wq2, wk2, wv2, wo2], axis=0)  # (8D, D)

    bq1 = (n1b @ params["a1_wq"]) * scale                 # LN1 bias folded through W
    bk1 = n1b @ params["a1_wk"]
    bv1 = n1b @ params["a1_wv"]
    bq2 = (n2b @ params["a2_wq"]) * scale
    vecs = jnp.concatenate([bq1, bk1, bv1, params["a1_bo"], bq2, params["a2_bo"],
                            params["ff_b2"]], axis=0)                        # (7, D)

    ffw1 = params["ff_w1"] * n3g.T                        # LN3 gain folded in
    ffb1 = n3b @ params["ff_w1"] + params["ff_b1"]        # LN3 bias folded in
    ffw2 = params["ff_w2"]
    return wsq, vecs, ffw1, ffb1, ffw2


def _attention_constants():
    """Selector / mask constants for the head-major block-masked attention."""
    rows = jnp.arange(B * H * N)                          # head-major row order (b, h, n)
    b_row = rows // (H * N)
    h_row = (rows // N) % H
    n_row = rows % N
    rsel = jax.nn.one_hot(b_row * N + n_row, B * N, dtype=jnp.float32)   # (BHN, B*N)
    rsum = rsel.T                                                         # (B*N, BHN)
    hmask = (jnp.arange(D)[None, :] // DH == h_row[:, None]).astype(jnp.float32)

    def batch_bias(n_kv):                                 # valid iff same batch
        cols = jnp.arange(B * n_kv)
        return jnp.where(cols[None, :] // n_kv == b_row[:, None],
                         0.0, NEG).astype(jnp.float32)

    return rsel, rsum, hmask, batch_bias(N), batch_bias(M)


# ---- pallas_call wrapper -----------------------------------------------------
def basic_transformer_block(x, context, params):
    b_sz, n, d = x.shape
    m, dc = context.shape[1], context.shape[2]
    assert (b_sz, n, d, m) == (B, N, D, M)                # masks/selectors are built for these dims

    wsq, vecs, ffw1, ffb1, ffw2 = pack_params(params)
    rsel, rsum, hmask, sbias, cbias = _attention_constants()

    # Single invocation, no grid: total operand footprint < 1 MiB on any TPU
    # generation, so there is no per-grid-step pipeline overhead, and at 32 rows
    # splitting across a grid / TensorCores would cost more than it saves.
    out2d = pl.pallas_call(
        _block_kernel,
        out_shape=jax.ShapeDtypeStruct((b_sz * n, d), jnp.float32),
    )(x.reshape(b_sz * n, d), context.reshape(b_sz * m, dc),
      wsq, vecs, ffw1, ffb1, ffw2, rsel, rsum, hmask, sbias, cbias)

    return out2d.reshape(b_sz, n, d)


@jax.jit
def _forward_plain(x, context, params):
    return basic_transformer_block(x, context, params)


@jax.jit
def _forward_tpg(x, context, params, perm):
    # token shuffle (gather on the sequence axis) + block in one jit region
    return basic_transformer_block(x[:, perm], context, params)


def tpg_transformer_wrapper(x, context=None, transformer_options=None, *,
                            params, perm_key=None):
    """Mirrors TPGTransformerWrapper.forward."""
    opts = transformer_options or {}
    if context is None:
        # TODO(synk): exact BasicTransformerBlock semantics for context=None use
        # norm2 of the *current* stream as K/V; the demo always supplies a context.
        context = x
    if opts.get("tpg", False):
        # torch.randperm token shuffle — jax.random will not bit-match torch's RNG.
        perm = jax.random.permutation(perm_key, x.shape[1])
        return _forward_tpg(x, context, params, perm)
    return _forward_plain(x, context, params)


# ---- pure-JAX reference (unfolded params) ------------------------------------
def reference_block(x, context, params):
    def ln(h, g, b):
        mu = h.mean(-1, keepdims=True)
        var = ((h - mu) ** 2).mean(-1, keepdims=True)
        return (h - mu) * jax.lax.rsqrt(var + EPS) * g + b

    def mha(q_in, kv_in, wq, wk, wv, wo, bo):
        b_sz, nq, _ = q_in.shape
        nk = kv_in.shape[1]
        q = (q_in @ wq).reshape(b_sz, nq, H, DH)
        k = (kv_in @ wk).reshape(b_sz, nk, H, DH)
        v = (kv_in @ wv).reshape(b_sz, nk, H, DH)
        s = jnp.einsum("bnhd,bmhd->bhnm", q, k) * (DH ** -0.5)
        p = jax.nn.softmax(s, axis=-1)
        o = jnp.einsum("bhnm,bmhd->bnhd", p, v).reshape(b_sz, nq, H * DH)
        return o @ wo + bo

    h1 = ln(x, params["n1g"], params["n1b"])
    x = x + mha(h1, h1, params["a1_wq"], params["a1_wk"], params["a1_wv"],
                params["a1_wo"], params["a1_bo"])
    h2 = ln(x, params["n2g"], params["n2b"])
    x = x + mha(h2, context, params["a2_wq"], params["a2_wk"], params["a2_wv"],
                params["a2_wo"], params["a2_bo"])
    h3 = ln(x, params["n3g"], params["n3b"])
    proj = h3 @ params["ff_w1"] + params["ff_b1"]
    val, gate = proj[..., :INNER], proj[..., INNER:]
    return x + (val * jax.nn.gelu(gate, approximate=True)) @ params["ff_w2"] + params["ff_b2"]


# ---- deterministic parameter initialization ----------------------------------
def init_params(key):
    ks = jax.random.split(key, 10)

    def lin(k, fin, fout):
        return jax.random.normal(k, (fin, fout), jnp.float32) / jnp.sqrt(float(fin))

    ones = lambda dim: jnp.ones((1, dim), jnp.float32)
    zeros = lambda dim: jnp.zeros((1, dim), jnp.float32)

    return {
        "n1g": ones(D), "n1b": zeros(D),
        "a1_wq": lin(ks[0], D, D), "a1_wk": lin(ks[1], D, D),
        "a1_wv": lin(ks[2], D, D), "a1_wo": lin(ks[3], D, D), "a1_bo": zeros(D),
        "n2g": ones(D), "n2b": zeros(D),
        "a2_wq": lin(ks[4], D, D), "a2_wk": lin(ks[5], DC, D),
        "a2_wv": lin(ks[6], DC, D), "a2_wo": lin(ks[7], D, D), "a2_bo": zeros(D),
        "n3g": ones(D), "n3b": zeros(D),
        "ff_w1": lin(ks[8], D, 2 * INNER), "ff_b1": zeros(2 * INNER),
        "ff_w2": lin(ks[9], INNER, D), "ff_b2": zeros(D),
    }


if __name__ == "__main__":
    root = jax.random.PRNGKey(0)
    kx, kc, kp, kperm = jax.random.split(root, 4)

    x = jax.random.normal(kx, (B, N, D), jnp.float32)
    context = jax.random.normal(kc, (B, M, DC), jnp.float32)
    params = init_params(kp)

    # default path (no token shuffle) + check against the pure-JAX reference
    out_plain = tpg_transformer_wrapper(x, context, {}, params=params)
    jax.block_until_ready(out_plain)
    ref = reference_block(x, context, params)
    err = float(jnp.max(jnp.abs(out_plain - ref)))
    assert out_plain.shape == (B, N, D) and jnp.all(jnp.isfinite(out_plain))
    assert err < 5e-2, f"kernel deviates from pure-JAX reference: max|err|={err}"

    # TPG path (shuffled tokens)
    out_tpg = tpg_transformer_wrapper(
        x, context, {"tpg": True}, params=params, perm_key=kperm)
    jax.block_until_ready(out_tpg)
    assert out_tpg.shape == (B, N, D) and jnp.all(jnp.isfinite(out_tpg))

    print("KERNEL_OK")
</pallas_src>

<mosaic_0001>
module attributes {stable_mosaic.version = 11 : i64} {
  func.func @_block_kernel(%arg0: memref<32x32xf32, #tpu.memory_space<vmem>>, %arg1: memref<32x32xf32, #tpu.memory_space<vmem>>, %arg2: memref<256x32xf32, #tpu.memory_space<vmem>>, %arg3: memref<7x32xf32, #tpu.memory_space<vmem>>, %arg4: memref<32x256xf32, #tpu.memory_space<vmem>>, %arg5: memref<1x256xf32, #tpu.memory_space<vmem>>, %arg6: memref<128x32xf32, #tpu.memory_space<vmem>>, %arg7: memref<128x32xf32, #tpu.memory_space<vmem>>, %arg8: memref<32x128xf32, #tpu.memory_space<vmem>>, %arg9: memref<128x32xf32, #tpu.memory_space<vmem>>, %arg10: memref<128x32xf32, #tpu.memory_space<vmem>>, %arg11: memref<128x32xf32, #tpu.memory_space<vmem>>, %arg12: memref<32x32xf32, #tpu.memory_space<vmem>>) attributes {dimension_semantics = [], scalar_prefetch = 0 : i64, scratch_operands = 0 : i64, tpu.core_type = #tpu.core_type<tc>} {
    %c0 = arith.constant 0 : index
    %c0_0 = arith.constant 0 : index
    %0 = vector.load %arg0[%c0, %c0_0] : memref<32x32xf32, #tpu.memory_space<vmem>>, vector<32x32xf32>
    %c0_1 = arith.constant 0 : index
    %c0_2 = arith.constant 0 : index
    %1 = vector.load %arg1[%c0_1, %c0_2] : memref<32x32xf32, #tpu.memory_space<vmem>>, vector<32x32xf32>
    %c0_3 = arith.constant 0 : index
    %c0_4 = arith.constant 0 : index
    %2 = vector.load %arg7[%c0_3, %c0_4] : memref<128x32xf32, #tpu.memory_space<vmem>>, vector<128x32xf32>
    %c0_5 = arith.constant 0 : index
    %c0_6 = arith.constant 0 : index
    %3 = vector.load %arg8[%c0_5, %c0_6] : memref<32x128xf32, #tpu.memory_space<vmem>>, vector<32x128xf32>
    %c0_7 = arith.constant 0 : index
    %c0_8 = arith.constant 0 : index
    %4 = vector.load %arg9[%c0_7, %c0_8] : memref<128x32xf32, #tpu.memory_space<vmem>>, vector<128x32xf32>
    %c0_9 = arith.constant 0 : index
    %c0_10 = arith.constant 0 : index
    %5 = vector.load %arg10[%c0_9, %c0_10] : memref<128x32xf32, #tpu.memory_space<vmem>>, vector<128x32xf32>
    %c0_11 = arith.constant 0 : index
    %c0_12 = arith.constant 0 : index
    %6 = vector.load %arg11[%c0_11, %c0_12] : memref<128x32xf32, #tpu.memory_space<vmem>>, vector<128x32xf32>
    %c0_13 = arith.constant 0 : index
    %c0_14 = arith.constant 0 : index
    %7 = vector.load %arg3[%c0_13, %c0_14] : memref<7x32xf32, #tpu.memory_space<vmem>>, vector<7x32xf32>
    %8 = vector.extract_strided_slice %7 {offsets = [0, 0], sizes = [1, 32], strides = [1, 1]} : vector<7x32xf32> to vector<1x32xf32>
    %9 = vector.extract_strided_slice %7 {offsets = [1, 0], sizes = [1, 32], strides = [1, 1]} : vector<7x32xf32> to vector<1x32xf32>
    %10 = vector.extract_strided_slice %7 {offsets = [2, 0], sizes = [1, 32], strides = [1, 1]} : vector<7x32xf32> to vector<1x32xf32>
    %11 = vector.extract_strided_slice %7 {offsets = [3, 0], sizes = [1, 32], strides = [1, 1]} : vector<7x32xf32> to vector<1x32xf32>
    %12 = vector.extract_strided_slice %7 {offsets = [4, 0], sizes = [1, 32], strides = [1, 1]} : vector<7x32xf32> to vector<1x32xf32>
    %13 = vector.extract_strided_slice %7 {offsets = [5, 0], sizes = [1, 32], strides = [1, 1]} : vector<7x32xf32> to vector<1x32xf32>
    %14 = vector.extract_strided_slice %7 {offsets = [6, 0], sizes = [1, 32], strides = [1, 1]} : vector<7x32xf32> to vector<1x32xf32>
    %c0_15 = arith.constant 0 : index
    %c0_16 = arith.constant 0 : index
    %15 = vector.load %arg2[%c0_15, %c0_16] : memref<256x32xf32, #tpu.memory_space<vmem>>, vector<32x32xf32>
    %c32 = arith.constant 32 : index
    %c0_17 = arith.constant 0 : index
    %16 = vector.load %arg2[%c32, %c0_17] : memref<256x32xf32, #tpu.memory_space<vmem>>, vector<32x32xf32>
    %c64 = arith.constant 64 : index
    %c0_18 = arith.constant 0 : index
    %17 = vector.load %arg2[%c64, %c0_18] : memref<256x32xf32, #tpu.memory_space<vmem>>, vector<32x32xf32>
    %c96 = arith.constant 96 : index
    %c0_19 = arith.constant 0 : index
    %18 = vector.load %arg2[%c96, %c0_19] : memref<256x32xf32, #tpu.memory_space<vmem>>, vector<32x32xf32>
    %c128 = arith.constant 128 : index
    %c0_20 = arith.constant 0 : index
    %19 = vector.load %arg2[%c128, %c0_20] : memref<256x32xf32, #tpu.memory_space<vmem>>, vector<32x32xf32>
    %c160 = arith.constant 160 : index
    %c0_21 = arith.constant 0 : index
    %20 = vector.load %arg2[%c160, %c0_21] : memref<256x32xf32, #tpu.memory_space<vmem>>, vector<32x32xf32>
    %c192 = arith.constant 192 : index
    %c0_22 = arith.constant 0 : index
    %21 = vector.load %arg2[%c192, %c0_22] : memref<256x32xf32, #tpu.memory_space<vmem>>, vector<32x32xf32>
    %c224 = arith.constant 224 : index
    %c0_23 = arith.constant 0 : index
    %22 = vector.load %arg2[%c224, %c0_23] : memref<256x32xf32, #tpu.memory_space<vmem>>, vector<32x32xf32>
    %cst = arith.constant dense<0.000000e+00> : vector<32xf32>
    %23 = vector.multi_reduction <add>, %0, %cst [1] : vector<32x32xf32> to vector<32xf32>
    %24 = vector.shape_cast %23 : vector<32xf32> to vector<32x1xf32>
    %cst_24 = arith.constant 3.200000e+01 : f32
    %25 = vector.broadcast %cst_24 : f32 to vector<32x1xf32>
    %26 = arith.divf %24, %25 : vector<32x1xf32>
    %27 = vector.broadcast %26 : vector<32x1xf32> to vector<32x32xf32>
    %28 = arith.subf %0, %27 : vector<32x32xf32>
    %29 = arith.mulf %28, %28 : vector<32x32xf32>
    %cst_25 = arith.constant dense<0.000000e+00> : vector<32xf32>
    %30 = vector.multi_reduction <add>, %29, %cst_25 [1] : vector<32x32xf32> to vector<32xf32>
    %31 = vector.shape_cast %30 : vector<32xf32> to vector<32x1xf32>
    %cst_26 = arith.constant 3.200000e+01 : f32
    %32 = vector.broadcast %cst_26 : f32 to vector<32x1xf32>
    %33 = arith.divf %31, %32 : vector<32x1xf32>
    %34 = vector.broadcast %26 : vector<32x1xf32> to vector<32x32xf32>
    %35 = arith.subf %0, %34 : vector<32x32xf32>
    %cst_27 = arith.constant 9.99999974E-6 : f32
    %36 = vector.broadcast %cst_27 : f32 to vector<32x1xf32>
    %37 = arith.addf %33, %36 : vector<32x1xf32>
    %38 = math.rsqrt %37 : vector<32x1xf32>
    %39 = vector.broadcast %38 : vector<32x1xf32> to vector<32x32xf32>
    %40 = arith.mulf %35, %39 : vector<32x32xf32>
    %cst_28 = arith.constant dense<0.000000e+00> : vector<32x32xf32>
    %41 = tpu.matmul %40, %15, %cst_28 {dimension_numbers = #tpu.dot_dimension_numbers<[1], [0], [0], [1], [0, 0, 1, 1], [], []>} : vector<32x32xf32>, vector<32x32xf32>, vector<32x32xf32> -> vector<32x32xf32>
    %42 = vector.broadcast %8 : vector<1x32xf32> to vector<32x32xf32>
    %43 = arith.addf %41, %42 : vector<32x32xf32>
    %cst_29 = arith.constant dense<0.000000e+00> : vector<32x32xf32>
    %44 = tpu.matmul %40, %16, %cst_29 {dimension_numbers = #tpu.dot_dimension_numbers<[1], [0], [0], [1], [0, 0, 1, 1], [], []>} : vector<32x32xf32>, vector<32x32xf32>, vector<32x32xf32> -> vector<32x32xf32>
    %45 = vector.broadcast %9 : vector<1x32xf32> to vector<32x32xf32>
    %46 = arith.addf %44, %45 : vector<32x32xf32>
    %cst_30 = arith.constant dense<0.000000e+00> : vector<32x32xf32>
    %47 = tpu.matmul %40, %17, %cst_30 {dimension_numbers = #tpu.dot_dimension_numbers<[1], [0], [0], [1], [0, 0, 1, 1], [], []>} : vector<32x32xf32>, vector<32x32xf32>, vector<32x32xf32> -> vector<32x32xf32>
    %48 = vector.broadcast %10 : vector<1x32xf32> to vector<32x32xf32>
    %49 = arith.addf %47, %48 : vector<32x32xf32>
    %cst_31 = arith.constant dense<0.000000e+00> : vector<128x32xf32>
    %50 = tpu.matmul %2, %43, %cst_31 {dimension_numbers = #tpu.dot_dimension_numbers<[1], [0], [0], [1], [0, 0, 1, 1], [], []>} : vector<128x32xf32>, vector<32x32xf32>, vector<128x32xf32> -> vector<128x32xf32>
    %51 = arith.mulf %50, %4 : vector<128x32xf32>
    %cst_32 = arith.constant dense<0.000000e+00> : vector<128x32xf32>
    %52 = tpu.matmul %51, %46, %cst_32 {dimension_numbers = #tpu.dot_dimension_numbers<[1], [1], [0], [0], [0, 0, 1, 0], [], []>} : vector<128x32xf32>, vector<32x32xf32>, vector<128x32xf32> -> vector<128x32xf32>
    %53 = arith.addf %52, %5 : vector<128x32xf32>
    %cst_33 = arith.constant dense<0xFF800000> : vector<128xf32>
    %54 = vector.multi_reduction <maximumf>, %53, %cst_33 [1] : vector<128x32xf32> to vector<128xf32>
    %55 = vector.shape_cast %54 : vector<128xf32> to vector<128x1xf32>
    %56 = vector.broadcast %55 : vector<128x1xf32> to vector<128x32xf32>
    %57 = arith.subf %53, %56 : vector<128x32xf32>
    %58 = math.exp %57 : vector<128x32xf32>
    %cst_34 = arith.constant dense<0.000000e+00> : vector<128xf32>
    %59 = vector.multi_reduction <add>, %58, %cst_34 [1] : vector<128x32xf32> to vector<128xf32>
    %60 = vector.shape_cast %59 : vector<128xf32> to vector<128x1xf32>
    %61 = tpu.reciprocal %60 {approx = true} : vector<128x1xf32> -> vector<128x1xf32>
    %62 = vector.broadcast %61 : vector<128x1xf32> to vector<128x32xf32>
    %63 = arith.mulf %58, %62 : vector<128x32xf32>
    %cst_35 = arith.constant dense<0.000000e+00> : vector<128x32xf32>
    %64 = tpu.matmul %63, %49, %cst_35 {dimension_numbers = #tpu.dot_dimension_numbers<[1], [0], [0], [1], [0, 0, 1, 1], [], []>} : vector<128x32xf32>, vector<32x32xf32>, vector<128x32xf32> -> vector<128x32xf32>
    %65 = arith.mulf %64, %4 : vector<128x32xf32>
    %cst_36 = arith.constant dense<0.000000e+00> : vector<32x32xf32>
    %66 = tpu.matmul %3, %65, %cst_36 {dimension_numbers = #tpu.dot_dimension_numbers<[1], [0], [0], [1], [0, 0, 1, 1], [], []>} : vector<32x128xf32>, vector<128x32xf32>, vector<32x32xf32> -> vector<32x32xf32>
    %cst_37 = arith.constant dense<0.000000e+00> : vector<32x32xf32>
    %67 = tpu.matmul %66, %18, %cst_37 {dimension_numbers = #tpu.dot_dimension_numbers<[1], [0], [0], [1], [0, 0, 1, 1], [], []>} : vector<32x32xf32>, vector<32x32xf32>, vector<32x32xf32> -> vector<32x32xf32>
    %68 = vector.broadcast %11 : vector<1x32xf32> to vector<32x32xf32>
    %69 = arith.addf %67, %68 : vector<32x32xf32>
    %70 = arith.addf %0, %69 : vector<32x32xf32>
    %cst_38 = arith.constant dense<0.000000e+00> : vector<32xf32>
    %71 = vector.multi_reduction <add>, %70, %cst_38 [1] : vector<32x32xf32> to vector<32xf32>
    %72 = vector.shape_cast %71 : vector<32xf32> to vector<32x1xf32>
    %cst_39 = arith.constant 3.200000e+01 : f32
    %73 = vector.broadcast %cst_39 : f32 to vector<32x1xf32>
    %74 = arith.divf %72, %73 : vector<32x1xf32>
    %75 = vector.broadcast %74 : vector<32x1xf32> to vector<32x32xf32>
    %76 = arith.subf %70, %75 : vector<32x32xf32>
    %77 = arith.mulf %76, %76 : vector<32x32xf32>
    %cst_40 = arith.constant dense<0.000000e+00> : vector<32xf32>
    %78 = vector.multi_reduction <add>, %77, %cst_40 [1] : vector<32x32xf32> to vector<32xf32>
    %79 = vector.shape_cast %78 : vector<32xf32> to vector<32x1xf32>
    %cst_41 = arith.constant 3.200000e+01 : f32
    %80 = vector.broadcast %cst_41 : f32 to vector<32x1xf32>
    %81 = arith.divf %79, %80 : vector<32x1xf32>
    %82 = vector.broadcast %74 : vector<32x1xf32> to vector<32x32xf32>
    %83 = arith.subf %70, %82 : vector<32x32xf32>
    %cst_42 = arith.constant 9.99999974E-6 : f32
    %84 = vector.broadcast %cst_42 : f32 to vector<32x1xf32>
    %85 = arith.addf %81, %84 : vector<32x1xf32>
    %86 = math.rsqrt %85 : vector<32x1xf32>
    %87 = vector.broadcast %86 : vector<32x1xf32> to vector<32x32xf32>
    %88 = arith.mulf %83, %87 : vector<32x32xf32>
    %cst_43 = arith.constant dense<0.000000e+00> : vector<32x32xf32>
    %89 = tpu.matmul %88, %19, %cst_43 {dimension_numbers = #tpu.dot_dimension_numbers<[1], [0], [0], [1], [0, 0, 1, 1], [], []>} : vector<32x32xf32>, vector<32x32xf32>, vector<32x32xf32> -> vector<32x32xf32>
    %90 = vector.broadcast %12 : vector<1x32xf32> to vector<32x32xf32>
    %91 = arith.addf %89, %90 : vector<32x32xf32>
    %cst_44 = arith.constant dense<0.000000e+00> : vector<32x32xf32>
    %92 = tpu.matmul %1, %20, %cst_44 {dimension_numbers = #tpu.dot_dimension_numbers<[1], [0], [0], [1], [0, 0, 1, 1], [], []>} : vector<32x32xf32>, vector<32x32xf32>, vector<32x32xf32> -> vector<32x32xf32>
    %cst_45 = arith.constant dense<0.000000e+00> : vector<32x32xf32>
    %93 = tpu.matmul %1, %21, %cst_45 {dimension_numbers = #tpu.dot_dimension_numbers<[1], [0], [0], [1], [0, 0, 1, 1], [], []>} : vector<32x32xf32>, vector<32x32xf32>, vector<32x32xf32> -> vector<32x32xf32>
    %cst_46 = arith.constant dense<0.000000e+00> : vector<128x32xf32>
    %94 = tpu.matmul %2, %91, %cst_46 {dimension_numbers = #tpu.dot_dimension_numbers<[1], [0], [0], [1], [0, 0, 1, 1], [], []>} : vector<128x32xf32>, vector<32x32xf32>, vector<128x32xf32> -> vector<128x32xf32>
    %95 = arith.mulf %94, %4 : vector<128x32xf32>
    %cst_47 = arith.constant dense<0.000000e+00> : vector<128x32xf32>
    %96 = tpu.matmul %95, %92, %cst_47 {dimension_numbers = #tpu.dot_dimension_numbers<[1], [1], [0], [0], [0, 0, 1, 0], [], []>} : vector<128x32xf32>, vector<32x32xf32>, vector<128x32xf32> -> vector<128x32xf32>
    %97 = arith.addf %96, %6 : vector<128x32xf32>
    %cst_48 = arith.constant dense<0xFF800000> : vector<128xf32>
    %98 = vector.multi_reduction <maximumf>, %97, %cst_48 [1] : vector<128x32xf32> to vector<128xf32>
    %99 = vector.shape_cast %98 : vector<128xf32> to vector<128x1xf32>
    %100 = vector.broadcast %99 : vector<128x1xf32> to vector<128x32xf32>
    %101 = arith.subf %97, %100 : vector<128x32xf32>
    %102 = math.exp %101 : vector<128x32xf32>
    %cst_49 = arith.constant dense<0.000000e+00> : vector<128xf32>
    %103 = vector.multi_reduction <add>, %102, %cst_49 [1] : vector<128x32xf32> to vector<128xf32>
    %104 = vector.shape_cast %103 : vector<128xf32> to vector<128x1xf32>
    %105 = tpu.reciprocal %104 {approx = true} : vector<128x1xf32> -> vector<128x1xf32>
    %106 = vector.broadcast %105 : vector<128x1xf32> to vector<128x32xf32>
    %107 = arith.mulf %102, %106 : vector<128x32xf32>
    %cst_50 = arith.constant dense<0.000000e+00> : vector<128x32xf32>
    %108 = tpu.matmul %107, %93, %cst_50 {dimension_numbers = #tpu.dot_dimension_numbers<[1], [0], [0], [1], [0, 0, 1, 1], [], []>} : vector<128x32xf32>, vector<32x32xf32>, vector<128x32xf32> -> vector<128x32xf32>
    %109 = arith.mulf %108, %4 : vector<128x32xf32>
    %cst_51 = arith.constant dense<0.000000e+00> : vector<32x32xf32>
    %110 = tpu.matmul %3, %109, %cst_51 {dimension_numbers = #tpu.dot_dimension_numbers<[1], [0], [0], [1], [0, 0, 1, 1], [], []>} : vector<32x128xf32>, vector<128x32xf32>, vector<32x32xf32> -> vector<32x32xf32>
    %cst_52 = arith.constant dense<0.000000e+00> : vector<32x32xf32>
    %111 = tpu.matmul %110, %22, %cst_52 {dimension_numbers = #tpu.dot_dimension_numbers<[1], [0], [0], [1], [0, 0, 1, 1], [], []>} : vector<32x32xf32>, vector<32x32xf32>, vector<32x32xf32> -> vector<32x32xf32>
    %112 = vector.broadcast %13 : vector<1x32xf32> to vector<32x32xf32>
    %113 = arith.addf %111, %112 : vector<32x32xf32>
    %114 = arith.addf %70, %113 : vector<32x32xf32>
    %cst_53 = arith.constant dense<0.000000e+00> : vector<32xf32>
    %115 = vector.multi_reduction <add>, %114, %cst_53 [1] : vector<32x32xf32> to vector<32xf32>
    %116 = vector.shape_cast %115 : vector<32xf32> to vector<32x1xf32>
    %cst_54 = arith.constant 3.200000e+01 : f32
    %117 = vector.broadcast %cst_54 : f32 to vector<32x1xf32>
    %118 = arith.divf %116, %117 : vector<32x1xf32>
    %119 = vector.broadcast %118 : vector<32x1xf32> to vector<32x32xf32>
    %120 = arith.subf %114, %119 : vector<32x32xf32>
    %121 = arith.mulf %120, %120 : vector<32x32xf32>
    %cst_55 = arith.constant dense<0.000000e+00> : vector<32xf32>
    %122 = vector.multi_reduction <add>, %121, %cst_55 [1] : vector<32x32xf32> to vector<32xf32>
    %123 = vector.shape_cast %122 : vector<32xf32> to vector<32x1xf32>
    %cst_56 = arith.constant 3.200000e+01 : f32
    %124 = vector.broadcast %cst_56 : f32 to vector<32x1xf32>
    %125 = arith.divf %123, %124 : vector<32x1xf32>
    %126 = vector.broadcast %118 : vector<32x1xf32> to vector<32x32xf32>
    %127 = arith.subf %114, %126 : vector<32x32xf32>
    %cst_57 = arith.constant 9.99999974E-6 : f32
    %128 = vector.broadcast %cst_57 : f32 to vector<32x1xf32>
    %129 = arith.addf %125, %128 : vector<32x1xf32>
    %130 = math.rsqrt %129 : vector<32x1xf32>
    %131 = vector.broadcast %130 : vector<32x1xf32> to vector<32x32xf32>
    %132 = arith.mulf %127, %131 : vector<32x32xf32>
    %c0_58 = arith.constant 0 : index
    %c0_59 = arith.constant 0 : index
    %133 = vector.load %arg4[%c0_58, %c0_59] : memref<32x256xf32, #tpu.memory_space<vmem>>, vector<32x256xf32>
    %cst_60 = arith.constant dense<0.000000e+00> : vector<32x256xf32>
    %134 = tpu.matmul %132, %133, %cst_60 {dimension_numbers = #tpu.dot_dimension_numbers<[1], [0], [0], [1], [0, 0, 1, 1], [], []>} : vector<32x32xf32>, vector<32x256xf32>, vector<32x256xf32> -> vector<32x256xf32>
    %c0_61 = arith.constant 0 : index
    %c0_62 = arith.constant 0 : index
    %135 = vector.load %arg5[%c0_61, %c0_62] : memref<1x256xf32, #tpu.memory_space<vmem>>, vector<1x256xf32>
    %136 = vector.broadcast %135 : vector<1x256xf32> to vector<32x256xf32>
    %137 = arith.addf %134, %136 : vector<32x256xf32>
    %138 = vector.extract_strided_slice %137 {offsets = [0, 0], sizes = [32, 128], strides = [1, 1]} : vector<32x256xf32> to vector<32x128xf32>
    %139 = vector.extract_strided_slice %137 {offsets = [0, 128], sizes = [32, 128], strides = [1, 1]} : vector<32x256xf32> to vector<32x128xf32>
    %140 = arith.mulf %139, %139 : vector<32x128xf32>
    %141 = arith.mulf %139, %140 : vector<32x128xf32>
    %cst_63 = arith.constant 4.471500e-02 : f32
    %142 = vector.broadcast %cst_63 : f32 to vector<32x128xf32>
    %143 = arith.mulf %142, %141 : vector<32x128xf32>
    %144 = arith.addf %139, %143 : vector<32x128xf32>
    %cst_64 = arith.constant 0.797884583 : f32
    %145 = vector.broadcast %cst_64 : f32 to vector<32x128xf32>
    %146 = arith.mulf %145, %144 : vector<32x128xf32>
    %147 = math.tanh %146 : vector<32x128xf32>
    %cst_65 = arith.constant 1.000000e+00 : f32
    %148 = vector.broadcast %cst_65 : f32 to vector<32x128xf32>
    %149 = arith.addf %148, %147 : vector<32x128xf32>
    %cst_66 = arith.constant 5.000000e-01 : f32
    %150 = vector.broadcast %cst_66 : f32 to vector<32x128xf32>
    %151 = arith.mulf %150, %149 : vector<32x128xf32>
    %152 = arith.mulf %139, %151 : vector<32x128xf32>
    %153 = arith.mulf %138, %152 : vector<32x128xf32>
    %c0_67 = arith.constant 0 : index
    %c0_68 = arith.constant 0 : index
    %154 = vector.load %arg6[%c0_67, %c0_68] : memref<128x32xf32, #tpu.memory_space<vmem>>, vector<128x32xf32>
    %cst_69 = arith.constant dense<0.000000e+00> : vector<32x32xf32>
    %155 = tpu.matmul %153, %154, %cst_69 {dimension_numbers = #tpu.dot_dimension_numbers<[1], [0], [0], [1], [0, 0, 1, 1], [], []>} : vector<32x128xf32>, vector<128x32xf32>, vector<32x32xf32> -> vector<32x32xf32>
    %156 = vector.broadcast %14 : vector<1x32xf32> to vector<32x32xf32>
    %157 = arith.addf %155, %156 : vector<32x32xf32>
    %158 = arith.addf %114, %157 : vector<32x32xf32>
    %c0_70 = arith.constant 0 : index
    %c0_71 = arith.constant 0 : index
    %159 = vector.load %arg12[%c0_70, %c0_71] : memref<32x32xf32, #tpu.memory_space<vmem>>, vector<32x32xf32>
    tpu.vector_store %arg12[%c0_70, %c0_71], %158 {strides = array<i32>} : memref<32x32xf32, #tpu.memory_space<vmem>>, vector<32x32xf32>,
    return
  }
}

</mosaic_0001>

<llo_original>
// kernel: _forward_plain.1
$region0: #{_forward_plain.1}
  #allocation0 [shape = 'u32[]', space=smem, size = 0x4, offset = 0x4, fixed_abs, tag = 'smem constant byte address 0x4 - core index']
  #allocation1 [shape = 'u32[144,128]{1,0:T(1,128)}', space=vmem, size = 0x12000, scoped, tag = 'internal scratch']
  %s0 = inlined_call_operand.vmem [shape: f32[32,32], index: 0, kind: input, shape index: {}]
  %s1 = inlined_call_operand.vmem [shape: f32[32,32], index: 1, kind: input, shape index: {}]
  %s2 = inlined_call_operand.vmem [shape: f32[256,32], index: 2, kind: input, shape index: {}]
  %s3 = inlined_call_operand.vmem [shape: f32[7,32], index: 3, kind: input, shape index: {}]
  %s4 = inlined_call_operand.vmem [shape: f32[32,256], index: 4, kind: input, shape index: {}]
  %s5 = inlined_call_operand.vmem [shape: f32[1,256], index: 5, kind: input, shape index: {}]
  %s6 = inlined_call_operand.vmem [shape: f32[128,32], index: 6, kind: input, shape index: {}]
  %s7 = inlined_call_operand.vmem [shape: f32[128,32], index: 7, kind: input, shape index: {}]
  %s8 = inlined_call_operand.vmem [shape: f32[32,128], index: 8, kind: input, shape index: {}]
  %s9 = inlined_call_operand.vmem [shape: f32[128,32], index: 9, kind: input, shape index: {}]
  %s10 = inlined_call_operand.vmem [shape: f32[128,32], index: 10, kind: input, shape index: {}, may-alias: {10,11}]
  %s11 = inlined_call_operand.vmem [shape: f32[128,32], index: 11, kind: input, shape index: {}, may-alias: {10,11}]
  %s12 = inlined_call_operand.hbm [shape: f32[32,32], index: 12, kind: output, shape index: {}]
  %s13 = sld [smem:[#allocation0]]
  $region58: #{_forward_plain.1} parent=0
    _
  %s15 = ssub.s32 1, %s13
  %s16 = scalar_select 0, %s15, %s13
  $region1: #{_forward_plain.1} parent=0
    #allocation2 [shape = 'u8[16384]{0}', space=vmem, size = 0x4000, scoped, tag = 'output window, operand 0, single buffered']
    #allocation3 [shape = 's32[1]{0}', space=sflag, size = 0x4, scoped, tag = 'scoped memory for _forward_plain.1']
    %17 = vsyncpa [#allocation3], 0
    // Predicated region
    $region2: #{_forward_plain.1} parent=1 // pred_check
      _
    $region3: #{_forward_plain.1} parent=1 // pred_check_branch
      %19 = sbr.rel (0) target = $region5
    $region4: #{_forward_plain.1} parent=1 // pred_region
      _
    $region5: #{_forward_plain.1} parent=1 // pred_fallthru
      _
    // Predicated region
    $region6: #{_forward_plain.1} parent=1 // pred_check
      _
    $region7: #{_forward_plain.1} parent=1 // pred_check_branch
      %21 = sbr.rel (0) target = $region9
    $region8: #{_forward_plain.1} parent=1 // pred_region
      _
    $region9: #{_forward_plain.1} parent=1 // pred_fallthru
      _
    // Predicated region
    $region10: #{_forward_plain.1} parent=1 // pred_check
      _
    $region11: #{_forward_plain.1} parent=1 // pred_check_branch
      %23 = sbr.rel (0) target = $region13
    $region12: #{_forward_plain.1} parent=1 // pred_region
      _
    $region13: #{_forward_plain.1} parent=1 // pred_fallthru
      _
    // Predicated region
    $region14: #{_forward_plain.1} parent=1 // pred_check
      _
    $region15: #{_forward_plain.1} parent=1 // pred_check_branch
      %25 = sbr.rel (0) target = $region17
    $region16: #{_forward_plain.1} parent=1 // pred_region
      _
    $region17: #{_forward_plain.1} parent=1 // pred_fallthru
      _
    // Predicated region
    $region18: #{_forward_plain.1} parent=1 // pred_check
      _
    $region19: #{_forward_plain.1} parent=1 // pred_check_branch
      %27 = sbr.rel (0) target = $region21
    $region20: #{_forward_plain.1} parent=1 // pred_region
      _
    $region21: #{_forward_plain.1} parent=1 // pred_fallthru
      _
    // Predicated region
    $region22: #{_forward_plain.1} parent=1 // pred_check
      _
    $region23: #{_forward_plain.1} parent=1 // pred_check_branch
      %29 = sbr.rel (0) target = $region25
    $region24: #{_forward_plain.1} parent=1 // pred_region
      _
    $region25: #{_forward_plain.1} parent=1 // pred_fallthru
      _
    // Predicated region
    $region26: #{_forward_plain.1} parent=1 // pred_check
      _
    $region27: #{_forward_plain.1} parent=1 // pred_check_branch
      %31 = sbr.rel (0) target = $region29
    $region28: #{_forward_plain.1} parent=1 // pred_region
      _
    $region29: #{_forward_plain.1} parent=1 // pred_fallthru
      _
    // Predicated region
    $region30: #{_forward_plain.1} parent=1 // pred_check
      _
    $region31: #{_forward_plain.1} parent=1 // pred_check_branch
      %33 = sbr.rel (0) target = $region33
    $region32: #{_forward_plain.1} parent=1 // pred_region
      _
    $region33: #{_forward_plain.1} parent=1 // pred_fallthru
      _
    // Predicated region
    $region34: #{_forward_plain.1} parent=1 // pred_check
      _
    $region35: #{_forward_plain.1} parent=1 // pred_check_branch
      %35 = sbr.rel (0) target = $region37
    $region36: #{_forward_plain.1} parent=1 // pred_region
      _
    $region37: #{_forward_plain.1} parent=1 // pred_fallthru
      _
    // Predicated region
    $region38: #{_forward_plain.1} parent=1 // pred_check
      _
    $region39: #{_forward_plain.1} parent=1 // pred_check_branch
      %37 = sbr.rel (0) target = $region41
    $region40: #{_forward_plain.1} parent=1 // pred_region
      _
    $region41: #{_forward_plain.1} parent=1 // pred_fallthru
      _
    // Predicated region
    $region42: #{_forward_plain.1} parent=1 // pred_check
      _
    $region43: #{_forward_plain.1} parent=1 // pred_check_branch
      %39 = sbr.rel (0) target = $region45
    $region44: #{_forward_plain.1} parent=1 // pred_region
      _
    $region45: #{_forward_plain.1} parent=1 // pred_fallthru
      _
    // Predicated region
    $region46: #{_forward_plain.1} parent=1 // pred_check
      _
    $region47: #{_forward_plain.1} parent=1 // pred_check_branch
      %41 = sbr.rel (0) target = $region49
    $region48: #{_forward_plain.1} parent=1 // pred_region
      _
    $region49: #{_forward_plain.1} parent=1 // pred_fallthru
      _
    %v42 = vld [vmem:[%s0] sm:$0xff]
    %v43 = vld [vmem:[%s0 + $0x8] sm:$0xff]
    %v44 = vld [vmem:[%s0 + $0x10] sm:$0xff]
    %v45 = vld [vmem:[%s0 + $0x18] sm:$0xff]
    %v46 = vld [vmem:[%s1] sm:$0xff]
    %v47 = vld [vmem:[%s1 + $0x8] sm:$0xff]
    %v48 = vld [vmem:[%s1 + $0x10] sm:$0xff]
    %v49 = vld [vmem:[%s1 + $0x18] sm:$0xff]
    %v50 = vld [vmem:[%s7] sm:$0xff]
    %v51 = vld [vmem:[%s7 + $0x8] sm:$0xff]
    %v52 = vld [vmem:[%s7 + $0x10] sm:$0xff]
    %v53 = vld [vmem:[%s7 + $0x18] sm:$0xff]
    %v54 = vld [vmem:[%s7 + $0x20] sm:$0xff]
    %v55 = vld [vmem:[%s7 + $0x28] sm:$0xff]
    %v56 = vld [vmem:[%s7 + $0x30] sm:$0xff]
    %v57 = vld [vmem:[%s7 + $0x38] sm:$0xff]
    %v58 = vld [vmem:[%s7 + $0x40] sm:$0xff]
    %v59 = vld [vmem:[%s7 + $0x48] sm:$0xff]
    %v60 = vld [vmem:[%s7 + $0x50] sm:$0xff]
    %v61 = vld [vmem:[%s7 + $0x58] sm:$0xff]
    %v62 = vld [vmem:[%s7 + $0x60] sm:$0xff]
    %v63 = vld [vmem:[%s7 + $0x68] sm:$0xff]
    %v64 = vld [vmem:[%s7 + $0x70] sm:$0xff]
    %v65 = vld [vmem:[%s7 + $0x78] sm:$0xff]
    %v66 = vld [vmem:[%s8] sm:$0xff]
    %v67 = vld [vmem:[%s8 + $0x8] sm:$0xff]
    %v68 = vld [vmem:[%s8 + $0x10] sm:$0xff]
    %v69 = vld [vmem:[%s8 + $0x18] sm:$0xff]
    %v70 = vld [vmem:[%s9] sm:$0xff]
    %v71 = vld [vmem:[%s9 + $0x8] sm:$0xff]
    %v72 = vld [vmem:[%s9 + $0x10] sm:$0xff]
    %v73 = vld [vmem:[%s9 + $0x18] sm:$0xff]
    %v74 = vld [vmem:[%s9 + $0x20] sm:$0xff]
    %v75 = vld [vmem:[%s9 + $0x28] sm:$0xff]
    %v76 = vld [vmem:[%s9 + $0x30] sm:$0xff]
    %v77 = vld [vmem:[%s9 + $0x38] sm:$0xff]
    %v78 = vld [vmem:[%s9 + $0x40] sm:$0xff]
    %v79 = vld [vmem:[%s9 + $0x48] sm:$0xff]
    %v80 = vld [vmem:[%s9 + $0x50] sm:$0xff]
    %v81 = vld [vmem:[%s9 + $0x58] sm:$0xff]
    %v82 = vld [vmem:[%s9 + $0x60] sm:$0xff]
    %v83 = vld [vmem:[%s9 + $0x68] sm:$0xff]
    %v84 = vld [vmem:[%s9 + $0x70] sm:$0xff]
    %v85 = vld [vmem:[%s9 + $0x78] sm:$0xff]
    %v86 = vld [vmem:[%s10] sm:$0xff]
    %v87 = vld [vmem:[%s10 + $0x8] sm:$0xff]
    %v88 = vld [vmem:[%s10 + $0x10] sm:$0xff]
    %v89 = vld [vmem:[%s10 + $0x18] sm:$0xff]
    %v90 = vld [vmem:[%s10 + $0x20] sm:$0xff]
    %v91 = vld [vmem:[%s10 + $0x28] sm:$0xff]
    %v92 = vld [vmem:[%s10 + $0x30] sm:$0xff]
    %v93 = vld [vmem:[%s10 + $0x38] sm:$0xff]
    %v94 = vld [vmem:[%s10 + $0x40] sm:$0xff]
    %v95 = vld [vmem:[%s10 + $0x48] sm:$0xff]
    %v96 = vld [vmem:[%s10 + $0x50] sm:$0xff]
    %v97 = vld [vmem:[%s10 + $0x58] sm:$0xff]
    %v98 = vld [vmem:[%s10 + $0x60] sm:$0xff]
    %v99 = vld [vmem:[%s10 + $0x68] sm:$0xff]
    %v100 = vld [vmem:[%s10 + $0x70] sm:$0xff]
    %v101 = vld [vmem:[%s10 + $0x78] sm:$0xff]
    %v102 = vld [vmem:[%s11] sm:$0xff]
    %v103 = vld [vmem:[%s11 + $0x8] sm:$0xff]
    %v104 = vld [vmem:[%s11 + $0x10] sm:$0xff]
    %v105 = vld [vmem:[%s11 + $0x18] sm:$0xff]
    %v106 = vld [vmem:[%s11 + $0x20] sm:$0xff]
    %v107 = vld [vmem:[%s11 + $0x28] sm:$0xff]
    %v108 = vld [vmem:[%s11 + $0x30] sm:$0xff]
    %v109 = vld [vmem:[%s11 + $0x38] sm:$0xff]
    %v110 = vld [vmem:[%s11 + $0x40] sm:$0xff]
    %v111 = vld [vmem:[%s11 + $0x48] sm:$0xff]
    %v112 = vld [vmem:[%s11 + $0x50] sm:$0xff]
    %v113 = vld [vmem:[%s11 + $0x58] sm:$0xff]
    %v114 = vld [vmem:[%s11 + $0x60] sm:$0xff]
    %v115 = vld [vmem:[%s11 + $0x68] sm:$0xff]
    %v116 = vld [vmem:[%s11 + $0x70] sm:$0xff]
    %v117 = vld [vmem:[%s11 + $0x78] sm:$0xff]
    %v118 = vld [vmem:[%s3] sm:$0x7f]
    %v119 = vld [vmem:[%s2] sm:$0xff]
    %v120 = vld [vmem:[%s2 + $0x8] sm:$0xff]
    %v121 = vld [vmem:[%s2 + $0x10] sm:$0xff]
    %v122 = vld [vmem:[%s2 + $0x18] sm:$0xff]
    %v123 = vld [vmem:[%s2 + $0x20] sm:$0xff]
    %v124 = vld [vmem:[%s2 + $0x28] sm:$0xff]
    %v125 = vld [vmem:[%s2 + $0x30] sm:$0xff]
    %v126 = vld [vmem:[%s2 + $0x38] sm:$0xff]
    %v127 = vld [vmem:[%s2 + $0x40] sm:$0xff]
    %v128 = vld [vmem:[%s2 + $0x48] sm:$0xff]
    %v129 = vld [vmem:[%s2 + $0x50] sm:$0xff]
    %v130 = vld [vmem:[%s2 + $0x58] sm:$0xff]
    %v131 = vld [vmem:[%s2 + $0x60] sm:$0xff]
    %v132 = vld [vmem:[%s2 + $0x68] sm:$0xff]
    %v133 = vld [vmem:[%s2 + $0x70] sm:$0xff]
    %v134 = vld [vmem:[%s2 + $0x78] sm:$0xff]
    %v135 = vld [vmem:[%s2 + $0x80] sm:$0xff]
    %v136 = vld [vmem:[%s2 + $0x88] sm:$0xff]
    %v137 = vld [vmem:[%s2 + $0x90] sm:$0xff]
    %v138 = vld [vmem:[%s2 + $0x98] sm:$0xff]
    %v139 = vld [vmem:[%s2 + $0xa0] sm:$0xff]
    %v140 = vld [vmem:[%s2 + $0xa8] sm:$0xff]
    %v141 = vld [vmem:[%s2 + $0xb0] sm:$0xff]
    %v142 = vld [vmem:[%s2 + $0xb8] sm:$0xff]
    %v143 = vld [vmem:[%s2 + $0xc0] sm:$0xff]
    %v144 = vld [vmem:[%s2 + $0xc8] sm:$0xff]
    %v145 = vld [vmem:[%s2 + $0xd0] sm:$0xff]
    %v146 = vld [vmem:[%s2 + $0xd8] sm:$0xff]
    %v147 = vld [vmem:[%s2 + $0xe0] sm:$0xff]
    %v148 = vld [vmem:[%s2 + $0xe8] sm:$0xff]
    %v149 = vld [vmem:[%s2 + $0xf0] sm:$0xff]
    %v150 = vld [vmem:[%s2 + $0xf8] sm:$0xff]
    %vm151 = vcmask 261120
    %v152 = vsel %vm151, %v42, 0.0
    %153 = vadd.xlane.f32.xlu0 %v152
    %v154 = vpop.xlane.xlu0 %153
    %v155 = vsel %vm151, %v43, 0.0
    %156 = vadd.xlane.f32.xlu0 %v155
    %v157 = vpop.xlane.xlu0 %156
    %v158 = vsel %vm151, %v44, 0.0
    %159 = vadd.xlane.f32.xlu0 %v158
    %v160 = vpop.xlane.xlu0 %159
    %v161 = vsel %vm151, %v45, 0.0
    %162 = vadd.xlane.f32.xlu0 %v161
    %v163 = vpop.xlane.xlu0 %162
    %v164 = vrcp.pop 32.0
    %v165 = vmul.f32 %v154, %v164
    %v166 = vmul.f32 %v157, %v164
    %v167 = vmul.f32 %v160, %v164
    %v168 = vmul.f32 %v163, %v164
    %v169 = vsub.f32 %v42, %v165
    %v170 = vsub.f32 %v43, %v166
    %v171 = vsub.f32 %v44, %v167
    %v172 = vsub.f32 %v45, %v168
    %v173 = vmul.f32 %v169, %v169
    %v174 = vmul.f32 %v170, %v170
    %v175 = vmul.f32 %v171, %v171
    %v176 = vmul.f32 %v172, %v172
    %v177 = vsel %vm151, %v173, 0.0
    %178 = vadd.xlane.f32.xlu0 %v177
    %v179 = vpop.xlane.xlu0 %178
    %v180 = vsel %vm151, %v174, 0.0
    %181 = vadd.xlane.f32.xlu0 %v180
    %v182 = vpop.xlane.xlu0 %181
    %v183 = vsel %vm151, %v175, 0.0
    %184 = vadd.xlane.f32.xlu0 %v183
    %v185 = vpop.xlane.xlu0 %184
    %v186 = vsel %vm151, %v176, 0.0
    %187 = vadd.xlane.f32.xlu0 %v186
    %v188 = vpop.xlane.xlu0 %187
    %v189 = vmul.f32 %v179, %v164
    %v190 = vmul.f32 %v182, %v164
    %v191 = vmul.f32 %v185, %v164
    %v192 = vmul.f32 %v188, %v164
    %v193 = vadd.f32 %v189, 1e-05
    %v194 = vadd.f32 %v190, 1e-05
    %v195 = vadd.f32 %v191, 1e-05
    %v196 = vadd.f32 %v192, 1e-05
    %v197 = vrsqrt.pop %v193
    %v198 = vrsqrt.pop %v194
    %v199 = vrsqrt.pop %v195
    %v200 = vrsqrt.pop %v196
    %v201 = vmul.f32 %v169, %v197
    %v202 = vmul.f32 %v170, %v198
    %v203 = vmul.f32 %v171, %v199
    %v204 = vmul.f32 %v172, %v200
    %v205 = vlaneseq
    %v206 = vshrl.u32 %v205, 7
    %v207 = vsub.s32 0, %v206
    %v208 = vrot.slane %v118, %v207
    %v210 = vsel %vm151, %v201, 0
    %v213 = vsel %vm151, %v202, 0
    %v216 = vsel %vm151, %v203, 0
    %v219 = vsel %vm151, %v204, 0
    %221 = vmatprep.subr.mxu0 0.0
    %222 = vmatpush1.msra.mxu0 %v119
    %223 = vmatprep.subr.mxu0 0.0
    %224 = vmatpush1.msra.mxu0 %v120
    %225 = vmatprep.subr.mxu0 0.0
    %226 = vmatpush1.msra.mxu0 %v121
    %227 = vmatprep.subr.mxu0 0.0
    %228 = vmatpush1.msra.mxu0 %v122
    %229 = vmatprep.subr.mxu0 0.0
    %230 = vmatpush1.msra.mxu0 0.0
    %231 = vmatprep.subr.mxu0 0.0
    %232 = vmatpush1.msra.mxu0 0.0
    %233 = vmatprep.subr.mxu0 0.0
    %234 = vmatpush1.msra.mxu0 0.0
    %235 = vmatprep.subr.mxu0 0.0
    %236 = vmatpush1.msra.mxu0 0.0
    %237 = vmatprep.subr.mxu0 0.0
    %238 = vmatpush1.msra.mxu0 0.0
    %239 = vmatprep.subr.mxu0 0.0
    %240 = vmatpush1.msra.mxu0 0.0
    %241 = vmatprep.subr.mxu0 0.0
    %242 = vmatpush1.msra.mxu0 0.0
    %243 = vmatprep.subr.mxu0 0.0
    %244 = vmatpush1.msra.mxu0 0.0
    %245 = vmatprep.subr.mxu0 0.0
    %246 = vmatpush1.msra.mxu0 0.0
    %247 = vmatprep.subr.mxu0 0.0
    %248 = vmatpush1.msra.mxu0 0.0
    %249 = vmatprep.subr.mxu0 0.0
    %250 = vmatpush1.msra.mxu0 0.0
    %251 = vmatprep.subr.mxu0 0.0
    %252 = vmatpush1.msra.mxu0 0.0
    %253 = vmatprep.subr.mxu0 0.0
    %254 = vmatpush1.msra.mxu0 0.0
    %255 = vmatprep.subr.mxu0 0.0
    %256 = vmatpush1.msra.mxu0 0.0
    %257 = vmatprep.subr.mxu0 0.0
    %258 = vmatpush1.msra.mxu0 0.0
    %259 = vmatprep.subr.mxu0 0.0
    %260 = vmatpush1.msra.mxu0 0.0
    %261 = vmatprep.subr.mxu0 0.0
    %262 = vmatpush1.msra.mxu0 0.0
    %263 = vmatprep.subr.mxu0 0.0
    %264 = vmatpush1.msra.mxu0 0.0
    %265 = vmatprep.subr.mxu0 0.0
    %266 = vmatpush1.msra.mxu0 0.0
    %267 = vmatprep.subr.mxu0 0.0
    %268 = vmatpush1.msra.mxu0 0.0
    %269 = vmatprep.subr.mxu0 0.0
    %270 = vmatpush1.msra.mxu0 0.0
    %271 = vmatprep.subr.mxu0 0.0
    %272 = vmatpush1.msra.mxu0 0.0
    %273 = vmatprep.subr.mxu0 0.0
    %274 = vmatpush1.msra.mxu0 0.0
    %275 = vmatprep.subr.mxu0 0.0
    %276 = vmatpush1.msra.mxu0 0.0
    %277 = vmatprep.subr.mxu0 0.0
    %278 = vmatpush1.msra.mxu0 0.0
    %279 = vmatprep.subr.mxu0 0.0
    %280 = vmatpush1.msra.mxu0 0.0
    %281 = vmatprep.subr.mxu0 0.0
    %282 = vmatpush1.msra.mxu0 0.0
    %283 = vmatprep.subr.mxu0 0.0
    %284 = vmatpush1.msra.mxu0 0.0
    %285 = vmatprep.mubr.f32.mxu0 0.0
    %286 = vmatmul.mubr.f32.gmra.mrb[0].mxu0 %v210
    %v287 = vpop.f32.mrb[0].mxu0
    %v288 = vadd.f32 %v208, %v287
    %v289 = vpop.f32.mrb[0].mxu0
    %290 = vmatprep.mubr.f32.mxu0 0.0
    %291 = vmatmul.mubr.f32.gmra.mrb[0].mxu0 %v213
    %v292 = vpop.f32.mrb[0].mxu0
    %v293 = vadd.f32 %v208, %v292
    %v294 = vpop.f32.mrb[0].mxu0
    %295 = vmatprep.mubr.f32.mxu0 0.0
    %296 = vmatmul.mubr.f32.gmra.mrb[0].mxu0 %v216
    %v297 = vpop.f32.mrb[0].mxu0
    %v298 = vadd.f32 %v208, %v297
    %v299 = vpop.f32.mrb[0].mxu0
    %300 = vmatprep.mubr.f32.mxu0 0.0
    %301 = vmatmul.mubr.f32.gmra.mrb[0].mxu0 %v219
    %v302 = vpop.f32.mrb[0].mxu0
    %v303 = vadd.f32 %v208, %v302
    %v304 = vpop.f32.mrb[0].mxu0
    %305 = vdwg.mxu0
    %v306 = vlaneseq
    %v307 = vshrl.u32 %v306, 7
    %v308 = vsub.s32 1, %v307
    %v309 = vrot.slane %v118, %v308
    %310 = vmatprep.subr.mxu0 0.0
    %311 = vmatpush1.msra.mxu0 %v123
    %312 = vmatprep.subr.mxu0 0.0
    %313 = vmatpush1.msra.mxu0 %v124
    %314 = vmatprep.subr.mxu0 0.0
    %315 = vmatpush1.msra.mxu0 %v125
    %316 = vmatprep.subr.mxu0 0.0
    %317 = vmatpush1.msra.mxu0 %v126
    %318 = vmatprep.subr.mxu0 0.0
    %319 = vmatpush1.msra.mxu0 0.0
    %320 = vmatprep.subr.mxu0 0.0
    %321 = vmatpush1.msra.mxu0 0.0
    %322 = vmatprep.subr.mxu0 0.0
    %323 = vmatpush1.msra.mxu0 0.0
    %324 = vmatprep.subr.mxu0 0.0
    %325 = vmatpush1.msra.mxu0 0.0
    %326 = vmatprep.subr.mxu0 0.0
    %327 = vmatpush1.msra.mxu0 0.0
    %328 = vmatprep.subr.mxu0 0.0
    %329 = vmatpush1.msra.mxu0 0.0
    %330 = vmatprep.subr.mxu0 0.0
    %331 = vmatpush1.msra.mxu0 0.0
    %332 = vmatprep.subr.mxu0 0.0
    %333 = vmatpush1.msra.mxu0 0.0
    %334 = vmatprep.subr.mxu0 0.0
    %335 = vmatpush1.msra.mxu0 0.0
    %336 = vmatprep.subr.mxu0 0.0
    %337 = vmatpush1.msra.mxu0 0.0
    %338 = vmatprep.subr.mxu0 0.0
    %339 = vmatpush1.msra.mxu0 0.0
    %340 = vmatprep.subr.mxu0 0.0
    %341 = vmatpush1.msra.mxu0 0.0
    %342 = vmatprep.subr.mxu0 0.0
    %343 = vmatpush1.msra.mxu0 0.0
    %344 = vmatprep.subr.mxu0 0.0
    %345 = vmatpush1.msra.mxu0 0.0
    %346 = vmatprep.subr.mxu0 0.0
    %347 = vmatpush1.msra.mxu0 0.0
    %348 = vmatprep.subr.mxu0 0.0
    %349 = vmatpush1.msra.mxu0 0.0
    %350 = vmatprep.subr.mxu0 0.0
    %351 = vmatpush1.msra.mxu0 0.0
    %352 = vmatprep.subr.mxu0 0.0
    %353 = vmatpush1.msra.mxu0 0.0
    %354 = vmatprep.subr.mxu0 0.0
    %355 = vmatpush1.msra.mxu0 0.0
    %356 = vmatprep.subr.mxu0 0.0
    %357 = vmatpush1.msra.mxu0 0.0
    %358 = vmatprep.subr.mxu0 0.0
    %359 = vmatpush1.msra.mxu0 0.0
    %360 = vmatprep.subr.mxu0 0.0
    %361 = vmatpush1.msra.mxu0 0.0
    %362 = vmatprep.subr.mxu0 0.0
    %363 = vmatpush1.msra.mxu0 0.0
    %364 = vmatprep.subr.mxu0 0.0
    %365 = vmatpush1.msra.mxu0 0.0
    %366 = vmatprep.subr.mxu0 0.0
    %367 = vmatpush1.msra.mxu0 0.0
    %368 = vmatprep.subr.mxu0 0.0
    %369 = vmatpush1.msra.mxu0 0.0
    %370 = vmatprep.subr.mxu0 0.0
    %371 = vmatpush1.msra.mxu0 0.0
    %372 = vmatprep.subr.mxu0 0.0
    %373 = vmatpush1.msra.mxu0 0.0
    %374 = vmatprep.mubr.f32.mxu0 0.0
    %375 = vmatmul.mubr.f32.gmra.mrb[0].mxu0 %v210
    %v376 = vpop.f32.mrb[0].mxu0
    %v377 = vadd.f32 %v309, %v376
    %v378 = vpop.f32.mrb[0].mxu0
    %379 = vmatprep.mubr.f32.mxu0 0.0
    %380 = vmatmul.mubr.f32.gmra.mrb[0].mxu0 %v213
    %v381 = vpop.f32.mrb[0].mxu0
    %v382 = vadd.f32 %v309, %v381
    %v383 = vpop.f32.mrb[0].mxu0
    %384 = vmatprep.mubr.f32.mxu0 0.0
    %385 = vmatmul.mubr.f32.gmra.mrb[0].mxu0 %v216
    %v386 = vpop.f32.mrb[0].mxu0
    %v387 = vadd.f32 %v309, %v386
    %v388 = vpop.f32.mrb[0].mxu0
    %389 = vmatprep.mubr.f32.mxu0 0.0
    %390 = vmatmul.mubr.f32.gmra.mrb[0].mxu0 %v219
    %v391 = vpop.f32.mrb[0].mxu0
    %v392 = vadd.f32 %v309, %v391
    %v393 = vpop.f32.mrb[0].mxu0
    %394 = vdwg.mxu0
    %v395 = vlaneseq
    %v396 = vshrl.u32 %v395, 7
    %v397 = vsub.s32 2, %v396
    %v398 = vrot.slane %v118, %v397
    %399 = vmatprep.subr.mxu0 0.0
    %400 = vmatpush1.msra.mxu0 %v127
    %401 = vmatprep.subr.mxu0 0.0
    %402 = vmatpush1.msra.mxu0 %v128
    %403 = vmatprep.subr.mxu0 0.0
    %404 = vmatpush1.msra.mxu0 %v129
    %405 = vmatprep.subr.mxu0 0.0
    %406 = vmatpush1.msra.mxu0 %v130
    %407 = vmatprep.subr.mxu0 0.0
    %408 = vmatpush1.msra.mxu0 0.0
    %409 = vmatprep.subr.mxu0 0.0
    %410 = vmatpush1.msra.mxu0 0.0
    %411 = vmatprep.subr.mxu0 0.0
    %412 = vmatpush1.msra.mxu0 0.0
    %413 = vmatprep.subr.mxu0 0.0
    %414 = vmatpush1.msra.mxu0 0.0
    %415 = vmatprep.subr.mxu0 0.0
    %416 = vmatpush1.msra.mxu0 0.0
    %417 = vmatprep.subr.mxu0 0.0
    %418 = vmatpush1.msra.mxu0 0.0
    %419 = vmatprep.subr.mxu0 0.0
    %420 = vmatpush1.msra.mxu0 0.0
    %421 = vmatprep.subr.mxu0 0.0
    %422 = vmatpush1.msra.mxu0 0.0
    %423 = vmatprep.subr.mxu0 0.0
    %424 = vmatpush1.msra.mxu0 0.0
    %425 = vmatprep.subr.mxu0 0.0
    %426 = vmatpush1.msra.mxu0 0.0
    %427 = vmatprep.subr.mxu0 0.0
    %428 = vmatpush1.msra.mxu0 0.0
    %429 = vmatprep.subr.mxu0 0.0
    %430 = vmatpush1.msra.mxu0 0.0
    %431 = vmatprep.subr.mxu0 0.0
    %432 = vmatpush1.msra.mxu0 0.0
    %433 = vmatprep.subr.mxu0 0.0
    %434 = vmatpush1.msra.mxu0 0.0
    %435 = vmatprep.subr.mxu0 0.0
    %436 = vmatpush1.msra.mxu0 0.0
    %437 = vmatprep.subr.mxu0 0.0
    %438 = vmatpush1.msra.mxu0 0.0
    %439 = vmatprep.subr.mxu0 0.0
    %440 = vmatpush1.msra.mxu0 0.0
    %441 = vmatprep.subr.mxu0 0.0
    %442 = vmatpush1.msra.mxu0 0.0
    %443 = vmatprep.subr.mxu0 0.0
    %444 = vmatpush1.msra.mxu0 0.0
    %445 = vmatprep.subr.mxu0 0.0
    %446 = vmatpush1.msra.mxu0 0.0
    %447 = vmatprep.subr.mxu0 0.0
    %448 = vmatpush1.msra.mxu0 0.0
    %449 = vmatprep.subr.mxu0 0.0
    %450 = vmatpush1.msra.mxu0 0.0
    %451 = vmatprep.subr.mxu0 0.0
    %452 = vmatpush1.msra.mxu0 0.0
    %453 = vmatprep.subr.mxu0 0.0
    %454 = vmatpush1.msra.mxu0 0.0
    %455 = vmatprep.subr.mxu0 0.0
    %456 = vmatpush1.msra.mxu0 0.0
    %457 = vmatprep.subr.mxu0 0.0
    %458 = vmatpush1.msra.mxu0 0.0
    %459 = vmatprep.subr.mxu0 0.0
    %460 = vmatpush1.msra.mxu0 0.0
    %461 = vmatprep.subr.mxu0 0.0
    %462 = vmatpush1.msra.mxu0 0.0
    %463 = vmatprep.mubr.f32.mxu0 0.0
    %464 = vmatmul.mubr.f32.gmra.mrb[0].mxu0 %v210
    %v465 = vpop.f32.mrb[0].mxu0
    %v466 = vadd.f32 %v398, %v465
    %v467 = vpop.f32.mrb[0].mxu0
    %468 = vmatprep.mubr.f32.mxu0 0.0
    %469 = vmatmul.mubr.f32.gmra.mrb[0].mxu0 %v213
    %v470 = vpop.f32.mrb[0].mxu0
    %v471 = vadd.f32 %v398, %v470
    %v472 = vpop.f32.mrb[0].mxu0
    %473 = vmatprep.mubr.f32.mxu0 0.0
    %474 = vmatmul.mubr.f32.gmra.mrb[0].mxu0 %v216
    %v475 = vpop.f32.mrb[0].mxu0
    %v476 = vadd.f32 %v398, %v475
    %v477 = vpop.f32.mrb[0].mxu0
    %478 = vmatprep.mubr.f32.mxu0 0.0
    %479 = vmatmul.mubr.f32.gmra.mrb[0].mxu0 %v219
    %v480 = vpop.f32.mrb[0].mxu0
    %v481 = vadd.f32 %v398, %v480
    %v482 = vpop.f32.mrb[0].mxu0
    %483 = vdwg.mxu0
    %v485 = vsel %vm151, %v50, 0
    %v488 = vsel %vm151, %v51, 0
    %v491 = vsel %vm151, %v52, 0
    %v494 = vsel %vm151, %v53, 0
    %v497 = vsel %vm151, %v54, 0
    %v500 = vsel %vm151, %v55, 0
    %v503 = vsel %vm151, %v56, 0
    %v506 = vsel %vm151, %v57, 0
    %v509 = vsel %vm151, %v58, 0
    %v512 = vsel %vm151, %v59, 0
    %v515 = vsel %vm151, %v60, 0
    %v518 = vsel %vm151, %v61, 0
    %v521 = vsel %vm151, %v62, 0
    %v524 = vsel %vm151, %v63, 0
    %v527 = vsel %vm151, %v64, 0
    %v530 = vsel %vm151, %v65, 0
    %532 = vmatprep.subr.mxu0 0.0
    %533 = vmatpush1.msra.mxu0 %v288
    %534 = vmatprep.subr.mxu0 0.0
    %535 = vmatpush1.msra.mxu0 %v293
    %536 = vmatprep.subr.mxu0 0.0
    %537 = vmatpush1.msra.mxu0 %v298
    %538 = vmatprep.subr.mxu0 0.0
    %539 = vmatpush1.msra.mxu0 %v303
    %540 = vmatprep.subr.mxu0 0.0
    %541 = vmatpush1.msra.mxu0 0.0
    %542 = vmatprep.subr.mxu0 0.0
    %543 = vmatpush1.msra.mxu0 0.0
    %544 = vmatprep.subr.mxu0 0.0
    %545 = vmatpush1.msra.mxu0 0.0
    %546 = vmatprep.subr.mxu0 0.0
    %547 = vmatpush1.msra.mxu0 0.0
    %548 = vmatprep.subr.mxu0 0.0
    %549 = vmatpush1.msra.mxu0 0.0
    %550 = vmatprep.subr.mxu0 0.0
    %551 = vmatpush1.msra.mxu0 0.0
    %552 = vmatprep.subr.mxu0 0.0
    %553 = vmatpush1.msra.mxu0 0.0
    %554 = vmatprep.subr.mxu0 0.0
    %555 = vmatpush1.msra.mxu0 0.0
    %556 = vmatprep.subr.mxu0 0.0
    %557 = vmatpush1.msra.mxu0 0.0
    %558 = vmatprep.subr.mxu0 0.0
    %559 = vmatpush1.msra.mxu0 0.0
    %560 = vmatprep.subr.mxu0 0.0
    %561 = vmatpush1.msra.mxu0 0.0
    %562 = vmatprep.subr.mxu0 0.0
    %563 = vmatpush1.msra.mxu0 0.0
    %564 = vmatprep.subr.mxu0 0.0
    %565 = vmatpush1.msra.mxu0 0.0
    %566 = vmatprep.subr.mxu0 0.0
    %567 = vmatpush1.msra.mxu0 0.0
    %568 = vmatprep.subr.mxu0 0.0
    %569 = vmatpush1.msra.mxu0 0.0
    %570 = vmatprep.subr.mxu0 0.0
    %571 = vmatpush1.msra.mxu0 0.0
    %572 = vmatprep.subr.mxu0 0.0
    %573 = vmatpush1.msra.mxu0 0.0
    %574 = vmatprep.subr.mxu0 0.0
    %575 = vmatpush1.msra.mxu0 0.0
    %576 = vmatprep.subr.mxu0 0.0
    %577 = vmatpush1.msra.mxu0 0.0
    %578 = vmatprep.subr.mxu0 0.0
    %579 = vmatpush1.msra.mxu0 0.0
    %580 = vmatprep.subr.mxu0 0.0
    %581 = vmatpush1.msra.mxu0 0.0
    %582 = vmatprep.subr.mxu0 0.0
    %583 = vmatpush1.msra.mxu0 0.0
    %584 = vmatprep.subr.mxu0 0.0
    %585 = vmatpush1.msra.mxu0 0.0
    %586 = vmatprep.subr.mxu0 0.0
    %587 = vmatpush1.msra.mxu0 0.0
    %588 = vmatprep.subr.mxu0 0.0
    %589 = vmatpush1.msra.mxu0 0.0
    %590 = vmatprep.subr.mxu0 0.0
    %591 = vmatpush1.msra.mxu0 0.0
    %592 = vmatprep.subr.mxu0 0.0
    %593 = vmatpush1.msra.mxu0 0.0
    %594 = vmatprep.subr.mxu0 0.0
    %595 = vmatpush1.msra.mxu0 0.0
    %596 = vmatprep.mubr.f32.mxu0 0.0
    %597 = vmatmul.mubr.f32.gmra.mrb[0].mxu0 %v485
    %v598 = vpop.f32.mrb[0].mxu0
    %v599 = vadd.f32 0.0, %v598
    %v600 = vpop.f32.mrb[0].mxu0
    %601 = vmatprep.mubr.f32.mxu0 0.0
    %602 = vmatmul.mubr.f32.gmra.mrb[0].mxu0 %v488
    %v603 = vpop.f32.mrb[0].mxu0
    %v604 = vadd.f32 0.0, %v603
    %v605 = vpop.f32.mrb[0].mxu0
    %606 = vmatprep.mubr.f32.mxu0 0.0
    %607 = vmatmul.mubr.f32.gmra.mrb[0].mxu0 %v491
    %v608 = vpop.f32.mrb[0].mxu0
    %v609 = vadd.f32 0.0, %v608
    %v610 = vpop.f32.mrb[0].mxu0
    %611 = vmatprep.mubr.f32.mxu0 0.0
    %612 = vmatmul.mubr.f32.gmra.mrb[0].mxu0 %v494
    %v613 = vpop.f32.mrb[0].mxu0
    %v614 = vadd.f32 0.0, %v613
    %v615 = vpop.f32.mrb[0].mxu0
    %616 = vmatprep.mubr.f32.mxu0 0.0
    %617 = vmatmul.mubr.f32.gmra.mrb[0].mxu0 %v497
    %v618 = vpop.f32.mrb[0].mxu0
    %v619 = vadd.f32 0.0, %v618
    %v620 = vpop.f32.mrb[0].mxu0
    %621 = vmatprep.mubr.f32.mxu0 0.0
    %622 = vmatmul.mubr.f32.gmra.mrb[0].mxu0 %v500
    %v623 = vpop.f32.mrb[0].mxu0
    %v624 = vadd.f32 0.0, %v623
    %v625 = vpop.f32.mrb[0].mxu0
    %626 = vmatprep.mubr.f32.mxu0 0.0
    %627 = vmatmul.mubr.f32.gmra.mrb[0].mxu0 %v503
    %v628 = vpop.f32.mrb[0].mxu0
    %v629 = vadd.f32 0.0, %v628
    %v630 = vpop.f32.mrb[0].mxu0
    %631 = vmatprep.mubr.f32.mxu0 0.0
    %632 = vmatmul.mubr.f32.gmra.mrb[0].mxu0 %v506
    %v633 = vpop.f32.mrb[0].mxu0
    %v634 = vadd.f32 0.0, %v633
    %v635 = vpop.f32.mrb[0].mxu0
    %636 = vmatprep.mubr.f32.mxu0 0.0
    %637 = vmatmul.mubr.f32.gmra.mrb[0].mxu0 %v509
    %v638 = vpop.f32.mrb[0].mxu0
    %v639 = vadd.f32 0.0, %v638
    %v640 = vpop.f32.mrb[0].mxu0
    %641 = vmatprep.mubr.f32.mxu0 0.0
    %642 = vmatmul.mubr.f32.gmra.mrb[0].mxu0 %v512
    %v643 = vpop.f32.mrb[0].mxu0
    %v644 = vadd.f32 0.0, %v643
    %v645 = vpop.f32.mrb[0].mxu0
    %646 = vmatprep.mubr.f32.mxu0 0.0
    %647 = vmatmul.mubr.f32.gmra.mrb[0].mxu0 %v515
    %v648 = vpop.f32.mrb[0].mxu0
    %v649 = vadd.f32 0.0, %v648
    %v650 = vpop.f32.mrb[0].mxu0
    %651 = vmatprep.mubr.f32.mxu0 0.0
    %652 = vmatmul.mubr.f32.gmra.mrb[0].mxu0 %v518
    %v653 = vpop.f32.mrb[0].mxu0
    %v654 = vadd.f32 0.0, %v653
    %v655 = vpop.f32.mrb[0].mxu0
    %656 = vmatprep.mubr.f32.mxu0 0.0
    %657 = vmatmul.mubr.f32.gmra.mrb[0].mxu0 %v521
    %v658 = vpop.f32.mrb[0].mxu0
    %v659 = vadd.f32 0.0, %v658
    %v660 = vpop.f32.mrb[0].mxu0
    %661 = vmatprep.mubr.f32.mxu0 0.0
    %662 = vmatmul.mubr.f32.gmra.mrb[0].mxu0 %v524
    %v663 = vpop.f32.mrb[0].mxu0
    %v664 = vadd.f32 0.0, %v663
    %v665 = vpop.f32.mrb[0].mxu0
    %666 = vmatprep.mubr.f32.mxu0 0.0
    %667 = vmatmul.mubr.f32.gmra.mrb[0].mxu0 %v527
    %v668 = vpop.f32.mrb[0].mxu0
    %v669 = vadd.f32 0.0, %v668
    %v670 = vpop.f32.mrb[0].mxu0
    %671 = vmatprep.mubr.f32.mxu0 0.0
    %672 = vmatmul.mubr.f32.gmra.mrb[0].mxu0 %v530
    %v673 = vpop.f32.mrb[0].mxu0
    %v674 = vadd.f32 0.0, %v673
    %v675 = vpop.f32.mrb[0].mxu0
    %676 = vdwg.mxu0
    %v677 = vmul.f32 %v599, %v70
    %v678 = vmul.f32 %v604, %v71
    %v679 = vmul.f32 %v609, %v72
    %v680 = vmul.f32 %v614, %v73
    %v681 = vmul.f32 %v619, %v74
    %v682 = vmul.f32 %v624, %v75
    %v683 = vmul.f32 %v629, %v76
    %v684 = vmul.f32 %v634, %v77
    %v685 = vmul.f32 %v639, %v78
    %v686 = vmul.f32 %v644, %v79
    %v687 = vmul.f32 %v649, %v80
    %v688 = vmul.f32 %v654, %v81
    %v689 = vmul.f32 %v659, %v82
    %v690 = vmul.f32 %v664, %v83
    %v691 = vmul.f32 %v669, %v84
    %v692 = vmul.f32 %v674, %v85
    %v694 = vsel %vm151, %v677, 0
    %v697 = vsel %vm151, %v678, 0
    %v700 = vsel %vm151, %v679, 0
    %v703 = vsel %vm151, %v680, 0
    %v706 = vsel %vm151, %v681, 0
    %v709 = vsel %vm151, %v682, 0
    %v712 = vsel %vm151, %v683, 0
    %v715 = vsel %vm151, %v684, 0
    %v718 = vsel %vm151, %v685, 0
    %v721 = vsel %vm151, %v686, 0
    %v724 = vsel %vm151, %v687, 0
    %v727 = vsel %vm151, %v688, 0
    %v730 = vsel %vm151, %v689, 0
    %v733 = vsel %vm151, %v690, 0
    %v736 = vsel %vm151, %v691, 0
    %v739 = vsel %vm151, %v692, 0
    %v742 = vsel %vm151, %v377, 0
    %v745 = vsel %vm151, %v382, 0
    %v748 = vsel %vm151, %v387, 0
    %v751 = vsel %vm151, %v392, 0
    %753 = vmatprep.subr.mxu0 0.0
    %754 = vmatpush1.xpose.msra.mxu0 %v742
    %755 = vmatprep.subr.mxu0 0.0
    %756 = vmatpush1.xpose.msra.mxu0 %v745
    %757 = vmatprep.subr.mxu0 0.0
    %758 = vmatpush1.xpose.msra.mxu0 %v748
    %759 = vmatprep.subr.mxu0 0.0
    %760 = vmatpush1.xpose.msra.mxu0 %v751
    %761 = vmatprep.subr.mxu0 0.0
    %762 = vmatpush1.xpose.msra.mxu0 0.0
    %763 = vmatprep.subr.mxu0 0.0
    %764 = vmatpush1.xpose.msra.mxu0 0.0
    %765 = vmatprep.subr.mxu0 0.0
    %766 = vmatpush1.xpose.msra.mxu0 0.0
    %767 = vmatprep.subr.mxu0 0.0
    %768 = vmatpush1.xpose.msra.mxu0 0.0
    %769 = vmatprep.subr.mxu0 0.0
    %770 = vmatpush1.xpose.msra.mxu0 0.0
    %771 = vmatprep.subr.mxu0 0.0
    %772 = vmatpush1.xpose.msra.mxu0 0.0
    %773 = vmatprep.subr.mxu0 0.0
    %774 = vmatpush1.xpose.msra.mxu0 0.0
    %775 = vmatprep.subr.mxu0 0.0
    %776 = vmatpush1.xpose.msra.mxu0 0.0
    %777 = vmatprep.subr.mxu0 0.0
    %778 = vmatpush1.xpose.msra.mxu0 0.0
    %779 = vmatprep.subr.mxu0 0.0
    %780 = vmatpush1.xpose.msra.mxu0 0.0
    %781 = vmatprep.subr.mxu0 0.0
    %782 = vmatpush1.xpose.msra.mxu0 0.0
    %783 = vmatprep.subr.mxu0 0.0
    %784 = vmatpush1.xpose.msra.mxu0 0.0
    %785 = vmatprep.subr.mxu0 0.0
    %786 = vmatpush1.xpose.msra.mxu0 0.0
    %787 = vmatprep.subr.mxu0 0.0
    %788 = vmatpush1.xpose.msra.mxu0 0.0
    %789 = vmatprep.subr.mxu0 0.0
    %790 = vmatpush1.xpose.msra.mxu0 0.0
    %791 = vmatprep.subr.mxu0 0.0
    %792 = vmatpush1.xpose.msra.mxu0 0.0
    %793 = vmatprep.subr.mxu0 0.0
    %794 = vmatpush1.xpose.msra.mxu0 0.0
    %795 = vmatprep.subr.mxu0 0.0
    %796 = vmatpush1.xpose.msra.mxu0 0.0
    %797 = vmatprep.subr.mxu0 0.0
    %798 = vmatpush1.xpose.msra.mxu0 0.0
    %799 = vmatprep.subr.mxu0 0.0
    %800 = vmatpush1.xpose.msra.mxu0 0.0
    %801 = vmatprep.subr.mxu0 0.0
    %802 = vmatpush1.xpose.msra.mxu0 0.0
    %803 = vmatprep.subr.mxu0 0.0
    %804 = vmatpush1.xpose.msra.mxu0 0.0
    %805 = vmatprep.subr.mxu0 0.0
    %806 = vmatpush1.xpose.msra.mxu0 0.0
    %807 = vmatprep.subr.mxu0 0.0
    %808 = vmatpush1.xpose.msra.mxu0 0.0
    %809 = vmatprep.subr.mxu0 0.0
    %810 = vmatpush1.xpose.msra.mxu0 0.0
    %811 = vmatprep.subr.mxu0 0.0
    %812 = vmatpush1.xpose.msra.mxu0 0.0
    %813 = vmatprep.subr.mxu0 0.0
    %814 = vmatpush1.xpose.msra.mxu0 0.0
    %815 = vmatprep.subr.mxu0 0.0
    %816 = vmatpush1.xpose.msra.mxu0 0.0
    %817 = vmatprep.mubr.f32.mxu0 0.0
    %818 = vmatmul.mubr.f32.gmra.mrb[0].mxu0 %v694
    %v819 = vpop.f32.mrb[0].mxu0
    %v820 = vadd.f32 %v86, %v819
    %v821 = vpop.f32.mrb[0].mxu0
    %822 = vmatprep.mubr.f32.mxu0 0.0
    %823 = vmatmul.mubr.f32.gmra.mrb[0].mxu0 %v697
    %v824 = vpop.f32.mrb[0].mxu0
    %v825 = vadd.f32 %v87, %v824
    %v826 = vpop.f32.mrb[0].mxu0
    %827 = vmatprep.mubr.f32.mxu0 0.0
    %828 = vmatmul.mubr.f32.gmra.mrb[0].mxu0 %v700
    %v829 = vpop.f32.mrb[0].mxu0
    %v830 = vadd.f32 %v88, %v829
    %v831 = vpop.f32.mrb[0].mxu0
    %832 = vmatprep.mubr.f32.mxu0 0.0
    %833 = vmatmul.mubr.f32.gmra.mrb[0].mxu0 %v703
    %v834 = vpop.f32.mrb[0].mxu0
    %v835 = vadd.f32 %v89, %v834
    %v836 = vpop.f32.mrb[0].mxu0
    %837 = vmatprep.mubr.f32.mxu0 0.0
    %838 = vmatmul.mubr.f32.gmra.mrb[0].mxu0 %v706
    %v839 = vpop.f32.mrb[0].mxu0
    %v840 = vadd.f32 %v90, %v839
    %v841 = vpop.f32.mrb[0].mxu0
    %842 = vmatprep.mubr.f32.mxu0 0.0
    %843 = vmatmul.mubr.f32.gmra.mrb[0].mxu0 %v709
    %v844 = vpop.f32.mrb[0].mxu0
    %v845 = vadd.f32 %v91, %v844
    %v846 = vpop.f32.mrb[0].mxu0
    %847 = vmatprep.mubr.f32.mxu0 0.0
    %848 = vmatmul.mubr.f32.gmra.mrb[0].mxu0 %v712
    %v849 = vpop.f32.mrb[0].mxu0
    %v850 = vadd.f32 %v92, %v849
    %v851 = vpop.f32.mrb[0].mxu0
    %852 = vmatprep.mubr.f32.mxu0 0.0
    %853 = vmatmul.mubr.f32.gmra.mrb[0].mxu0 %v715
    %v854 = vpop.f32.mrb[0].mxu0
    %v855 = vadd.f32 %v93, %v854
    %v856 = vpop.f32.mrb[0].mxu0
    %857 = vmatprep.mubr.f32.mxu0 0.0
    %858 = vmatmul.mubr.f32.gmra.mrb[0].mxu0 %v718
    %v859 = vpop.f32.mrb[0].mxu0
    %v860 = vadd.f32 %v94, %v859
    %v861 = vpop.f32.mrb[0].mxu0
    %862 = vmatprep.mubr.f32.mxu0 0.0
    %863 = vmatmul.mubr.f32.gmra.mrb[0].mxu0 %v721
    %v864 = vpop.f32.mrb[0].mxu0
    %v865 = vadd.f32 %v95, %v864
    %v866 = vpop.f32.mrb[0].mxu0
    %867 = vmatprep.mubr.f32.mxu0 0.0
    %868 = vmatmul.mubr.f32.gmra.mrb[0].mxu0 %v724
    %v869 = vpop.f32.mrb[0].mxu0
    %v870 = vadd.f32 %v96, %v869
    %v871 = vpop.f32.mrb[0].mxu0
    %872 = vmatprep.mubr.f32.mxu0 0.0
    %873 = vmatmul.mubr.f32.gmra.mrb[0].mxu0 %v727
    %v874 = vpop.f32.mrb[0].mxu0
    %v875 = vadd.f32 %v97, %v874
    %v876 = vpop.f32.mrb[0].mxu0
    %877 = vmatprep.mubr.f32.mxu0 0.0
    %878 = vmatmul.mubr.f32.gmra.mrb[0].mxu0 %v730
    %v879 = vpop.f32.mrb[0].mxu0
    %v880 = vadd.f32 %v98, %v879
    %v881 = vpop.f32.mrb[0].mxu0
    %882 = vmatprep.mubr.f32.mxu0 0.0
    %883 = vmatmul.mubr.f32.gmra.mrb[0].mxu0 %v733
    %v884 = vpop.f32.mrb[0].mxu0
    %v885 = vadd.f32 %v99, %v884
    %v886 = vpop.f32.mrb[0].mxu0
    %887 = vmatprep.mubr.f32.mxu0 0.0
    %888 = vmatmul.mubr.f32.gmra.mrb[0].mxu0 %v736
    %v889 = vpop.f32.mrb[0].mxu0
    %v890 = vadd.f32 %v100, %v889
    %v891 = vpop.f32.mrb[0].mxu0
    %892 = vmatprep.mubr.f32.mxu0 0.0
    %893 = vmatmul.mubr.f32.gmra.mrb[0].mxu0 %v739
    %v894 = vpop.f32.mrb[0].mxu0
    %v895 = vadd.f32 %v101, %v894
    %v896 = vpop.f32.mrb[0].mxu0
    %897 = vdwg.mxu0
    %v898 = vsel %vm151, %v820, -inf
    %899 = vmax.xlane.f32.xlu0 %v898
    %v900 = vpop.xlane.xlu0 %899
    %v901 = vsel %vm151, %v825, -inf
    %902 = vmax.xlane.f32.xlu0 %v901
    %v903 = vpop.xlane.xlu0 %902
    %v904 = vsel %vm151, %v830, -inf
    %905 = vmax.xlane.f32.xlu0 %v904
    %v906 = vpop.xlane.xlu0 %905
    %v907 = vsel %vm151, %v835, -inf
    %908 = vmax.xlane.f32.xlu0 %v907
    %v909 = vpop.xlane.xlu0 %908
    %v910 = vsel %vm151, %v840, -inf
    %911 = vmax.xlane.f32.xlu0 %v910
    %v912 = vpop.xlane.xlu0 %911
    %v913 = vsel %vm151, %v845, -inf
    %914 = vmax.xlane.f32.xlu0 %v913
    %v915 = vpop.xlane.xlu0 %914
    %v916 = vsel %vm151, %v850, -inf
    %917 = vmax.xlane.f32.xlu0 %v916
    %v918 = vpop.xlane.xlu0 %917
    %v919 = vsel %vm151, %v855, -inf
    %920 = vmax.xlane.f32.xlu0 %v919
    %v921 = vpop.xlane.xlu0 %920
    %v922 = vsel %vm151, %v860, -inf
    %923 = vmax.xlane.f32.xlu0 %v922
    %v924 = vpop.xlane.xlu0 %923
    %v925 = vsel %vm151, %v865, -inf
    %926 = vmax.xlane.f32.xlu0 %v925
    %v927 = vpop.xlane.xlu0 %926
    %v928 = vsel %vm151, %v870, -inf
    %929 = vmax.xlane.f32.xlu0 %v928
    %v930 = vpop.xlane.xlu0 %929
    %v931 = vsel %vm151, %v875, -inf
    %932 = vmax.xlane.f32.xlu0 %v931
    %v933 = vpop.xlane.xlu0 %932
    %v934 = vsel %vm151, %v880, -inf
    %935 = vmax.xlane.f32.xlu0 %v934
    %v936 = vpop.xlane.xlu0 %935
    %v937 = vsel %vm151, %v885, -inf
    %938 = vmax.xlane.f32.xlu0 %v937
    %v939 = vpop.xlane.xlu0 %938
    %v940 = vsel %vm151, %v890, -inf
    %941 = vmax.xlane.f32.xlu0 %v940
    %v942 = vpop.xlane.xlu0 %941
    %v943 = vsel %vm151, %v895, -inf
    %944 = vmax.xlane.f32.xlu0 %v943
    %v945 = vpop.xlane.xlu0 %944
    %v946 = vsub.f32 %v820, %v900
    %v947 = vsub.f32 %v825, %v903
    %v948 = vsub.f32 %v830, %v906
    %v949 = vsub.f32 %v835, %v909
    %v950 = vsub.f32 %v840, %v912
    %v951 = vsub.f32 %v845, %v915
    %v952 = vsub.f32 %v850, %v918
    %v953 = vsub.f32 %v855, %v921
    %v954 = vsub.f32 %v860, %v924
    %v955 = vsub.f32 %v865, %v927
    %v956 = vsub.f32 %v870, %v930
    %v957 = vsub.f32 %v875, %v933
    %v958 = vsub.f32 %v880, %v936
    %v959 = vsub.f32 %v885, %v939
    %v960 = vsub.f32 %v890, %v942
    %v961 = vsub.f32 %v895, %v945
    %v962 = vmul.f32 %v946, 1.442695
    %v963 = vpow.pop %v962
    %v964 = vmul.f32 %v947, 1.442695
    %v965 = vpow.pop %v964
    %v966 = vmul.f32 %v948, 1.442695
    %v967 = vpow.pop %v966
    %v968 = vmul.f32 %v949, 1.442695
    %v969 = vpow.pop %v968
    %v970 = vmul.f32 %v950, 1.442695
    %v971 = vpow.pop %v970
    %v972 = vmul.f32 %v951, 1.442695
    %v973 = vpow.pop %v972
    %v974 = vmul.f32 %v952, 1.442695
    %v975 = vpow.pop %v974
    %v976 = vmul.f32 %v953, 1.442695
    %v977 = vpow.pop %v976
    %v978 = vmul.f32 %v954, 1.442695
    %v979 = vpow.pop %v978
    %v980 = vmul.f32 %v955, 1.442695
    %v981 = vpow.pop %v980
    %v982 = vmul.f32 %v956, 1.442695
    %v983 = vpow.pop %v982
    %v984 = vmul.f32 %v957, 1.442695
    %v985 = vpow.pop %v984
    %v986 = vmul.f32 %v958, 1.442695
    %v987 = vpow.pop %v986
    %v988 = vmul.f32 %v959, 1.442695
    %v989 = vpow.pop %v988
    %v990 = vmul.f32 %v960, 1.442695
    %v991 = vpow.pop %v990
    %v992 = vmul.f32 %v961, 1.442695
    %v993 = vpow.pop %v992
    %v994 = vsel %vm151, %v963, 0.0
    %995 = vadd.xlane.f32.xlu0 %v994
    %v996 = vpop.xlane.xlu0 %995
    %v997 = vsel %vm151, %v965, 0.0
    %998 = vadd.xlane.f32.xlu0 %v997
    %v999 = vpop.xlane.xlu0 %998
    %v1000 = vsel %vm151, %v967, 0.0
    %1001 = vadd.xlane.f32.xlu0 %v1000
    %v1002 = vpop.xlane.xlu0 %1001
    %v1003 = vsel %vm151, %v969, 0.0
    %1004 = vadd.xlane.f32.xlu0 %v1003
    %v1005 = vpop.xlane.xlu0 %1004
    %v1006 = vsel %vm151, %v971, 0.0
    %1007 = vadd.xlane.f32.xlu0 %v1006
    %v1008 = vpop.xlane.xlu0 %1007
    %v1009 = vsel %vm151, %v973, 0.0
    %1010 = vadd.xlane.f32.xlu0 %v1009
    %v1011 = vpop.xlane.xlu0 %1010
    %v1012 = vsel %vm151, %v975, 0.0
    %1013 = vadd.xlane.f32.xlu0 %v1012
    %v1014 = vpop.xlane.xlu0 %1013
    %v1015 = vsel %vm151, %v977, 0.0
    %1016 = vadd.xlane.f32.xlu0 %v1015
    %v1017 = vpop.xlane.xlu0 %1016
    %v1018 = vsel %vm151, %v979, 0.0
    %1019 = vadd.xlane.f32.xlu0 %v1018
    %v1020 = vpop.xlane.xlu0 %1019
    %v1021 = vsel %vm151, %v981, 0.0
    %1022 = vadd.xlane.f32.xlu0 %v1021
    %v1023 = vpop.xlane.xlu0 %1022
    %v1024 = vsel %vm151, %v983, 0.0
    %1025 = vadd.xlane.f32.xlu0 %v1024
    %v1026 = vpop.xlane.xlu0 %1025
    %v1027 = vsel %vm151, %v985, 0.0
    %1028 = vadd.xlane.f32.xlu0 %v1027
    %v1029 = vpop.xlane.xlu0 %1028
    %v1030 = vsel %vm151, %v987, 0.0
    %1031 = vadd.xlane.f32.xlu0 %v1030
    %v1032 = vpop.xlane.xlu0 %1031
    %v1033 = vsel %vm151, %v989, 0.0
    %1034 = vadd.xlane.f32.xlu0 %v1033
    %v1035 = vpop.xlane.xlu0 %1034
    %v1036 = vsel %vm151, %v991, 0.0
    %1037 = vadd.xlane.f32.xlu0 %v1036
    %v1038 = vpop.xlane.xlu0 %1037
    %v1039 = vsel %vm151, %v993, 0.0
    %1040 = vadd.xlane.f32.xlu0 %v1039
    %v1041 = vpop.xlane.xlu0 %1040
    %v1042 = vrcp.pop %v996
    %v1043 = vrcp.pop %v999
    %v1044 = vrcp.pop %v1002
    %v1045 = vrcp.pop %v1005
    %v1046 = vrcp.pop %v1008
    %v1047 = vrcp.pop %v1011
    %v1048 = vrcp.pop %v1014
    %v1049 = vrcp.pop %v1017
    %v1050 = vrcp.pop %v1020
    %v1051 = vrcp.pop %v1023
    %v1052 = vrcp.pop %v1026
    %v1053 = vrcp.pop %v1029
    %v1054 = vrcp.pop %v1032
    %v1055 = vrcp.pop %v1035
    %v1056 = vrcp.pop %v1038
    %v1057 = vrcp.pop %v1041
    %v1058 = vmul.f32 %v963, %v1042
    %v1059 = vmul.f32 %v965, %v1043
    %v1060 = vmul.f32 %v967, %v1044
    %v1061 = vmul.f32 %v969, %v1045
    %v1062 = vmul.f32 %v971, %v1046
    %v1063 = vmul.f32 %v973, %v1047
    %v1064 = vmul.f32 %v975, %v1048
    %v1065 = vmul.f32 %v977, %v1049
    %v1066 = vmul.f32 %v979, %v1050
    %v1067 = vmul.f32 %v981, %v1051
    %v1068 = vmul.f32 %v983, %v1052
    %v1069 = vmul.f32 %v985, %v1053
    %v1070 = vmul.f32 %v987, %v1054
    %v1071 = vmul.f32 %v989, %v1055
    %v1072 = vmul.f32 %v991, %v1056
    %v1073 = vmul.f32 %v993, %v1057
    %v1075 = vsel %vm151, %v1058, 0
    %v1078 = vsel %vm151, %v1059, 0
    %v1081 = vsel %vm151, %v1060, 0
    %v1084 = vsel %vm151, %v1061, 0
    %v1087 = vsel %vm151, %v1062, 0
    %v1090 = vsel %vm151, %v1063, 0
    %v1093 = vsel %vm151, %v1064, 0
    %v1096 = vsel %vm151, %v1065, 0
    %v1099 = vsel %vm151, %v1066, 0
    %v1102 = vsel %vm151, %v1067, 0
    %v1105 = vsel %vm151, %v1068, 0
    %v1108 = vsel %vm151, %v1069, 0
    %v1111 = vsel %vm151, %v1070, 0
    %v1114 = vsel %vm151, %v1071, 0
    %v1117 = vsel %vm151, %v1072, 0
    %v1120 = vsel %vm151, %v1073, 0
    %1122 = vmatprep.subr.mxu0 0.0
    %1123 = vmatpush1.msra.mxu0 %v466
    %1124 = vmatprep.subr.mxu0 0.0
    %1125 = vmatpush1.msra.mxu0 %v471
    %1126 = vmatprep.subr.mxu0 0.0
    %1127 = vmatpush1.msra.mxu0 %v476
    %1128 = vmatprep.subr.mxu0 0.0
    %1129 = vmatpush1.msra.mxu0 %v481
    %1130 = vmatprep.subr.mxu0 0.0
    %1131 = vmatpush1.msra.mxu0 0.0
    %1132 = vmatprep.subr.mxu0 0.0
    %1133 = vmatpush1.msra.mxu0 0.0
    %1134 = vmatprep.subr.mxu0 0.0
    %1135 = vmatpush1.msra.mxu0 0.0
    %1136 = vmatprep.subr.mxu0 0.0
    %1137 = vmatpush1.msra.mxu0 0.0
    %1138 = vmatprep.subr.mxu0 0.0
    %1139 = vmatpush1.msra.mxu0 0.0
    %1140 = vmatprep.subr.mxu0 0.0
    %1141 = vmatpush1.msra.mxu0 0.0
    %1142 = vmatprep.subr.mxu0 0.0
    %1143 = vmatpush1.msra.mxu0 0.0
    %1144 = vmatprep.subr.mxu0 0.0
    %1145 = vmatpush1.msra.mxu0 0.0
    %1146 = vmatprep.subr.mxu0 0.0
    %1147 = vmatpush1.msra.mxu0 0.0
    %1148 = vmatprep.subr.mxu0 0.0
    %1149 = vmatpush1.msra.mxu0 0.0
    %1150 = vmatprep.subr.mxu0 0.0
    %1151 = vmatpush1.msra.mxu0 0.0
    %1152 = vmatprep.subr.mxu0 0.0
    %1153 = vmatpush1.msra.mxu0 0.0
    %1154 = vmatprep.subr.mxu0 0.0
    %1155 = vmatpush1.msra.mxu0 0.0
    %1156 = vmatprep.subr.mxu0 0.0
    %1157 = vmatpush1.msra.mxu0 0.0
    %1158 = vmatprep.subr.mxu0 0.0
    %1159 = vmatpush1.msra.mxu0 0.0
    %1160 = vmatprep.subr.mxu0 0.0
    %1161 = vmatpush1.msra.mxu0 0.0
    %1162 = vmatprep.subr.mxu0 0.0
    %1163 = vmatpush1.msra.mxu0 0.0
    %1164 = vmatprep.subr.mxu0 0.0
    %1165 = vmatpush1.msra.mxu0 0.0
    %1166 = vmatprep.subr.mxu0 0.0
    %1167 = vmatpush1.msra.mxu0 0.0
    %1168 = vmatprep.subr.mxu0 0.0
    %1169 = vmatpush1.msra.mxu0 0.0
    %1170 = vmatprep.subr.mxu0 0.0
    %1171 = vmatpush1.msra.mxu0 0.0
    %1172 = vmatprep.subr.mxu0 0.0
    %1173 = vmatpush1.msra.mxu0 0.0
    %1174 = vmatprep.subr.mxu0 0.0
    %1175 = vmatpush1.msra.mxu0 0.0
    %1176 = vmatprep.subr.mxu0 0.0
    %1177 = vmatpush1.msra.mxu0 0.0
    %1178 = vmatprep.subr.mxu0 0.0
    %1179 = vmatpush1.msra.mxu0 0.0
    %1180 = vmatprep.subr.mxu0 0.0
    %1181 = vmatpush1.msra.mxu0 0.0
    %1182 = vmatprep.subr.mxu0 0.0
    %1183 = vmatpush1.msra.mxu0 0.0
    %1184 = vmatprep.subr.mxu0 0.0
    %1185 = vmatpush1.msra.mxu0 0.0
    %1186 = vmatprep.mubr.f32.mxu0 0.0
    %1187 = vmatmul.mubr.f32.gmra.mrb[0].mxu0 %v1075
    %v1188 = vpop.f32.mrb[0].mxu0
    %v1189 = vadd.f32 0.0, %v1188
    %v1190 = vpop.f32.mrb[0].mxu0
    %1191 = vmatprep.mubr.f32.mxu0 0.0
    %1192 = vmatmul.mubr.f32.gmra.mrb[0].mxu0 %v1078
    %v1193 = vpop.f32.mrb[0].mxu0
    %v1194 = vadd.f32 0.0, %v1193
    %v1195 = vpop.f32.mrb[0].mxu0
    %1196 = vmatprep.mubr.f32.mxu0 0.0
    %1197 = vmatmul.mubr.f32.gmra.mrb[0].mxu0 %v1081
    %v1198 = vpop.f32.mrb[0].mxu0
    %v1199 = vadd.f32 0.0, %v1198
    %v1200 = vpop.f32.mrb[0].mxu0
    %1201 = vmatprep.mubr.f32.mxu0 0.0
    %1202 = vmatmul.mubr.f32.gmra.mrb[0].mxu0 %v1084
    %v1203 = vpop.f32.mrb[0].mxu0
    %v1204 = vadd.f32 0.0, %v1203
    %v1205 = vpop.f32.mrb[0].mxu0
    %1206 = vmatprep.mubr.f32.mxu0 0.0
    %1207 = vmatmul.mubr.f32.gmra.mrb[0].mxu0 %v1087
    %v1208 = vpop.f32.mrb[0].mxu0
    %v1209 = vadd.f32 0.0, %v1208
    %v1210 = vpop.f32.mrb[0].mxu0
    %1211 = vmatprep.mubr.f32.mxu0 0.0
    %1212 = vmatmul.mubr.f32.gmra.mrb[0].mxu0 %v1090
    %v1213 = vpop.f32.mrb[0].mxu0
    %v1214 = vadd.f32 0.0, %v1213
    %v1215 = vpop.f32.mrb[0].mxu0
    %1216 = vmatprep.mubr.f32.mxu0 0.0
    %1217 = vmatmul.mubr.f32.gmra.mrb[0].mxu0 %v1093
    %v1218 = vpop.f32.mrb[0].mxu0
    %v1219 = vadd.f32 0.0, %v1218
    %v1220 = vpop.f32.mrb[0].mxu0
    %1221 = vmatprep.mubr.f32.mxu0 0.0
    %1222 = vmatmul.mubr.f32.gmra.mrb[0].mxu0 %v1096
    %v1223 = vpop.f32.mrb[0].mxu0
    %v1224 = vadd.f32 0.0, %v1223
    %v1225 = vpop.f32.mrb[0].mxu0
    %1226 = vmatprep.mubr.f32.mxu0 0.0
    %1227 = vmatmul.mubr.f32.gmra.mrb[0].mxu0 %v1099
    %v1228 = vpop.f32.mrb[0].mxu0
    %v1229 = vadd.f32 0.0, %v1228
    %v1230 = vpop.f32.mrb[0].mxu0
    %1231 = vmatprep.mubr.f32.mxu0 0.0
    %1232 = vmatmul.mubr.f32.gmra.mrb[0].mxu0 %v1102
    %v1233 = vpop.f32.mrb[0].mxu0
    %v1234 = vadd.f32 0.0, %v1233
    %v1235 = vpop.f32.mrb[0].mxu0
    %1236 = vmatprep.mubr.f32.mxu0 0.0
    %1237 = vmatmul.mubr.f32.gmra.mrb[0].mxu0 %v1105
    %v1238 = vpop.f32.mrb[0].mxu0
    %v1239 = vadd.f32 0.0, %v1238
    %v1240 = vpop.f32.mrb[0].mxu0
    %1241 = vmatprep.mubr.f32.mxu0 0.0
    %1242 = vmatmul.mubr.f32.gmra.mrb[0].mxu0 %v1108
    %v1243 = vpop.f32.mrb[0].mxu0
    %v1244 = vadd.f32 0.0, %v1243
    %v1245 = vpop.f32.mrb[0].mxu0
    %1246 = vmatprep.mubr.f32.mxu0 0.0
    %1247 = vmatmul.mubr.f32.gmra.mrb[0].mxu0 %v1111
    %v1248 = vpop.f32.mrb[0].mxu0
    %v1249 = vadd.f32 0.0, %v1248
    %v1250 = vpop.f32.mrb[0].mxu0
    %1251 = vmatprep.mubr.f32.mxu0 0.0
    %1252 = vmatmul.mubr.f32.gmra.mrb[0].mxu0 %v1114
    %v1253 = vpop.f32.mrb[0].mxu0
    %v1254 = vadd.f32 0.0, %v1253
    %v1255 = vpop.f32.mrb[0].mxu0
    %1256 = vmatprep.mubr.f32.mxu0 0.0
    %1257 = vmatmul.mubr.f32.gmra.mrb[0].mxu0 %v1117
    %v1258 = vpop.f32.mrb[0].mxu0
    %v1259 = vadd.f32 0.0, %v1258
    %v1260 = vpop.f32.mrb[0].mxu0
    %1261 = vmatprep.mubr.f32.mxu0 0.0
    %1262 = vmatmul.mubr.f32.gmra.mrb[0].mxu0 %v1120
    %v1263 = vpop.f32.mrb[0].mxu0
    %v1264 = vadd.f32 0.0, %v1263
    %v1265 = vpop.f32.mrb[0].mxu0
    %1266 = vdwg.mxu0
    %v1267 = vmul.f32 %v1189, %v70
    %v1268 = vmul.f32 %v1194, %v71
    %v1269 = vmul.f32 %v1199, %v72
    %v1270 = vmul.f32 %v1204, %v73
    %v1271 = vmul.f32 %v1209, %v74
    %v1272 = vmul.f32 %v1214, %v75
    %v1273 = vmul.f32 %v1219, %v76
    %v1274 = vmul.f32 %v1224, %v77
    %v1275 = vmul.f32 %v1229, %v78
    %v1276 = vmul.f32 %v1234, %v79
    %v1277 = vmul.f32 %v1239, %v80
    %v1278 = vmul.f32 %v1244, %v81
    %v1279 = vmul.f32 %v1249, %v82
    %v1280 = vmul.f32 %v1254, %v83
    %v1281 = vmul.f32 %v1259, %v84
    %v1282 = vmul.f32 %v1264, %v85
    %1283 = vmatprep.subr.mxu0 0.0
    %1284 = vmatpush1.msra.mxu0 %v1267
    %1285 = vmatprep.subr.mxu0 0.0
    %1286 = vmatpush1.msra.mxu0 %v1268
    %1287 = vmatprep.subr.mxu0 0.0
    %1288 = vmatpush1.msra.mxu0 %v1269
    %1289 = vmatprep.subr.mxu0 0.0
    %1290 = vmatpush1.msra.mxu0 %v1270
    %1291 = vmatprep.subr.mxu0 0.0
    %1292 = vmatpush1.msra.mxu0 %v1271
    %1293 = vmatprep.subr.mxu0 0.0
    %1294 = vmatpush1.msra.mxu0 %v1272
    %1295 = vmatprep.subr.mxu0 0.0
    %1296 = vmatpush1.msra.mxu0 %v1273
    %1297 = vmatprep.subr.mxu0 0.0
    %1298 = vmatpush1.msra.mxu0 %v1274
    %1299 = vmatprep.subr.mxu0 0.0
    %1300 = vmatpush1.msra.mxu0 %v1275
    %1301 = vmatprep.subr.mxu0 0.0
    %1302 = vmatpush1.msra.mxu0 %v1276
    %1303 = vmatprep.subr.mxu0 0.0
    %1304 = vmatpush1.msra.mxu0 %v1277
    %1305 = vmatprep.subr.mxu0 0.0
    %1306 = vmatpush1.msra.mxu0 %v1278
    %1307 = vmatprep.subr.mxu0 0.0
    %1308 = vmatpush1.msra.mxu0 %v1279
    %1309 = vmatprep.subr.mxu0 0.0
    %1310 = vmatpush1.msra.mxu0 %v1280
    %1311 = vmatprep.subr.mxu0 0.0
    %1312 = vmatpush1.msra.mxu0 %v1281
    %1313 = vmatprep.subr.mxu0 0.0
    %1314 = vmatpush1.msra.mxu0 %v1282
    %1315 = vmatprep.subr.mxu0 0.0
    %1316 = vmatpush1.msra.mxu0 0.0
    %1317 = vmatprep.subr.mxu0 0.0
    %1318 = vmatpush1.msra.mxu0 0.0
    %1319 = vmatprep.subr.mxu0 0.0
    %1320 = vmatpush1.msra.mxu0 0.0
    %1321 = vmatprep.subr.mxu0 0.0
    %1322 = vmatpush1.msra.mxu0 0.0
    %1323 = vmatprep.subr.mxu0 0.0
    %1324 = vmatpush1.msra.mxu0 0.0
    %1325 = vmatprep.subr.mxu0 0.0
    %1326 = vmatpush1.msra.mxu0 0.0
    %1327 = vmatprep.subr.mxu0 0.0
    %1328 = vmatpush1.msra.mxu0 0.0
    %1329 = vmatprep.subr.mxu0 0.0
    %1330 = vmatpush1.msra.mxu0 0.0
    %1331 = vmatprep.subr.mxu0 0.0
    %1332 = vmatpush1.msra.mxu0 0.0
    %1333 = vmatprep.subr.mxu0 0.0
    %1334 = vmatpush1.msra.mxu0 0.0
    %1335 = vmatprep.subr.mxu0 0.0
    %1336 = vmatpush1.msra.mxu0 0.0
    %1337 = vmatprep.subr.mxu0 0.0
    %1338 = vmatpush1.msra.mxu0 0.0
    %1339 = vmatprep.subr.mxu0 0.0
    %1340 = vmatpush1.msra.mxu0 0.0
    %1341 = vmatprep.subr.mxu0 0.0
    %1342 = vmatpush1.msra.mxu0 0.0
    %1343 = vmatprep.subr.mxu0 0.0
    %1344 = vmatpush1.msra.mxu0 0.0
    %1345 = vmatprep.subr.mxu0 0.0
    %1346 = vmatpush1.msra.mxu0 0.0
    %1347 = vmatprep.mubr.f32.mxu0 0.0
    %1348 = vmatmul.mubr.f32.gmra.mrb[0].mxu0 %v66
    %v1349 = vpop.f32.mrb[0].mxu0
    %v1350 = vadd.f32 0.0, %v1349
    %v1351 = vpop.f32.mrb[0].mxu0
    %1352 = vmatprep.mubr.f32.mxu0 0.0
    %1353 = vmatmul.mubr.f32.gmra.mrb[0].mxu0 %v67
    %v1354 = vpop.f32.mrb[0].mxu0
    %v1355 = vadd.f32 0.0, %v1354
    %v1356 = vpop.f32.mrb[0].mxu0
    %1357 = vmatprep.mubr.f32.mxu0 0.0
    %1358 = vmatmul.mubr.f32.gmra.mrb[0].mxu0 %v68
    %v1359 = vpop.f32.mrb[0].mxu0
    %v1360 = vadd.f32 0.0, %v1359
    %v1361 = vpop.f32.mrb[0].mxu0
    %1362 = vmatprep.mubr.f32.mxu0 0.0
    %1363 = vmatmul.mubr.f32.gmra.mrb[0].mxu0 %v69
    %v1364 = vpop.f32.mrb[0].mxu0
    %v1365 = vadd.f32 0.0, %v1364
    %v1366 = vpop.f32.mrb[0].mxu0
    %1367 = vdwg.mxu0
    %v1368 = vlaneseq
    %v1369 = vshrl.u32 %v1368, 7
    %v1370 = vsub.s32 3, %v1369
    %v1371 = vrot.slane %v118, %v1370
    %v1373 = vsel %vm151, %v1350, 0
    %v1376 = vsel %vm151, %v1355, 0
    %v1379 = vsel %vm151, %v1360, 0
    %v1382 = vsel %vm151, %v1365, 0
    %1384 = vmatprep.subr.mxu0 0.0
    %1385 = vmatpush1.msra.mxu0 %v131
    %1386 = vmatprep.subr.mxu0 0.0
    %1387 = vmatpush1.msra.mxu0 %v132
    %1388 = vmatprep.subr.mxu0 0.0
    %1389 = vmatpush1.msra.mxu0 %v133
    %1390 = vmatprep.subr.mxu0 0.0
    %1391 = vmatpush1.msra.mxu0 %v134
    %1392 = vmatprep.subr.mxu0 0.0
    %1393 = vmatpush1.msra.mxu0 0.0
    %1394 = vmatprep.subr.mxu0 0.0
    %1395 = vmatpush1.msra.mxu0 0.0
    %1396 = vmatprep.subr.mxu0 0.0
    %1397 = vmatpush1.msra.mxu0 0.0
    %1398 = vmatprep.subr.mxu0 0.0
    %1399 = vmatpush1.msra.mxu0 0.0
    %1400 = vmatprep.subr.mxu0 0.0
    %1401 = vmatpush1.msra.mxu0 0.0
    %1402 = vmatprep.subr.mxu0 0.0
    %1403 = vmatpush1.msra.mxu0 0.0
    %1404 = vmatprep.subr.mxu0 0.0
    %1405 = vmatpush1.msra.mxu0 0.0
    %1406 = vmatprep.subr.mxu0 0.0
    %1407 = vmatpush1.msra.mxu0 0.0
    %1408 = vmatprep.subr.mxu0 0.0
    %1409 = vmatpush1.msra.mxu0 0.0
    %1410 = vmatprep.subr.mxu0 0.0
    %1411 = vmatpush1.msra.mxu0 0.0
    %1412 = vmatprep.subr.mxu0 0.0
    %1413 = vmatpush1.msra.mxu0 0.0
    %1414 = vmatprep.subr.mxu0 0.0
    %1415 = vmatpush1.msra.mxu0 0.0
    %1416 = vmatprep.subr.mxu0 0.0
    %1417 = vmatpush1.msra.mxu0 0.0
    %1418 = vmatprep.subr.mxu0 0.0
    %1419 = vmatpush1.msra.mxu0 0.0
    %1420 = vmatprep.subr.mxu0 0.0
    %1421 = vmatpush1.msra.mxu0 0.0
    %1422 = vmatprep.subr.mxu0 0.0
    %1423 = vmatpush1.msra.mxu0 0.0
    %1424 = vmatprep.subr.mxu0 0.0
    %1425 = vmatpush1.msra.mxu0 0.0
    %1426 = vmatprep.subr.mxu0 0.0
    %1427 = vmatpush1.msra.mxu0 0.0
    %1428 = vmatprep.subr.mxu0 0.0
    %1429 = vmatpush1.msra.mxu0 0.0
    %1430 = vmatprep.subr.mxu0 0.0
    %1431 = vmatpush1.msra.mxu0 0.0
    %1432 = vmatprep.subr.mxu0 0.0
    %1433 = vmatpush1.msra.mxu0 0.0
    %1434 = vmatprep.subr.mxu0 0.0
    %1435 = vmatpush1.msra.mxu0 0.0
    %1436 = vmatprep.subr.mxu0 0.0
    %1437 = vmatpush1.msra.mxu0 0.0
    %1438 = vmatprep.subr.mxu0 0.0
    %1439 = vmatpush1.msra.mxu0 0.0
    %1440 = vmatprep.subr.mxu0 0.0
    %1441 = vmatpush1.msra.mxu0 0.0
    %1442 = vmatprep.subr.mxu0 0.0
    %1443 = vmatpush1.msra.mxu0 0.0
    %1444 = vmatprep.subr.mxu0 0.0
    %1445 = vmatpush1.msra.mxu0 0.0
    %1446 = vmatprep.subr.mxu0 0.0
    %1447 = vmatpush1.msra.mxu0 0.0
    %1448 = vmatprep.mubr.f32.mxu0 0.0
    %1449 = vmatmul.mubr.f32.gmra.mrb[0].mxu0 %v1373
    %v1450 = vpop.f32.mrb[0].mxu0
    %v1451 = vadd.f32 %v1371, %v1450
    %v1452 = vpop.f32.mrb[0].mxu0
    %1453 = vmatprep.mubr.f32.mxu0 0.0
    %1454 = vmatmul.mubr.f32.gmra.mrb[0].mxu0 %v1376
    %v1455 = vpop.f32.mrb[0].mxu0
    %v1456 = vadd.f32 %v1371, %v1455
    %v1457 = vpop.f32.mrb[0].mxu0
    %1458 = vmatprep.mubr.f32.mxu0 0.0
    %1459 = vmatmul.mubr.f32.gmra.mrb[0].mxu0 %v1379
    %v1460 = vpop.f32.mrb[0].mxu0
    %v1461 = vadd.f32 %v1371, %v1460
    %v1462 = vpop.f32.mrb[0].mxu0
    %1463 = vmatprep.mubr.f32.mxu0 0.0
    %1464 = vmatmul.mubr.f32.gmra.mrb[0].mxu0 %v1382
    %v1465 = vpop.f32.mrb[0].mxu0
    %v1466 = vadd.f32 %v1371, %v1465
    %v1467 = vpop.f32.mrb[0].mxu0
    %1468 = vdwg.mxu0
    %v1469 = vadd.f32 %v42, %v1451
    %v1470 = vadd.f32 %v43, %v1456
    %v1471 = vadd.f32 %v44, %v1461
    %v1472 = vadd.f32 %v45, %v1466
    %v1473 = vsel %vm151, %v1469, 0.0
    %1474 = vadd.xlane.f32.xlu0 %v1473
    %v1475 = vpop.xlane.xlu0 %1474
    %v1476 = vsel %vm151, %v1470, 0.0
    %1477 = vadd.xlane.f32.xlu0 %v1476
    %v1478 = vpop.xlane.xlu0 %1477
    %v1479 = vsel %vm151, %v1471, 0.0
    %1480 = vadd.xlane.f32.xlu0 %v1479
    %v1481 = vpop.xlane.xlu0 %1480
    %v1482 = vsel %vm151, %v1472, 0.0
    %1483 = vadd.xlane.f32.xlu0 %v1482
    %v1484 = vpop.xlane.xlu0 %1483
    %v1485 = vmul.f32 %v1475, %v164
    %v1486 = vmul.f32 %v1478, %v164
    %v1487 = vmul.f32 %v1481, %v164
    %v1488 = vmul.f32 %v1484, %v164
    %v1489 = vsub.f32 %v1469, %v1485
    %v1490 = vsub.f32 %v1470, %v1486
    %v1491 = vsub.f32 %v1471, %v1487
    %v1492 = vsub.f32 %v1472, %v1488
    %v1493 = vmul.f32 %v1489, %v1489
    %v1494 = vmul.f32 %v1490, %v1490
    %v1495 = vmul.f32 %v1491, %v1491
    %v1496 = vmul.f32 %v1492, %v1492
    %v1497 = vsel %vm151, %v1493, 0.0
    %1498 = vadd.xlane.f32.xlu0 %v1497
    %v1499 = vpop.xlane.xlu0 %1498
    %v1500 = vsel %vm151, %v1494, 0.0
    %1501 = vadd.xlane.f32.xlu0 %v1500
    %v1502 = vpop.xlane.xlu0 %1501
    %v1503 = vsel %vm151, %v1495, 0.0
    %1504 = vadd.xlane.f32.xlu0 %v1503
    %v1505 = vpop.xlane.xlu0 %1504
    %v1506 = vsel %vm151, %v1496, 0.0
    %1507 = vadd.xlane.f32.xlu0 %v1506
    %v1508 = vpop.xlane.xlu0 %1507
    %v1509 = vmul.f32 %v1499, %v164
    %v1510 = vmul.f32 %v1502, %v164
    %v1511 = vmul.f32 %v1505, %v164
    %v1512 = vmul.f32 %v1508, %v164
    %v1513 = vadd.f32 %v1509, 1e-05
    %v1514 = vadd.f32 %v1510, 1e-05
    %v1515 = vadd.f32 %v1511, 1e-05
    %v1516 = vadd.f32 %v1512, 1e-05
    %v1517 = vrsqrt.pop %v1513
    %v1518 = vrsqrt.pop %v1514
    %v1519 = vrsqrt.pop %v1515
    %v1520 = vrsqrt.pop %v1516
    %v1521 = vmul.f32 %v1489, %v1517
    %v1522 = vmul.f32 %v1490, %v1518
    %v1523 = vmul.f32 %v1491, %v1519
    %v1524 = vmul.f32 %v1492, %v1520
    %v1525 = vlaneseq
    %v1526 = vshrl.u32 %v1525, 7
    %v1527 = vsub.s32 4, %v1526
    %v1528 = vrot.slane %v118, %v1527
    %v1530 = vsel %vm151, %v1521, 0
    %v1533 = vsel %vm151, %v1522, 0
    %v1536 = vsel %vm151, %v1523, 0
    %v1539 = vsel %vm151, %v1524, 0
    %1541 = vmatprep.subr.mxu0 0.0
    %1542 = vmatpush1.msra.mxu0 %v135
    %1543 = vmatprep.subr.mxu0 0.0
    %1544 = vmatpush1.msra.mxu0 %v136
    %1545 = vmatprep.subr.mxu0 0.0
    %1546 = vmatpush1.msra.mxu0 %v137
    %1547 = vmatprep.subr.mxu0 0.0
    %1548 = vmatpush1.msra.mxu0 %v138
    %1549 = vmatprep.subr.mxu0 0.0
    %1550 = vmatpush1.msra.mxu0 0.0
    %1551 = vmatprep.subr.mxu0 0.0
    %1552 = vmatpush1.msra.mxu0 0.0
    %1553 = vmatprep.subr.mxu0 0.0
    %1554 = vmatpush1.msra.mxu0 0.0
    %1555 = vmatprep.subr.mxu0 0.0
    %1556 = vmatpush1.msra.mxu0 0.0
    %1557 = vmatprep.subr.mxu0 0.0
    %1558 = vmatpush1.msra.mxu0 0.0
    %1559 = vmatprep.subr.mxu0 0.0
    %1560 = vmatpush1.msra.mxu0 0.0
    %1561 = vmatprep.subr.mxu0 0.0
    %1562 = vmatpush1.msra.mxu0 0.0
    %1563 = vmatprep.subr.mxu0 0.0
    %1564 = vmatpush1.msra.mxu0 0.0
    %1565 = vmatprep.subr.mxu0 0.0
    %1566 = vmatpush1.msra.mxu0 0.0
    %1567 = vmatprep.subr.mxu0 0.0
    %1568 = vmatpush1.msra.mxu0 0.0
    %1569 = vmatprep.subr.mxu0 0.0
    %1570 = vmatpush1.msra.mxu0 0.0
    %1571 = vmatprep.subr.mxu0 0.0
    %1572 = vmatpush1.msra.mxu0 0.0
    %1573 = vmatprep.subr.mxu0 0.0
    %1574 = vmatpush1.msra.mxu0 0.0
    %1575 = vmatprep.subr.mxu0 0.0
    %1576 = vmatpush1.msra.mxu0 0.0
    %1577 = vmatprep.subr.mxu0 0.0
    %1578 = vmatpush1.msra.mxu0 0.0
    %1579 = vmatprep.subr.mxu0 0.0
    %1580 = vmatpush1.msra.mxu0 0.0
    %1581 = vmatprep.subr.mxu0 0.0
    %1582 = vmatpush1.msra.mxu0 0.0
    %1583 = vmatprep.subr.mxu0 0.0
    %1584 = vmatpush1.msra.mxu0 0.0
    %1585 = vmatprep.subr.mxu0 0.0
    %1586 = vmatpush1.msra.mxu0 0.0
    %1587 = vmatprep.subr.mxu0 0.0
    %1588 = vmatpush1.msra.mxu0 0.0
    %1589 = vmatprep.subr.mxu0 0.0
    %1590 = vmatpush1.msra.mxu0 0.0
    %1591 = vmatprep.subr.mxu0 0.0
    %1592 = vmatpush1.msra.mxu0 0.0
    %1593 = vmatprep.subr.mxu0 0.0
    %1594 = vmatpush1.msra.mxu0 0.0
    %1595 = vmatprep.subr.mxu0 0.0
    %1596 = vmatpush1.msra.mxu0 0.0
    %1597 = vmatprep.subr.mxu0 0.0
    %1598 = vmatpush1.msra.mxu0 0.0
    %1599 = vmatprep.subr.mxu0 0.0
    %1600 = vmatpush1.msra.mxu0 0.0
    %1601 = vmatprep.subr.mxu0 0.0
    %1602 = vmatpush1.msra.mxu0 0.0
    %1603 = vmatprep.subr.mxu0 0.0
    %1604 = vmatpush1.msra.mxu0 0.0
    %1605 = vmatprep.mubr.f32.mxu0 0.0
    %1606 = vmatmul.mubr.f32.gmra.mrb[0].mxu0 %v1530
    %v1607 = vpop.f32.mrb[0].mxu0
    %v1608 = vadd.f32 %v1528, %v1607
    %v1609 = vpop.f32.mrb[0].mxu0
    %1610 = vmatprep.mubr.f32.mxu0 0.0
    %1611 = vmatmul.mubr.f32.gmra.mrb[0].mxu0 %v1533
    %v1612 = vpop.f32.mrb[0].mxu0
    %v1613 = vadd.f32 %v1528, %v1612
    %v1614 = vpop.f32.mrb[0].mxu0
    %1615 = vmatprep.mubr.f32.mxu0 0.0
    %1616 = vmatmul.mubr.f32.gmra.mrb[0].mxu0 %v1536
    %v1617 = vpop.f32.mrb[0].mxu0
    %v1618 = vadd.f32 %v1528, %v1617
    %v1619 = vpop.f32.mrb[0].mxu0
    %1620 = vmatprep.mubr.f32.mxu0 0.0
    %1621 = vmatmul.mubr.f32.gmra.mrb[0].mxu0 %v1539
    %v1622 = vpop.f32.mrb[0].mxu0
    %v1623 = vadd.f32 %v1528, %v1622
    %v1624 = vpop.f32.mrb[0].mxu0
    %1625 = vdwg.mxu0
    %v1627 = vsel %vm151, %v46, 0
    %v1630 = vsel %vm151, %v47, 0
    %v1633 = vsel %vm151, %v48, 0
    %v1636 = vsel %vm151, %v49, 0
    %1638 = vmatprep.subr.mxu0 0.0
    %1639 = vmatpush1.msra.mxu0 %v139
    %1640 = vmatprep.subr.mxu0 0.0
    %1641 = vmatpush1.msra.mxu0 %v140
    %1642 = vmatprep.subr.mxu0 0.0
    %1643 = vmatpush1.msra.mxu0 %v141
    %1644 = vmatprep.subr.mxu0 0.0
    %1645 = vmatpush1.msra.mxu0 %v142
    %1646 = vmatprep.subr.mxu0 0.0
    %1647 = vmatpush1.msra.mxu0 0.0
    %1648 = vmatprep.subr.mxu0 0.0
    %1649 = vmatpush1.msra.mxu0 0.0
    %1650 = vmatprep.subr.mxu0 0.0
    %1651 = vmatpush1.msra.mxu0 0.0
    %1652 = vmatprep.subr.mxu0 0.0
    %1653 = vmatpush1.msra.mxu0 0.0
    %1654 = vmatprep.subr.mxu0 0.0
    %1655 = vmatpush1.msra.mxu0 0.0
    %1656 = vmatprep.subr.mxu0 0.0
    %1657 = vmatpush1.msra.mxu0 0.0
    %1658 = vmatprep.subr.mxu0 0.0
    %1659 = vmatpush1.msra.mxu0 0.0
    %1660 = vmatprep.subr.mxu0 0.0
    %1661 = vmatpush1.msra.mxu0 0.0
    %1662 = vmatprep.subr.mxu0 0.0
    %1663 = vmatpush1.msra.mxu0 0.0
    %1664 = vmatprep.subr.mxu0 0.0
    %1665 = vmatpush1.msra.mxu0 0.0
    %1666 = vmatprep.subr.mxu0 0.0
    %1667 = vmatpush1.msra.mxu0 0.0
    %1668 = vmatprep.subr.mxu0 0.0
    %1669 = vmatpush1.msra.mxu0 0.0
    %1670 = vmatprep.subr.mxu0 0.0
    %1671 = vmatpush1.msra.mxu0 0.0
    %1672 = vmatprep.subr.mxu0 0.0
    %1673 = vmatpush1.msra.mxu0 0.0
    %1674 = vmatprep.subr.mxu0 0.0
    %1675 = vmatpush1.msra.mxu0 0.0
    %1676 = vmatprep.subr.mxu0 0.0
    %1677 = vmatpush1.msra.mxu0 0.0
    %1678 = vmatprep.subr.mxu0 0.0
    %1679 = vmatpush1.msra.mxu0 0.0
    %1680 = vmatprep.subr.mxu0 0.0
    %1681 = vmatpush1.msra.mxu0 0.0
    %1682 = vmatprep.subr.mxu0 0.0
    %1683 = vmatpush1.msra.mxu0 0.0
    %1684 = vmatprep.subr.mxu0 0.0
    %1685 = vmatpush1.msra.mxu0 0.0
    %1686 = vmatprep.subr.mxu0 0.0
    %1687 = vmatpush1.msra.mxu0 0.0
    %1688 = vmatprep.subr.mxu0 0.0
    %1689 = vmatpush1.msra.mxu0 0.0
    %1690 = vmatprep.subr.mxu0 0.0
    %1691 = vmatpush1.msra.mxu0 0.0
    %1692 = vmatprep.subr.mxu0 0.0
    %1693 = vmatpush1.msra.mxu0 0.0
    %1694 = vmatprep.subr.mxu0 0.0
    %1695 = vmatpush1.msra.mxu0 0.0
    %1696 = vmatprep.subr.mxu0 0.0
    %1697 = vmatpush1.msra.mxu0 0.0
    %1698 = vmatprep.subr.mxu0 0.0
    %1699 = vmatpush1.msra.mxu0 0.0
    %1700 = vmatprep.subr.mxu0 0.0
    %1701 = vmatpush1.msra.mxu0 0.0
    %1702 = vmatprep.mubr.f32.mxu0 0.0
    %1703 = vmatmul.mubr.f32.gmra.mrb[0].mxu0 %v1627
    %v1704 = vpop.f32.mrb[0].mxu0
    %v1705 = vadd.f32 0.0, %v1704
    %v1706 = vpop.f32.mrb[0].mxu0
    %1707 = vmatprep.mubr.f32.mxu0 0.0
    %1708 = vmatmul.mubr.f32.gmra.mrb[0].mxu0 %v1630
    %v1709 = vpop.f32.mrb[0].mxu0
    %v1710 = vadd.f32 0.0, %v1709
    %v1711 = vpop.f32.mrb[0].mxu0
    %1712 = vmatprep.mubr.f32.mxu0 0.0
    %1713 = vmatmul.mubr.f32.gmra.mrb[0].mxu0 %v1633
    %v1714 = vpop.f32.mrb[0].mxu0
    %v1715 = vadd.f32 0.0, %v1714
    %v1716 = vpop.f32.mrb[0].mxu0
    %1717 = vmatprep.mubr.f32.mxu0 0.0
    %1718 = vmatmul.mubr.f32.gmra.mrb[0].mxu0 %v1636
    %v1719 = vpop.f32.mrb[0].mxu0
    %v1720 = vadd.f32 0.0, %v1719
    %v1721 = vpop.f32.mrb[0].mxu0
    %1722 = vdwg.mxu0
    %1723 = vmatprep.subr.mxu0 0.0
    %1724 = vmatpush1.msra.mxu0 %v143
    %1725 = vmatprep.subr.mxu0 0.0
    %1726 = vmatpush1.msra.mxu0 %v144
    %1727 = vmatprep.subr.mxu0 0.0
    %1728 = vmatpush1.msra.mxu0 %v145
    %1729 = vmatprep.subr.mxu0 0.0
    %1730 = vmatpush1.msra.mxu0 %v146
    %1731 = vmatprep.subr.mxu0 0.0
    %1732 = vmatpush1.msra.mxu0 0.0
    %1733 = vmatprep.subr.mxu0 0.0
    %1734 = vmatpush1.msra.mxu0 0.0
    %1735 = vmatprep.subr.mxu0 0.0
    %1736 = vmatpush1.msra.mxu0 0.0
    %1737 = vmatprep.subr.mxu0 0.0
    %1738 = vmatpush1.msra.mxu0 0.0
    %1739 = vmatprep.subr.mxu0 0.0
    %1740 = vmatpush1.msra.mxu0 0.0
    %1741 = vmatprep.subr.mxu0 0.0
    %1742 = vmatpush1.msra.mxu0 0.0
    %1743 = vmatprep.subr.mxu0 0.0
    %1744 = vmatpush1.msra.mxu0 0.0
    %1745 = vmatprep.subr.mxu0 0.0
    %1746 = vmatpush1.msra.mxu0 0.0
    %1747 = vmatprep.subr.mxu0 0.0
    %1748 = vmatpush1.msra.mxu0 0.0
    %1749 = vmatprep.subr.mxu0 0.0
    %1750 = vmatpush1.msra.mxu0 0.0
    %1751 = vmatprep.subr.mxu0 0.0
    %1752 = vmatpush1.msra.mxu0 0.0
    %1753 = vmatprep.subr.mxu0 0.0
    %1754 = vmatpush1.msra.mxu0 0.0
    %1755 = vmatprep.subr.mxu0 0.0
    %1756 = vmatpush1.msra.mxu0 0.0
    %1757 = vmatprep.subr.mxu0 0.0
    %1758 = vmatpush1.msra.mxu0 0.0
    %1759 = vmatprep.subr.mxu0 0.0
    %1760 = vmatpush1.msra.mxu0 0.0
    %1761 = vmatprep.subr.mxu0 0.0
    %1762 = vmatpush1.msra.mxu0 0.0
    %1763 = vmatprep.subr.mxu0 0.0
    %1764 = vmatpush1.msra.mxu0 0.0
    %1765 = vmatprep.subr.mxu0 0.0
    %1766 = vmatpush1.msra.mxu0 0.0
    %1767 = vmatprep.subr.mxu0 0.0
    %1768 = vmatpush1.msra.mxu0 0.0
    %1769 = vmatprep.subr.mxu0 0.0
    %1770 = vmatpush1.msra.mxu0 0.0
    %1771 = vmatprep.subr.mxu0 0.0
    %1772 = vmatpush1.msra.mxu0 0.0
    %1773 = vmatprep.subr.mxu0 0.0
    %1774 = vmatpush1.msra.mxu0 0.0
    %1775 = vmatprep.subr.mxu0 0.0
    %1776 = vmatpush1.msra.mxu0 0.0
    %1777 = vmatprep.subr.mxu0 0.0
    %1778 = vmatpush1.msra.mxu0 0.0
    %1779 = vmatprep.subr.mxu0 0.0
    %1780 = vmatpush1.msra.mxu0 0.0
    %1781 = vmatprep.subr.mxu0 0.0
    %1782 = vmatpush1.msra.mxu0 0.0
    %1783 = vmatprep.subr.mxu0 0.0
    %1784 = vmatpush1.msra.mxu0 0.0
    %1785 = vmatprep.subr.mxu0 0.0
    %1786 = vmatpush1.msra.mxu0 0.0
    %1787 = vmatprep.mubr.f32.mxu0 0.0
    %1788 = vmatmul.mubr.f32.gmra.mrb[0].mxu0 %v1627
    %v1789 = vpop.f32.mrb[0].mxu0
    %v1790 = vadd.f32 0.0, %v1789
    %v1791 = vpop.f32.mrb[0].mxu0
    %1792 = vmatprep.mubr.f32.mxu0 0.0
    %1793 = vmatmul.mubr.f32.gmra.mrb[0].mxu0 %v1630
    %v1794 = vpop.f32.mrb[0].mxu0
    %v1795 = vadd.f32 0.0, %v1794
    %v1796 = vpop.f32.mrb[0].mxu0
    %1797 = vmatprep.mubr.f32.mxu0 0.0
    %1798 = vmatmul.mubr.f32.gmra.mrb[0].mxu0 %v1633
    %v1799 = vpop.f32.mrb[0].mxu0
    %v1800 = vadd.f32 0.0, %v1799
    %v1801 = vpop.f32.mrb[0].mxu0
    %1802 = vmatprep.mubr.f32.mxu0 0.0
    %1803 = vmatmul.mubr.f32.gmra.mrb[0].mxu0 %v1636
    %v1804 = vpop.f32.mrb[0].mxu0
    %v1805 = vadd.f32 0.0, %v1804
    %v1806 = vpop.f32.mrb[0].mxu0
    %1807 = vdwg.mxu0
    %1808 = vmatprep.subr.mxu0 0.0
    %1809 = vmatpush1.msra.mxu0 %v1608
    %1810 = vmatprep.subr.mxu0 0.0
    %1811 = vmatpush1.msra.mxu0 %v1613
    %1812 = vmatprep.subr.mxu0 0.0
    %1813 = vmatpush1.msra.mxu0 %v1618
    %1814 = vmatprep.subr.mxu0 0.0
    %1815 = vmatpush1.msra.mxu0 %v1623
    %1816 = vmatprep.subr.mxu0 0.0
    %1817 = vmatpush1.msra.mxu0 0.0
    %1818 = vmatprep.subr.mxu0 0.0
    %1819 = vmatpush1.msra.mxu0 0.0
    %1820 = vmatprep.subr.mxu0 0.0
    %1821 = vmatpush1.msra.mxu0 0.0
    %1822 = vmatprep.subr.mxu0 0.0
    %1823 = vmatpush1.msra.mxu0 0.0
    %1824 = vmatprep.subr.mxu0 0.0
    %1825 = vmatpush1.msra.mxu0 0.0
    %1826 = vmatprep.subr.mxu0 0.0
    %1827 = vmatpush1.msra.mxu0 0.0
    %1828 = vmatprep.subr.mxu0 0.0
    %1829 = vmatpush1.msra.mxu0 0.0
    %1830 = vmatprep.subr.mxu0 0.0
    %1831 = vmatpush1.msra.mxu0 0.0
    %1832 = vmatprep.subr.mxu0 0.0
    %1833 = vmatpush1.msra.mxu0 0.0
    %1834 = vmatprep.subr.mxu0 0.0
    %1835 = vmatpush1.msra.mxu0 0.0
    %1836 = vmatprep.subr.mxu0 0.0
    %1837 = vmatpush1.msra.mxu0 0.0
    %1838 = vmatprep.subr.mxu0 0.0
    %1839 = vmatpush1.msra.mxu0 0.0
    %1840 = vmatprep.subr.mxu0 0.0
    %1841 = vmatpush1.msra.mxu0 0.0
    %1842 = vmatprep.subr.mxu0 0.0
    %1843 = vmatpush1.msra.mxu0 0.0
    %1844 = vmatprep.subr.mxu0 0.0
    %1845 = vmatpush1.msra.mxu0 0.0
    %1846 = vmatprep.subr.mxu0 0.0
    %1847 = vmatpush1.msra.mxu0 0.0
    %1848 = vmatprep.subr.mxu0 0.0
    %1849 = vmatpush1.msra.mxu0 0.0
    %1850 = vmatprep.subr.mxu0 0.0
    %1851 = vmatpush1.msra.mxu0 0.0
    %1852 = vmatprep.subr.mxu0 0.0
    %1853 = vmatpush1.msra.mxu0 0.0
    %1854 = vmatprep.subr.mxu0 0.0
    %1855 = vmatpush1.msra.mxu0 0.0
    %1856 = vmatprep.subr.mxu0 0.0
    %1857 = vmatpush1.msra.mxu0 0.0
    %1858 = vmatprep.subr.mxu0 0.0
    %1859 = vmatpush1.msra.mxu0 0.0
    %1860 = vmatprep.subr.mxu0 0.0
    %1861 = vmatpush1.msra.mxu0 0.0
    %1862 = vmatprep.subr.mxu0 0.0
    %1863 = vmatpush1.msra.mxu0 0.0
    %1864 = vmatprep.subr.mxu0 0.0
    %1865 = vmatpush1.msra.mxu0 0.0
    %1866 = vmatprep.subr.mxu0 0.0
    %1867 = vmatpush1.msra.mxu0 0.0
    %1868 = vmatprep.subr.mxu0 0.0
    %1869 = vmatpush1.msra.mxu0 0.0
    %1870 = vmatprep.subr.mxu0 0.0
    %1871 = vmatpush1.msra.mxu0 0.0
    %1872 = vmatprep.mubr.f32.mxu0 0.0
    %1873 = vmatmul.mubr.f32.gmra.mrb[0].mxu0 %v485
    %v1874 = vpop.f32.mrb[0].mxu0
    %v1875 = vadd.f32 0.0, %v1874
    %v1876 = vpop.f32.mrb[0].mxu0
    %1877 = vmatprep.mubr.f32.mxu0 0.0
    %1878 = vmatmul.mubr.f32.gmra.mrb[0].mxu0 %v488
    %v1879 = vpop.f32.mrb[0].mxu0
    %v1880 = vadd.f32 0.0, %v1879
    %v1881 = vpop.f32.mrb[0].mxu0
    %1882 = vmatprep.mubr.f32.mxu0 0.0
    %1883 = vmatmul.mubr.f32.gmra.mrb[0].mxu0 %v491
    %v1884 = vpop.f32.mrb[0].mxu0
    %v1885 = vadd.f32 0.0, %v1884
    %v1886 = vpop.f32.mrb[0].mxu0
    %1887 = vmatprep.mubr.f32.mxu0 0.0
    %1888 = vmatmul.mubr.f32.gmra.mrb[0].mxu0 %v494
    %v1889 = vpop.f32.mrb[0].mxu0
    %v1890 = vadd.f32 0.0, %v1889
    %v1891 = vpop.f32.mrb[0].mxu0
    %1892 = vmatprep.mubr.f32.mxu0 0.0
    %1893 = vmatmul.mubr.f32.gmra.mrb[0].mxu0 %v497
    %v1894 = vpop.f32.mrb[0].mxu0
    %v1895 = vadd.f32 0.0, %v1894
    %v1896 = vpop.f32.mrb[0].mxu0
    %1897 = vmatprep.mubr.f32.mxu0 0.0
    %1898 = vmatmul.mubr.f32.gmra.mrb[0].mxu0 %v500
    %v1899 = vpop.f32.mrb[0].mxu0
    %v1900 = vadd.f32 0.0, %v1899
    %v1901 = vpop.f32.mrb[0].mxu0
    %1902 = vmatprep.mubr.f32.mxu0 0.0
    %1903 = vmatmul.mubr.f32.gmra.mrb[0].mxu0 %v503
    %v1904 = vpop.f32.mrb[0].mxu0
    %v1905 = vadd.f32 0.0, %v1904
    %v1906 = vpop.f32.mrb[0].mxu0
    %1907 = vmatprep.mubr.f32.mxu0 0.0
    %1908 = vmatmul.mubr.f32.gmra.mrb[0].mxu0 %v506
    %v1909 = vpop.f32.mrb[0].mxu0
    %v1910 = vadd.f32 0.0, %v1909
    %v1911 = vpop.f32.mrb[0].mxu0
    %1912 = vmatprep.mubr.f32.mxu0 0.0
    %1913 = vmatmul.mubr.f32.gmra.mrb[0].mxu0 %v509
    %v1914 = vpop.f32.mrb[0].mxu0
    %v1915 = vadd.f32 0.0, %v1914
    %v1916 = vpop.f32.mrb[0].mxu0
    %1917 = vmatprep.mubr.f32.mxu0 0.0
    %1918 = vmatmul.mubr.f32.gmra.mrb[0].mxu0 %v512
    %v1919 = vpop.f32.mrb[0].mxu0
    %v1920 = vadd.f32 0.0, %v1919
    %v1921 = vpop.f32.mrb[0].mxu0
    %1922 = vmatprep.mubr.f32.mxu0 0.0
    %1923 = vmatmul.mubr.f32.gmra.mrb[0].mxu0 %v515
    %v1924 = vpop.f32.mrb[0].mxu0
    %v1925 = vadd.f32 0.0, %v1924
    %v1926 = vpop.f32.mrb[0].mxu0
    %1927 = vmatprep.mubr.f32.mxu0 0.0
    %1928 = vmatmul.mubr.f32.gmra.mrb[0].mxu0 %v518
    %v1929 = vpop.f32.mrb[0].mxu0
    %v1930 = vadd.f32 0.0, %v1929
    %v1931 = vpop.f32.mrb[0].mxu0
    %1932 = vmatprep.mubr.f32.mxu0 0.0
    %1933 = vmatmul.mubr.f32.gmra.mrb[0].mxu0 %v521
    %v1934 = vpop.f32.mrb[0].mxu0
    %v1935 = vadd.f32 0.0, %v1934
    %v1936 = vpop.f32.mrb[0].mxu0
    %1937 = vmatprep.mubr.f32.mxu0 0.0
    %1938 = vmatmul.mubr.f32.gmra.mrb[0].mxu0 %v524
    %v1939 = vpop.f32.mrb[0].mxu0
    %v1940 = vadd.f32 0.0, %v1939
    %v1941 = vpop.f32.mrb[0].mxu0
    %1942 = vmatprep.mubr.f32.mxu0 0.0
    %1943 = vmatmul.mubr.f32.gmra.mrb[0].mxu0 %v527
    %v1944 = vpop.f32.mrb[0].mxu0
    %v1945 = vadd.f32 0.0, %v1944
    %v1946 = vpop.f32.mrb[0].mxu0
    %1947 = vmatprep.mubr.f32.mxu0 0.0
    %1948 = vmatmul.mubr.f32.gmra.mrb[0].mxu0 %v530
    %v1949 = vpop.f32.mrb[0].mxu0
    %v1950 = vadd.f32 0.0, %v1949
    %v1951 = vpop.f32.mrb[0].mxu0
    %1952 = vdwg.mxu0
    %v1953 = vmul.f32 %v1875, %v70
    %v1954 = vmul.f32 %v1880, %v71
    %v1955 = vmul.f32 %v1885, %v72
    %v1956 = vmul.f32 %v1890, %v73
    %v1957 = vmul.f32 %v1895, %v74
    %v1958 = vmul.f32 %v1900, %v75
    %v1959 = vmul.f32 %v1905, %v76
    %v1960 = vmul.f32 %v1910, %v77
    %v1961 = vmul.f32 %v1915, %v78
    %v1962 = vmul.f32 %v1920, %v79
    %v1963 = vmul.f32 %v1925, %v80
    %v1964 = vmul.f32 %v1930, %v81
    %v1965 = vmul.f32 %v1935, %v82
    %v1966 = vmul.f32 %v1940, %v83
    %v1967 = vmul.f32 %v1945, %v84
    %v1968 = vmul.f32 %v1950, %v85
    %v1970 = vsel %vm151, %v1953, 0
    %v1973 = vsel %vm151, %v1954, 0
    %v1976 = vsel %vm151, %v1955, 0
    %v1979 = vsel %vm151, %v1956, 0
    %v1982 = vsel %vm151, %v1957, 0
    %v1985 = vsel %vm151, %v1958, 0
    %v1988 = vsel %vm151, %v1959, 0
    %v1991 = vsel %vm151, %v1960, 0
    %v1994 = vsel %vm151, %v1961, 0
    %v1997 = vsel %vm151, %v1962, 0
    %v2000 = vsel %vm151, %v1963, 0
    %v2003 = vsel %vm151, %v1964, 0
    %v2006 = vsel %vm151, %v1965, 0
    %v2009 = vsel %vm151, %v1966, 0
    %v2012 = vsel %vm151, %v1967, 0
    %v2015 = vsel %vm151, %v1968, 0
    %v2018 = vsel %vm151, %v1705, 0
    %v2021 = vsel %vm151, %v1710, 0
    %v2024 = vsel %vm151, %v1715, 0
    %v2027 = vsel %vm151, %v1720, 0
    %2029 = vmatprep.subr.mxu0 0.0
    %2030 = vmatpush1.xpose.msra.mxu0 %v2018
    %2031 = vmatprep.subr.mxu0 0.0
    %2032 = vmatpush1.xpose.msra.mxu0 %v2021
    %2033 = vmatprep.subr.mxu0 0.0
    %2034 = vmatpush1.xpose.msra.mxu0 %v2024
    %2035 = vmatprep.subr.mxu0 0.0
    %2036 = vmatpush1.xpose.msra.mxu0 %v2027
    %2037 = vmatprep.subr.mxu0 0.0
    %2038 = vmatpush1.xpose.msra.mxu0 0.0
    %2039 = vmatprep.subr.mxu0 0.0
    %2040 = vmatpush1.xpose.msra.mxu0 0.0
    %2041 = vmatprep.subr.mxu0 0.0
    %2042 = vmatpush1.xpose.msra.mxu0 0.0
    %2043 = vmatprep.subr.mxu0 0.0
    %2044 = vmatpush1.xpose.msra.mxu0 0.0
    %2045 = vmatprep.subr.mxu0 0.0
    %2046 = vmatpush1.xpose.msra.mxu0 0.0
    %2047 = vmatprep.subr.mxu0 0.0
    %2048 = vmatpush1.xpose.msra.mxu0 0.0
    %2049 = vmatprep.subr.mxu0 0.0
    %2050 = vmatpush1.xpose.msra.mxu0 0.0
    %2051 = vmatprep.subr.mxu0 0.0
    %2052 = vmatpush1.xpose.msra.mxu0 0.0
    %2053 = vmatprep.subr.mxu0 0.0
    %2054 = vmatpush1.xpose.msra.mxu0 0.0
    %2055 = vmatprep.subr.mxu0 0.0
    %2056 = vmatpush1.xpose.msra.mxu0 0.0
    %2057 = vmatprep.subr.mxu0 0.0
    %2058 = vmatpush1.xpose.msra.mxu0 0.0
    %2059 = vmatprep.subr.mxu0 0.0
    %2060 = vmatpush1.xpose.msra.mxu0 0.0
    %2061 = vmatprep.subr.mxu0 0.0
    %2062 = vmatpush1.xpose.msra.mxu0 0.0
    %2063 = vmatprep.subr.mxu0 0.0
    %2064 = vmatpush1.xpose.msra.mxu0 0.0
    %2065 = vmatprep.subr.mxu0 0.0
    %2066 = vmatpush1.xpose.msra.mxu0 0.0
    %2067 = vmatprep.subr.mxu0 0.0
    %2068 = vmatpush1.xpose.msra.mxu0 0.0
    %2069 = vmatprep.subr.mxu0 0.0
    %2070 = vmatpush1.xpose.msra.mxu0 0.0
    %2071 = vmatprep.subr.mxu0 0.0
    %2072 = vmatpush1.xpose.msra.mxu0 0.0
    %2073 = vmatprep.subr.mxu0 0.0
    %2074 = vmatpush1.xpose.msra.mxu0 0.0
    %2075 = vmatprep.subr.mxu0 0.0
    %2076 = vmatpush1.xpose.msra.mxu0 0.0
    %2077 = vmatprep.subr.mxu0 0.0
    %2078 = vmatpush1.xpose.msra.mxu0 0.0
    %2079 = vmatprep.subr.mxu0 0.0
    %2080 = vmatpush1.xpose.msra.mxu0 0.0
    %2081 = vmatprep.subr.mxu0 0.0
    %2082 = vmatpush1.xpose.msra.mxu0 0.0
    %2083 = vmatprep.subr.mxu0 0.0
    %2084 = vmatpush1.xpose.msra.mxu0 0.0
    %2085 = vmatprep.subr.mxu0 0.0
    %2086 = vmatpush1.xpose.msra.mxu0 0.0
    %2087 = vmatprep.subr.mxu0 0.0
    %2088 = vmatpush1.xpose.msra.mxu0 0.0
    %2089 = vmatprep.subr.mxu0 0.0
    %2090 = vmatpush1.xpose.msra.mxu0 0.0
    %2091 = vmatprep.subr.mxu0 0.0
    %2092 = vmatpush1.xpose.msra.mxu0 0.0
    %2093 = vmatprep.mubr.f32.mxu0 0.0
    %2094 = vmatmul.mubr.f32.gmra.mrb[0].mxu0 %v1970
    %v2095 = vpop.f32.mrb[0].mxu0
    %v2096 = vadd.f32 %v102, %v2095
    %v2097 = vpop.f32.mrb[0].mxu0
    %2098 = vmatprep.mubr.f32.mxu0 0.0
    %2099 = vmatmul.mubr.f32.gmra.mrb[0].mxu0 %v1973
    %v2100 = vpop.f32.mrb[0].mxu0
    %v2101 = vadd.f32 %v103, %v2100
    %v2102 = vpop.f32.mrb[0].mxu0
    %2103 = vmatprep.mubr.f32.mxu0 0.0
    %2104 = vmatmul.mubr.f32.gmra.mrb[0].mxu0 %v1976
    %v2105 = vpop.f32.mrb[0].mxu0
    %v2106 = vadd.f32 %v104, %v2105
    %v2107 = vpop.f32.mrb[0].mxu0
    %2108 = vmatprep.mubr.f32.mxu0 0.0
    %2109 = vmatmul.mubr.f32.gmra.mrb[0].mxu0 %v1979
    %v2110 = vpop.f32.mrb[0].mxu0
    %v2111 = vadd.f32 %v105, %v2110
    %v2112 = vpop.f32.mrb[0].mxu0
    %2113 = vmatprep.mubr.f32.mxu0 0.0
    %2114 = vmatmul.mubr.f32.gmra.mrb[0].mxu0 %v1982
    %v2115 = vpop.f32.mrb[0].mxu0
    %v2116 = vadd.f32 %v106, %v2115
    %v2117 = vpop.f32.mrb[0].mxu0
    %2118 = vmatprep.mubr.f32.mxu0 0.0
    %2119 = vmatmul.mubr.f32.gmra.mrb[0].mxu0 %v1985
    %v2120 = vpop.f32.mrb[0].mxu0
    %v2121 = vadd.f32 %v107, %v2120
    %v2122 = vpop.f32.mrb[0].mxu0
    %2123 = vmatprep.mubr.f32.mxu0 0.0
    %2124 = vmatmul.mubr.f32.gmra.mrb[0].mxu0 %v1988
    %v2125 = vpop.f32.mrb[0].mxu0
    %v2126 = vadd.f32 %v108, %v2125
    %v2127 = vpop.f32.mrb[0].mxu0
    %2128 = vmatprep.mubr.f32.mxu0 0.0
    %2129 = vmatmul.mubr.f32.gmra.mrb[0].mxu0 %v1991
    %v2130 = vpop.f32.mrb[0].mxu0
    %v2131 = vadd.f32 %v109, %v2130
    %v2132 = vpop.f32.mrb[0].mxu0
    %2133 = vmatprep.mubr.f32.mxu0 0.0
    %2134 = vmatmul.mubr.f32.gmra.mrb[0].mxu0 %v1994
    %v2135 = vpop.f32.mrb[0].mxu0
    %v2136 = vadd.f32 %v110, %v2135
    %v2137 = vpop.f32.mrb[0].mxu0
    %2138 = vmatprep.mubr.f32.mxu0 0.0
    %2139 = vmatmul.mubr.f32.gmra.mrb[0].mxu0 %v1997
    %v2140 = vpop.f32.mrb[0].mxu0
    %v2141 = vadd.f32 %v111, %v2140
    %v2142 = vpop.f32.mrb[0].mxu0
    %2143 = vmatprep.mubr.f32.mxu0 0.0
    %2144 = vmatmul.mubr.f32.gmra.mrb[0].mxu0 %v2000
    %v2145 = vpop.f32.mrb[0].mxu0
    %v2146 = vadd.f32 %v112, %v2145
    %v2147 = vpop.f32.mrb[0].mxu0
    %2148 = vmatprep.mubr.f32.mxu0 0.0
    %2149 = vmatmul.mubr.f32.gmra.mrb[0].mxu0 %v2003
    %v2150 = vpop.f32.mrb[0].mxu0
    %v2151 = vadd.f32 %v113, %v2150
    %v2152 = vpop.f32.mrb[0].mxu0
    %2153 = vmatprep.mubr.f32.mxu0 0.0
    %2154 = vmatmul.mubr.f32.gmra.mrb[0].mxu0 %v2006
    %v2155 = vpop.f32.mrb[0].mxu0
    %v2156 = vadd.f32 %v114, %v2155
    %v2157 = vpop.f32.mrb[0].mxu0
    %2158 = vmatprep.mubr.f32.mxu0 0.0
    %2159 = vmatmul.mubr.f32.gmra.mrb[0].mxu0 %v2009
    %v2160 = vpop.f32.mrb[0].mxu0
    %v2161 = vadd.f32 %v115, %v2160
    %v2162 = vpop.f32.mrb[0].mxu0
    %2163 = vmatprep.mubr.f32.mxu0 0.0
    %2164 = vmatmul.mubr.f32.gmra.mrb[0].mxu0 %v2012
    %v2165 = vpop.f32.mrb[0].mxu0
    %v2166 = vadd.f32 %v116, %v2165
    %v2167 = vpop.f32.mrb[0].mxu0
    %2168 = vmatprep.mubr.f32.mxu0 0.0
    %2169 = vmatmul.mubr.f32.gmra.mrb[0].mxu0 %v2015
    %v2170 = vpop.f32.mrb[0].mxu0
    %v2171 = vadd.f32 %v117, %v2170
    %v2172 = vpop.f32.mrb[0].mxu0
    %2173 = vdwg.mxu0
    %v2174 = vsel %vm151, %v2096, -inf
    %2175 = vmax.xlane.f32.xlu0 %v2174
    %v2176 = vpop.xlane.xlu0 %2175
    %v2177 = vsel %vm151, %v2101, -inf
    %2178 = vmax.xlane.f32.xlu0 %v2177
    %v2179 = vpop.xlane.xlu0 %2178
    %v2180 = vsel %vm151, %v2106, -inf
    %2181 = vmax.xlane.f32.xlu0 %v2180
    %v2182 = vpop.xlane.xlu0 %2181
    %v2183 = vsel %vm151, %v2111, -inf
    %2184 = vmax.xlane.f32.xlu0 %v2183
    %v2185 = vpop.xlane.xlu0 %2184
    %v2186 = vsel %vm151, %v2116, -inf
    %2187 = vmax.xlane.f32.xlu0 %v2186
    %v2188 = vpop.xlane.xlu0 %2187
    %v2189 = vsel %vm151, %v2121, -inf
    %2190 = vmax.xlane.f32.xlu0 %v2189
    %v2191 = vpop.xlane.xlu0 %2190
    %v2192 = vsel %vm151, %v2126, -inf
    %2193 = vmax.xlane.f32.xlu0 %v2192
    %v2194 = vpop.xlane.xlu0 %2193
    %v2195 = vsel %vm151, %v2131, -inf
    %2196 = vmax.xlane.f32.xlu0 %v2195
    %v2197 = vpop.xlane.xlu0 %2196
    %v2198 = vsel %vm151, %v2136, -inf
    %2199 = vmax.xlane.f32.xlu0 %v2198
    %v2200 = vpop.xlane.xlu0 %2199
    %v2201 = vsel %vm151, %v2141, -inf
    %2202 = vmax.xlane.f32.xlu0 %v2201
    %v2203 = vpop.xlane.xlu0 %2202
    %v2204 = vsel %vm151, %v2146, -inf
    %2205 = vmax.xlane.f32.xlu0 %v2204
    %v2206 = vpop.xlane.xlu0 %2205
    %v2207 = vsel %vm151, %v2151, -inf
    %2208 = vmax.xlane.f32.xlu0 %v2207
    %v2209 = vpop.xlane.xlu0 %2208
    %v2210 = vsel %vm151, %v2156, -inf
    %2211 = vmax.xlane.f32.xlu0 %v2210
    %v2212 = vpop.xlane.xlu0 %2211
    %v2213 = vsel %vm151, %v2161, -inf
    %2214 = vmax.xlane.f32.xlu0 %v2213
    %v2215 = vpop.xlane.xlu0 %2214
    %v2216 = vsel %vm151, %v2166, -inf
    %2217 = vmax.xlane.f32.xlu0 %v2216
    %v2218 = vpop.xlane.xlu0 %2217
    %v2219 = vsel %vm151, %v2171, -inf
    %2220 = vmax.xlane.f32.xlu0 %v2219
    %v2221 = vpop.xlane.xlu0 %2220
    %v2222 = vsub.f32 %v2096, %v2176
    %v2223 = vsub.f32 %v2101, %v2179
    %v2224 = vsub.f32 %v2106, %v2182
    %v2225 = vsub.f32 %v2111, %v2185
    %v2226 = vsub.f32 %v2116, %v2188
    %v2227 = vsub.f32 %v2121, %v2191
    %v2228 = vsub.f32 %v2126, %v2194
    %v2229 = vsub.f32 %v2131, %v2197
    %v2230 = vsub.f32 %v2136, %v2200
    %v2231 = vsub.f32 %v2141, %v2203
    %v2232 = vsub.f32 %v2146, %v2206
    %v2233 = vsub.f32 %v2151, %v2209
    %v2234 = vsub.f32 %v2156, %v2212
    %v2235 = vsub.f32 %v2161, %v2215
    %v2236 = vsub.f32 %v2166, %v2218
    %v2237 = vsub.f32 %v2171, %v2221
    %v2238 = vmul.f32 %v2222, 1.442695
    %v2239 = vpow.pop %v2238
    %v2240 = vmul.f32 %v2223, 1.442695
    %v2241 = vpow.pop %v2240
    %v2242 = vmul.f32 %v2224, 1.442695
    %v2243 = vpow.pop %v2242
    %v2244 = vmul.f32 %v2225, 1.442695
    %v2245 = vpow.pop %v2244
    %v2246 = vmul.f32 %v2226, 1.442695
    %v2247 = vpow.pop %v2246
    %v2248 = vmul.f32 %v2227, 1.442695
    %v2249 = vpow.pop %v2248
    %v2250 = vmul.f32 %v2228, 1.442695
    %v2251 = vpow.pop %v2250
    %v2252 = vmul.f32 %v2229, 1.442695
    %v2253 = vpow.pop %v2252
    %v2254 = vmul.f32 %v2230, 1.442695
    %v2255 = vpow.pop %v2254
    %v2256 = vmul.f32 %v2231, 1.442695
    %v2257 = vpow.pop %v2256
    %v2258 = vmul.f32 %v2232, 1.442695
    %v2259 = vpow.pop %v2258
    %v2260 = vmul.f32 %v2233, 1.442695
    %v2261 = vpow.pop %v2260
    %v2262 = vmul.f32 %v2234, 1.442695
    %v2263 = vpow.pop %v2262
    %v2264 = vmul.f32 %v2235, 1.442695
    %v2265 = vpow.pop %v2264
    %v2266 = vmul.f32 %v2236, 1.442695
    %v2267 = vpow.pop %v2266
    %v2268 = vmul.f32 %v2237, 1.442695
    %v2269 = vpow.pop %v2268
    %v2270 = vsel %vm151, %v2239, 0.0
    %2271 = vadd.xlane.f32.xlu0 %v2270
    %v2272 = vpop.xlane.xlu0 %2271
    %v2273 = vsel %vm151, %v2241, 0.0
    %2274 = vadd.xlane.f32.xlu0 %v2273
    %v2275 = vpop.xlane.xlu0 %2274
    %v2276 = vsel %vm151, %v2243, 0.0
    %2277 = vadd.xlane.f32.xlu0 %v2276
    %v2278 = vpop.xlane.xlu0 %2277
    %v2279 = vsel %vm151, %v2245, 0.0
    %2280 = vadd.xlane.f32.xlu0 %v2279
    %v2281 = vpop.xlane.xlu0 %2280
    %v2282 = vsel %vm151, %v2247, 0.0
    %2283 = vadd.xlane.f32.xlu0 %v2282
    %v2284 = vpop.xlane.xlu0 %2283
    %v2285 = vsel %vm151, %v2249, 0.0
    %2286 = vadd.xlane.f32.xlu0 %v2285
    %v2287 = vpop.xlane.xlu0 %2286
    %v2288 = vsel %vm151, %v2251, 0.0
    %2289 = vadd.xlane.f32.xlu0 %v2288
    %v2290 = vpop.xlane.xlu0 %2289
    %v2291 = vsel %vm151, %v2253, 0.0
    %2292 = vadd.xlane.f32.xlu0 %v2291
    %v2293 = vpop.xlane.xlu0 %2292
    %v2294 = vsel %vm151, %v2255, 0.0
    %2295 = vadd.xlane.f32.xlu0 %v2294
    %v2296 = vpop.xlane.xlu0 %2295
    %v2297 = vsel %vm151, %v2257, 0.0
    %2298 = vadd.xlane.f32.xlu0 %v2297
    %v2299 = vpop.xlane.xlu0 %2298
    %v2300 = vsel %vm151, %v2259, 0.0
    %2301 = vadd.xlane.f32.xlu0 %v2300
    %v2302 = vpop.xlane.xlu0 %2301
    %v2303 = vsel %vm151, %v2261, 0.0
    %2304 = vadd.xlane.f32.xlu0 %v2303
    %v2305 = vpop.xlane.xlu0 %2304
    %v2306 = vsel %vm151, %v2263, 0.0
    %2307 = vadd.xlane.f32.xlu0 %v2306
    %v2308 = vpop.xlane.xlu0 %2307
    %v2309 = vsel %vm151, %v2265, 0.0
    %2310 = vadd.xlane.f32.xlu0 %v2309
    %v2311 = vpop.xlane.xlu0 %2310
    %v2312 = vsel %vm151, %v2267, 0.0
    %2313 = vadd.xlane.f32.xlu0 %v2312
    %v2314 = vpop.xlane.xlu0 %2313
    %v2315 = vsel %vm151, %v2269, 0.0
    %2316 = vadd.xlane.f32.xlu0 %v2315
    %v2317 = vpop.xlane.xlu0 %2316
    %v2318 = vrcp.pop %v2272
    %v2319 = vrcp.pop %v2275
    %v2320 = vrcp.pop %v2278
    %v2321 = vrcp.pop %v2281
    %v2322 = vrcp.pop %v2284
    %v2323 = vrcp.pop %v2287
    %v2324 = vrcp.pop %v2290
    %v2325 = vrcp.pop %v2293
    %v2326 = vrcp.pop %v2296
    %v2327 = vrcp.pop %v2299
    %v2328 = vrcp.pop %v2302
    %v2329 = vrcp.pop %v2305
    %v2330 = vrcp.pop %v2308
    %v2331 = vrcp.pop %v2311
    %v2332 = vrcp.pop %v2314
    %v2333 = vrcp.pop %v2317
    %v2334 = vmul.f32 %v2239, %v2318
    %v2335 = vmul.f32 %v2241, %v2319
    %v2336 = vmul.f32 %v2243, %v2320
    %v2337 = vmul.f32 %v2245, %v2321
    %v2338 = vmul.f32 %v2247, %v2322
    %v2339 = vmul.f32 %v2249, %v2323
    %v2340 = vmul.f32 %v2251, %v2324
    %v2341 = vmul.f32 %v2253, %v2325
    %v2342 = vmul.f32 %v2255, %v2326
    %v2343 = vmul.f32 %v2257, %v2327
    %v2344 = vmul.f32 %v2259, %v2328
    %v2345 = vmul.f32 %v2261, %v2329
    %v2346 = vmul.f32 %v2263, %v2330
    %v2347 = vmul.f32 %v2265, %v2331
    %v2348 = vmul.f32 %v2267, %v2332
    %v2349 = vmul.f32 %v2269, %v2333
    %v2351 = vsel %vm151, %v2334, 0
    %v2354 = vsel %vm151, %v2335, 0
    %v2357 = vsel %vm151, %v2336, 0
    %v2360 = vsel %vm151, %v2337, 0
    %v2363 = vsel %vm151, %v2338, 0
    %v2366 = vsel %vm151, %v2339, 0
    %v2369 = vsel %vm151, %v2340, 0
    %v2372 = vsel %vm151, %v2341, 0
    %v2375 = vsel %vm151, %v2342, 0
    %v2378 = vsel %vm151, %v2343, 0
    %v2381 = vsel %vm151, %v2344, 0
    %v2384 = vsel %vm151, %v2345, 0
    %v2387 = vsel %vm151, %v2346, 0
    %v2390 = vsel %vm151, %v2347, 0
    %v2393 = vsel %vm151, %v2348, 0
    %v2396 = vsel %vm151, %v2349, 0
    %2398 = vmatprep.subr.mxu0 0.0
    %2399 = vmatpush1.msra.mxu0 %v1790
    %2400 = vmatprep.subr.mxu0 0.0
    %2401 = vmatpush1.msra.mxu0 %v1795
    %2402 = vmatprep.subr.mxu0 0.0
    %2403 = vmatpush1.msra.mxu0 %v1800
    %2404 = vmatprep.subr.mxu0 0.0
    %2405 = vmatpush1.msra.mxu0 %v1805
    %2406 = vmatprep.subr.mxu0 0.0
    %2407 = vmatpush1.msra.mxu0 0.0
    %2408 = vmatprep.subr.mxu0 0.0
    %2409 = vmatpush1.msra.mxu0 0.0
    %2410 = vmatprep.subr.mxu0 0.0
    %2411 = vmatpush1.msra.mxu0 0.0
    %2412 = vmatprep.subr.mxu0 0.0
    %2413 = vmatpush1.msra.mxu0 0.0
    %2414 = vmatprep.subr.mxu0 0.0
    %2415 = vmatpush1.msra.mxu0 0.0
    %2416 = vmatprep.subr.mxu0 0.0
    %2417 = vmatpush1.msra.mxu0 0.0
    %2418 = vmatprep.subr.mxu0 0.0
    %2419 = vmatpush1.msra.mxu0 0.0
    %2420 = vmatprep.subr.mxu0 0.0
    %2421 = vmatpush1.msra.mxu0 0.0
    %2422 = vmatprep.subr.mxu0 0.0
    %2423 = vmatpush1.msra.mxu0 0.0
    %2424 = vmatprep.subr.mxu0 0.0
    %2425 = vmatpush1.msra.mxu0 0.0
    %2426 = vmatprep.subr.mxu0 0.0
    %2427 = vmatpush1.msra.mxu0 0.0
    %2428 = vmatprep.subr.mxu0 0.0
    %2429 = vmatpush1.msra.mxu0 0.0
    %2430 = vmatprep.subr.mxu0 0.0
    %2431 = vmatpush1.msra.mxu0 0.0
    %2432 = vmatprep.subr.mxu0 0.0
    %2433 = vmatpush1.msra.mxu0 0.0
    %2434 = vmatprep.subr.mxu0 0.0
    %2435 = vmatpush1.msra.mxu0 0.0
    %2436 = vmatprep.subr.mxu0 0.0
    %2437 = vmatpush1.msra.mxu0 0.0
    %2438 = vmatprep.subr.mxu0 0.0
    %2439 = vmatpush1.msra.mxu0 0.0
    %2440 = vmatprep.subr.mxu0 0.0
    %2441 = vmatpush1.msra.mxu0 0.0
    %2442 = vmatprep.subr.mxu0 0.0
    %2443 = vmatpush1.msra.mxu0 0.0
    %2444 = vmatprep.subr.mxu0 0.0
    %2445 = vmatpush1.msra.mxu0 0.0
    %2446 = vmatprep.subr.mxu0 0.0
    %2447 = vmatpush1.msra.mxu0 0.0
    %2448 = vmatprep.subr.mxu0 0.0
    %2449 = vmatpush1.msra.mxu0 0.0
    %2450 = vmatprep.subr.mxu0 0.0
    %2451 = vmatpush1.msra.mxu0 0.0
    %2452 = vmatprep.subr.mxu0 0.0
    %2453 = vmatpush1.msra.mxu0 0.0
    %2454 = vmatprep.subr.mxu0 0.0
    %2455 = vmatpush1.msra.mxu0 0.0
    %2456 = vmatprep.subr.mxu0 0.0
    %2457 = vmatpush1.msra.mxu0 0.0
    %2458 = vmatprep.subr.mxu0 0.0
    %2459 = vmatpush1.msra.mxu0 0.0
    %2460 = vmatprep.subr.mxu0 0.0
    %2461 = vmatpush1.msra.mxu0 0.0
    %2462 = vmatprep.mubr.f32.mxu0 0.0
    %2463 = vmatmul.mubr.f32.gmra.mrb[0].mxu0 %v2351
    %v2464 = vpop.f32.mrb[0].mxu0
    %v2465 = vadd.f32 0.0, %v2464
    %v2466 = vpop.f32.mrb[0].mxu0
    %2467 = vmatprep.mubr.f32.mxu0 0.0
    %2468 = vmatmul.mubr.f32.gmra.mrb[0].mxu0 %v2354
    %v2469 = vpop.f32.mrb[0].mxu0
    %v2470 = vadd.f32 0.0, %v2469
    %v2471 = vpop.f32.mrb[0].mxu0
    %2472 = vmatprep.mubr.f32.mxu0 0.0
    %2473 = vmatmul.mubr.f32.gmra.mrb[0].mxu0 %v2357
    %v2474 = vpop.f32.mrb[0].mxu0
    %v2475 = vadd.f32 0.0, %v2474
    %v2476 = vpop.f32.mrb[0].mxu0
    %2477 = vmatprep.mubr.f32.mxu0 0.0
    %2478 = vmatmul.mubr.f32.gmra.mrb[0].mxu0 %v2360
    %v2479 = vpop.f32.mrb[0].mxu0
    %v2480 = vadd.f32 0.0, %v2479
    %v2481 = vpop.f32.mrb[0].mxu0
    %2482 = vmatprep.mubr.f32.mxu0 0.0
    %2483 = vmatmul.mubr.f32.gmra.mrb[0].mxu0 %v2363
    %v2484 = vpop.f32.mrb[0].mxu0
    %v2485 = vadd.f32 0.0, %v2484
    %v2486 = vpop.f32.mrb[0].mxu0
    %2487 = vmatprep.mubr.f32.mxu0 0.0
    %2488 = vmatmul.mubr.f32.gmra.mrb[0].mxu0 %v2366
    %v2489 = vpop.f32.mrb[0].mxu0
    %v2490 = vadd.f32 0.0, %v2489
    %v2491 = vpop.f32.mrb[0].mxu0
    %2492 = vmatprep.mubr.f32.mxu0 0.0
    %2493 = vmatmul.mubr.f32.gmra.mrb[0].mxu0 %v2369
    %v2494 = vpop.f32.mrb[0].mxu0
    %v2495 = vadd.f32 0.0, %v2494
    %v2496 = vpop.f32.mrb[0].mxu0
    %2497 = vmatprep.mubr.f32.mxu0 0.0
    %2498 = vmatmul.mubr.f32.gmra.mrb[0].mxu0 %v2372
    %v2499 = vpop.f32.mrb[0].mxu0
    %v2500 = vadd.f32 0.0, %v2499
    %v2501 = vpop.f32.mrb[0].mxu0
    %2502 = vmatprep.mubr.f32.mxu0 0.0
    %2503 = vmatmul.mubr.f32.gmra.mrb[0].mxu0 %v2375
    %v2504 = vpop.f32.mrb[0].mxu0
    %v2505 = vadd.f32 0.0, %v2504
    %v2506 = vpop.f32.mrb[0].mxu0
    %2507 = vmatprep.mubr.f32.mxu0 0.0
    %2508 = vmatmul.mubr.f32.gmra.mrb[0].mxu0 %v2378
    %v2509 = vpop.f32.mrb[0].mxu0
    %v2510 = vadd.f32 0.0, %v2509
    %v2511 = vpop.f32.mrb[0].mxu0
    %2512 = vmatprep.mubr.f32.mxu0 0.0
    %2513 = vmatmul.mubr.f32.gmra.mrb[0].mxu0 %v2381
    %v2514 = vpop.f32.mrb[0].mxu0
    %v2515 = vadd.f32 0.0, %v2514
    %v2516 = vpop.f32.mrb[0].mxu0
    %2517 = vmatprep.mubr.f32.mxu0 0.0
    %2518 = vmatmul.mubr.f32.gmra.mrb[0].mxu0 %v2384
    %v2519 = vpop.f32.mrb[0].mxu0
    %v2520 = vadd.f32 0.0, %v2519
    %v2521 = vpop.f32.mrb[0].mxu0
    %2522 = vmatprep.mubr.f32.mxu0 0.0
    %2523 = vmatmul.mubr.f32.gmra.mrb[0].mxu0 %v2387
    %v2524 = vpop.f32.mrb[0].mxu0
    %v2525 = vadd.f32 0.0, %v2524
    %v2526 = vpop.f32.mrb[0].mxu0
    %2527 = vmatprep.mubr.f32.mxu0 0.0
    %2528 = vmatmul.mubr.f32.gmra.mrb[0].mxu0 %v2390
    %v2529 = vpop.f32.mrb[0].mxu0
    %v2530 = vadd.f32 0.0, %v2529
    %v2531 = vpop.f32.mrb[0].mxu0
    %2532 = vmatprep.mubr.f32.mxu0 0.0
    %2533 = vmatmul.mubr.f32.gmra.mrb[0].mxu0 %v2393
    %v2534 = vpop.f32.mrb[0].mxu0
    %v2535 = vadd.f32 0.0, %v2534
    %v2536 = vpop.f32.mrb[0].mxu0
    %2537 = vmatprep.mubr.f32.mxu0 0.0
    %2538 = vmatmul.mubr.f32.gmra.mrb[0].mxu0 %v2396
    %v2539 = vpop.f32.mrb[0].mxu0
    %v2540 = vadd.f32 0.0, %v2539
    %v2541 = vpop.f32.mrb[0].mxu0
    %2542 = vdwg.mxu0
    %v2543 = vmul.f32 %v2465, %v70
    %v2544 = vmul.f32 %v2470, %v71
    %v2545 = vmul.f32 %v2475, %v72
    %v2546 = vmul.f32 %v2480, %v73
    %v2547 = vmul.f32 %v2485, %v74
    %v2548 = vmul.f32 %v2490, %v75
    %v2549 = vmul.f32 %v2495, %v76
    %v2550 = vmul.f32 %v2500, %v77
    %v2551 = vmul.f32 %v2505, %v78
    %v2552 = vmul.f32 %v2510, %v79
    %v2553 = vmul.f32 %v2515, %v80
    %v2554 = vmul.f32 %v2520, %v81
    %v2555 = vmul.f32 %v2525, %v82
    %v2556 = vmul.f32 %v2530, %v83
    %v2557 = vmul.f32 %v2535, %v84
    %v2558 = vmul.f32 %v2540, %v85
    %2559 = vmatprep.subr.mxu0 0.0
    %2560 = vmatpush1.msra.mxu0 %v2543
    %2561 = vmatprep.subr.mxu0 0.0
    %2562 = vmatpush1.msra.mxu0 %v2544
    %2563 = vmatprep.subr.mxu0 0.0
    %2564 = vmatpush1.msra.mxu0 %v2545
    %2565 = vmatprep.subr.mxu0 0.0
    %2566 = vmatpush1.msra.mxu0 %v2546
    %2567 = vmatprep.subr.mxu0 0.0
    %2568 = vmatpush1.msra.mxu0 %v2547
    %2569 = vmatprep.subr.mxu0 0.0
    %2570 = vmatpush1.msra.mxu0 %v2548
    %2571 = vmatprep.subr.mxu0 0.0
    %2572 = vmatpush1.msra.mxu0 %v2549
    %2573 = vmatprep.subr.mxu0 0.0
    %2574 = vmatpush1.msra.mxu0 %v2550
    %2575 = vmatprep.subr.mxu0 0.0
    %2576 = vmatpush1.msra.mxu0 %v2551
    %2577 = vmatprep.subr.mxu0 0.0
    %2578 = vmatpush1.msra.mxu0 %v2552
    %2579 = vmatprep.subr.mxu0 0.0
    %2580 = vmatpush1.msra.mxu0 %v2553
    %2581 = vmatprep.subr.mxu0 0.0
    %2582 = vmatpush1.msra.mxu0 %v2554
    %2583 = vmatprep.subr.mxu0 0.0
    %2584 = vmatpush1.msra.mxu0 %v2555
    %2585 = vmatprep.subr.mxu0 0.0
    %2586 = vmatpush1.msra.mxu0 %v2556
    %2587 = vmatprep.subr.mxu0 0.0
    %2588 = vmatpush1.msra.mxu0 %v2557
    %2589 = vmatprep.subr.mxu0 0.0
    %2590 = vmatpush1.msra.mxu0 %v2558
    %2591 = vmatprep.subr.mxu0 0.0
    %2592 = vmatpush1.msra.mxu0 0.0
    %2593 = vmatprep.subr.mxu0 0.0
    %2594 = vmatpush1.msra.mxu0 0.0
    %2595 = vmatprep.subr.mxu0 0.0
    %2596 = vmatpush1.msra.mxu0 0.0
    %2597 = vmatprep.subr.mxu0 0.0
    %2598 = vmatpush1.msra.mxu0 0.0
    %2599 = vmatprep.subr.mxu0 0.0
    %2600 = vmatpush1.msra.mxu0 0.0
    %2601 = vmatprep.subr.mxu0 0.0
    %2602 = vmatpush1.msra.mxu0 0.0
    %2603 = vmatprep.subr.mxu0 0.0
    %2604 = vmatpush1.msra.mxu0 0.0
    %2605 = vmatprep.subr.mxu0 0.0
    %2606 = vmatpush1.msra.mxu0 0.0
    %2607 = vmatprep.subr.mxu0 0.0
    %2608 = vmatpush1.msra.mxu0 0.0
    %2609 = vmatprep.subr.mxu0 0.0
    %2610 = vmatpush1.msra.mxu0 0.0
    %2611 = vmatprep.subr.mxu0 0.0
    %2612 = vmatpush1.msra.mxu0 0.0
    %2613 = vmatprep.subr.mxu0 0.0
    %2614 = vmatpush1.msra.mxu0 0.0
    %2615 = vmatprep.subr.mxu0 0.0
    %2616 = vmatpush1.msra.mxu0 0.0
    %2617 = vmatprep.subr.mxu0 0.0
    %2618 = vmatpush1.msra.mxu0 0.0
    %2619 = vmatprep.subr.mxu0 0.0
    %2620 = vmatpush1.msra.mxu0 0.0
    %2621 = vmatprep.subr.mxu0 0.0
    %2622 = vmatpush1.msra.mxu0 0.0
    %2623 = vmatprep.mubr.f32.mxu0 0.0
    %2624 = vmatmul.mubr.f32.gmra.mrb[0].mxu0 %v66
    %v2625 = vpop.f32.mrb[0].mxu0
    %v2626 = vadd.f32 0.0, %v2625
    %v2627 = vpop.f32.mrb[0].mxu0
    %2628 = vmatprep.mubr.f32.mxu0 0.0
    %2629 = vmatmul.mubr.f32.gmra.mrb[0].mxu0 %v67
    %v2630 = vpop.f32.mrb[0].mxu0
    %v2631 = vadd.f32 0.0, %v2630
    %v2632 = vpop.f32.mrb[0].mxu0
    %2633 = vmatprep.mubr.f32.mxu0 0.0
    %2634 = vmatmul.mubr.f32.gmra.mrb[0].mxu0 %v68
    %v2635 = vpop.f32.mrb[0].mxu0
    %v2636 = vadd.f32 0.0, %v2635
    %v2637 = vpop.f32.mrb[0].mxu0
    %2638 = vmatprep.mubr.f32.mxu0 0.0
    %2639 = vmatmul.mubr.f32.gmra.mrb[0].mxu0 %v69
    %v2640 = vpop.f32.mrb[0].mxu0
    %v2641 = vadd.f32 0.0, %v2640
    %v2642 = vpop.f32.mrb[0].mxu0
    %2643 = vdwg.mxu0
    %v2644 = vlaneseq
    %v2645 = vshrl.u32 %v2644, 7
    %v2646 = vsub.s32 5, %v2645
    %v2647 = vrot.slane %v118, %v2646
    %v2649 = vsel %vm151, %v2626, 0
    %v2652 = vsel %vm151, %v2631, 0
    %v2655 = vsel %vm151, %v2636, 0
    %v2658 = vsel %vm151, %v2641, 0
    %2660 = vmatprep.subr.mxu0 0.0
    %2661 = vmatpush1.msra.mxu0 %v147
    %2662 = vmatprep.subr.mxu0 0.0
    %2663 = vmatpush1.msra.mxu0 %v148
    %2664 = vmatprep.subr.mxu0 0.0
    %2665 = vmatpush1.msra.mxu0 %v149
    %2666 = vmatprep.subr.mxu0 0.0
    %2667 = vmatpush1.msra.mxu0 %v150
    %2668 = vmatprep.subr.mxu0 0.0
    %2669 = vmatpush1.msra.mxu0 0.0
    %2670 = vmatprep.subr.mxu0 0.0
    %2671 = vmatpush1.msra.mxu0 0.0
    %2672 = vmatprep.subr.mxu0 0.0
    %2673 = vmatpush1.msra.mxu0 0.0
    %2674 = vmatprep.subr.mxu0 0.0
    %2675 = vmatpush1.msra.mxu0 0.0
    %2676 = vmatprep.subr.mxu0 0.0
    %2677 = vmatpush1.msra.mxu0 0.0
    %2678 = vmatprep.subr.mxu0 0.0
    %2679 = vmatpush1.msra.mxu0 0.0
    %2680 = vmatprep.subr.mxu0 0.0
    %2681 = vmatpush1.msra.mxu0 0.0
    %2682 = vmatprep.subr.mxu0 0.0
    %2683 = vmatpush1.msra.mxu0 0.0
    %2684 = vmatprep.subr.mxu0 0.0
    %2685 = vmatpush1.msra.mxu0 0.0
    %2686 = vmatprep.subr.mxu0 0.0
    %2687 = vmatpush1.msra.mxu0 0.0
    %2688 = vmatprep.subr.mxu0 0.0
    %2689 = vmatpush1.msra.mxu0 0.0
    %2690 = vmatprep.subr.mxu0 0.0
    %2691 = vmatpush1.msra.mxu0 0.0
    %2692 = vmatprep.subr.mxu0 0.0
    %2693 = vmatpush1.msra.mxu0 0.0
    %2694 = vmatprep.subr.mxu0 0.0
    %2695 = vmatpush1.msra.mxu0 0.0
    %2696 = vmatprep.subr.mxu0 0.0
    %2697 = vmatpush1.msra.mxu0 0.0
    %2698 = vmatprep.subr.mxu0 0.0
    %2699 = vmatpush1.msra.mxu0 0.0
    %2700 = vmatprep.subr.mxu0 0.0
    %2701 = vmatpush1.msra.mxu0 0.0
    %2702 = vmatprep.subr.mxu0 0.0
    %2703 = vmatpush1.msra.mxu0 0.0
    %2704 = vmatprep.subr.mxu0 0.0
    %2705 = vmatpush1.msra.mxu0 0.0
    %2706 = vmatprep.subr.mxu0 0.0
    %2707 = vmatpush1.msra.mxu0 0.0
    %2708 = vmatprep.subr.mxu0 0.0
    %2709 = vmatpush1.msra.mxu0 0.0
    %2710 = vmatprep.subr.mxu0 0.0
    %2711 = vmatpush1.msra.mxu0 0.0
    %2712 = vmatprep.subr.mxu0 0.0
    %2713 = vmatpush1.msra.mxu0 0.0
    %2714 = vmatprep.subr.mxu0 0.0
    %2715 = vmatpush1.msra.mxu0 0.0
    %2716 = vmatprep.subr.mxu0 0.0
    %2717 = vmatpush1.msra.mxu0 0.0
    %2718 = vmatprep.subr.mxu0 0.0
    %2719 = vmatpush1.msra.mxu0 0.0
    %2720 = vmatprep.subr.mxu0 0.0
    %2721 = vmatpush1.msra.mxu0 0.0
    %2722 = vmatprep.subr.mxu0 0.0
    %2723 = vmatpush1.msra.mxu0 0.0
    %2724 = vmatprep.mubr.f32.mxu0 0.0
    %2725 = vmatmul.mubr.f32.gmra.mrb[0].mxu0 %v2649
    %v2726 = vpop.f32.mrb[0].mxu0
    %v2727 = vadd.f32 %v2647, %v2726
    %v2728 = vpop.f32.mrb[0].mxu0
    %2729 = vmatprep.mubr.f32.mxu0 0.0
    %2730 = vmatmul.mubr.f32.gmra.mrb[0].mxu0 %v2652
    %v2731 = vpop.f32.mrb[0].mxu0
    %v2732 = vadd.f32 %v2647, %v2731
    %v2733 = vpop.f32.mrb[0].mxu0
    %2734 = vmatprep.mubr.f32.mxu0 0.0
    %2735 = vmatmul.mubr.f32.gmra.mrb[0].mxu0 %v2655
    %v2736 = vpop.f32.mrb[0].mxu0
    %v2737 = vadd.f32 %v2647, %v2736
    %v2738 = vpop.f32.mrb[0].mxu0
    %2739 = vmatprep.mubr.f32.mxu0 0.0
    %2740 = vmatmul.mubr.f32.gmra.mrb[0].mxu0 %v2658
    %v2741 = vpop.f32.mrb[0].mxu0
    %v2742 = vadd.f32 %v2647, %v2741
    %v2743 = vpop.f32.mrb[0].mxu0
    %2744 = vdwg.mxu0
    %v2745 = vadd.f32 %v1469, %v2727
    %v2746 = vadd.f32 %v1470, %v2732
    %v2747 = vadd.f32 %v1471, %v2737
    %v2748 = vadd.f32 %v1472, %v2742
    %v2749 = vsel %vm151, %v2745, 0.0
    %2750 = vadd.xlane.f32.xlu0 %v2749
    %v2751 = vpop.xlane.xlu0 %2750
    %v2752 = vsel %vm151, %v2746, 0.0
    %2753 = vadd.xlane.f32.xlu0 %v2752
    %v2754 = vpop.xlane.xlu0 %2753
    %v2755 = vsel %vm151, %v2747, 0.0
    %2756 = vadd.xlane.f32.xlu0 %v2755
    %v2757 = vpop.xlane.xlu0 %2756
    %v2758 = vsel %vm151, %v2748, 0.0
    %2759 = vadd.xlane.f32.xlu0 %v2758
    %v2760 = vpop.xlane.xlu0 %2759
    %v2761 = vmul.f32 %v2751, %v164
    %v2762 = vmul.f32 %v2754, %v164
    %v2763 = vmul.f32 %v2757, %v164
    %v2764 = vmul.f32 %v2760, %v164
    %v2765 = vsub.f32 %v2745, %v2761
    %v2766 = vsub.f32 %v2746, %v2762
    %v2767 = vsub.f32 %v2747, %v2763
    %v2768 = vsub.f32 %v2748, %v2764
    %v2769 = vmul.f32 %v2765, %v2765
    %v2770 = vmul.f32 %v2766, %v2766
    %v2771 = vmul.f32 %v2767, %v2767
    %v2772 = vmul.f32 %v2768, %v2768
    %v2773 = vsel %vm151, %v2769, 0.0
    %2774 = vadd.xlane.f32.xlu0 %v2773
    %v2775 = vpop.xlane.xlu0 %2774
    %v2776 = vsel %vm151, %v2770, 0.0
    %2777 = vadd.xlane.f32.xlu0 %v2776
    %v2778 = vpop.xlane.xlu0 %2777
    %v2779 = vsel %vm151, %v2771, 0.0
    %2780 = vadd.xlane.f32.xlu0 %v2779
    %v2781 = vpop.xlane.xlu0 %2780
    %v2782 = vsel %vm151, %v2772, 0.0
    %2783 = vadd.xlane.f32.xlu0 %v2782
    %v2784 = vpop.xlane.xlu0 %2783
    %v2785 = vmul.f32 %v2775, %v164
    %v2786 = vmul.f32 %v2778, %v164
    %v2787 = vmul.f32 %v2781, %v164
    %v2788 = vmul.f32 %v2784, %v164
    %v2789 = vadd.f32 %v2785, 1e-05
    %v2790 = vadd.f32 %v2786, 1e-05
    %v2791 = vadd.f32 %v2787, 1e-05
    %v2792 = vadd.f32 %v2788, 1e-05
    %v2793 = vrsqrt.pop %v2789
    %v2794 = vrsqrt.pop %v2790
    %v2795 = vrsqrt.pop %v2791
    %v2796 = vrsqrt.pop %v2792
    %v2797 = vmul.f32 %v2765, %v2793
    %v2798 = vmul.f32 %v2766, %v2794
    %v2799 = vmul.f32 %v2767, %v2795
    %v2800 = vmul.f32 %v2768, %v2796
    %v2801 = vld [vmem:[%s4] sm:$0xff]
    %v2802 = vld [vmem:[%s4 + $0x8] sm:$0xff]
    %v2803 = vld [vmem:[%s4 + $0x10] sm:$0xff]
    %v2804 = vld [vmem:[%s4 + $0x18] sm:$0xff]
    %v2805 = vld [vmem:[%s4 + $0x20] sm:$0xff]
    %v2806 = vld [vmem:[%s4 + $0x28] sm:$0xff]
    %v2807 = vld [vmem:[%s4 + $0x30] sm:$0xff]
    %v2808 = vld [vmem:[%s4 + $0x38] sm:$0xff]
    %v2809 = vld [vmem:[%s5] sm:$0x3]
    %v2811 = vlaneseq
    %v2812 = vshrl.u32 %v2811, 7
    %v2813 = vsub.s32 0, %v2812
    %v2814 = vrot.slane %v2809, %v2813
    %v2815 = vlaneseq
    %v2816 = vshrl.u32 %v2815, 7
    %v2817 = vsub.s32 1, %v2816
    %v2818 = vrot.slane %v2809, %v2817
    %v2822 = vsel %vm151, %v2797, 0
    %v2825 = vsel %vm151, %v2798, 0
    %v2828 = vsel %vm151, %v2799, 0
    %v2831 = vsel %vm151, %v2800, 0
    %2833 = vmatprep.subr.mxu0 %v2802
    %2834 = vmatpush1.msra.mxu0 %v2801
    %2835 = vmatprep.subr.mxu0 %v2804
    %2836 = vmatpush1.msra.mxu0 %v2803
    %2837 = vmatprep.subr.mxu0 %v2806
    %2838 = vmatpush1.msra.mxu0 %v2805
    %2839 = vmatprep.subr.mxu0 %v2808
    %2840 = vmatpush1.msra.mxu0 %v2807
    %2841 = vmatprep.subr.mxu0 0.0
    %2842 = vmatpush1.msra.mxu0 0.0
    %2843 = vmatprep.subr.mxu0 0.0
    %2844 = vmatpush1.msra.mxu0 0.0
    %2845 = vmatprep.subr.mxu0 0.0
    %2846 = vmatpush1.msra.mxu0 0.0
    %2847 = vmatprep.subr.mxu0 0.0
    %2848 = vmatpush1.msra.mxu0 0.0
    %2849 = vmatprep.subr.mxu0 0.0
    %2850 = vmatpush1.msra.mxu0 0.0
    %2851 = vmatprep.subr.mxu0 0.0
    %2852 = vmatpush1.msra.mxu0 0.0
    %2853 = vmatprep.subr.mxu0 0.0
    %2854 = vmatpush1.msra.mxu0 0.0
    %2855 = vmatprep.subr.mxu0 0.0
    %2856 = vmatpush1.msra.mxu0 0.0
    %2857 = vmatprep.subr.mxu0 0.0
    %2858 = vmatpush1.msra.mxu0 0.0
    %2859 = vmatprep.subr.mxu0 0.0
    %2860 = vmatpush1.msra.mxu0 0.0
    %2861 = vmatprep.subr.mxu0 0.0
    %2862 = vmatpush1.msra.mxu0 0.0
    %2863 = vmatprep.subr.mxu0 0.0
    %2864 = vmatpush1.msra.mxu0 0.0
    %2865 = vmatprep.subr.mxu0 0.0
    %2866 = vmatpush1.msra.mxu0 0.0
    %2867 = vmatprep.subr.mxu0 0.0
    %2868 = vmatpush1.msra.mxu0 0.0
    %2869 = vmatprep.subr.mxu0 0.0
    %2870 = vmatpush1.msra.mxu0 0.0
    %2871 = vmatprep.subr.mxu0 0.0
    %2872 = vmatpush1.msra.mxu0 0.0
    %2873 = vmatprep.subr.mxu0 0.0
    %2874 = vmatpush1.msra.mxu0 0.0
    %2875 = vmatprep.subr.mxu0 0.0
    %2876 = vmatpush1.msra.mxu0 0.0
    %2877 = vmatprep.subr.mxu0 0.0
    %2878 = vmatpush1.msra.mxu0 0.0
    %2879 = vmatprep.subr.mxu0 0.0
    %2880 = vmatpush1.msra.mxu0 0.0
    %2881 = vmatprep.subr.mxu0 0.0
    %2882 = vmatpush1.msra.mxu0 0.0
    %2883 = vmatprep.subr.mxu0 0.0
    %2884 = vmatpush1.msra.mxu0 0.0
    %2885 = vmatprep.subr.mxu0 0.0
    %2886 = vmatpush1.msra.mxu0 0.0
    %2887 = vmatprep.subr.mxu0 0.0
    %2888 = vmatpush1.msra.mxu0 0.0
    %2889 = vmatprep.subr.mxu0 0.0
    %2890 = vmatpush1.msra.mxu0 0.0
    %2891 = vmatprep.subr.mxu0 0.0
    %2892 = vmatpush1.msra.mxu0 0.0
    %2893 = vmatprep.subr.mxu0 0.0
    %2894 = vmatpush1.msra.mxu0 0.0
    %2895 = vmatprep.subr.mxu0 0.0
    %2896 = vmatpush1.msra.mxu0 0.0
    %2897 = vmatprep.mubr.f32.mxu0 0.0
    %2898 = vmatmul.mubr.f32.gmra.mrb[0].mxu0 %v2822
    %v2899 = vpop.f32.mrb[0].mxu0
    %v2900 = vadd.f32 %v2814, %v2899
    %v2901 = vpop.f32.mrb[0].mxu0
    %v2902 = vadd.f32 %v2818, %v2901
    %2903 = vmatprep.mubr.f32.mxu0 0.0
    %2904 = vmatmul.mubr.f32.gmra.mrb[0].mxu0 %v2825
    %v2905 = vpop.f32.mrb[0].mxu0
    %v2906 = vadd.f32 %v2814, %v2905
    %v2907 = vpop.f32.mrb[0].mxu0
    %v2908 = vadd.f32 %v2818, %v2907
    %2909 = vmatprep.mubr.f32.mxu0 0.0
    %2910 = vmatmul.mubr.f32.gmra.mrb[0].mxu0 %v2828
    %v2911 = vpop.f32.mrb[0].mxu0
    %v2912 = vadd.f32 %v2814, %v2911
    %v2913 = vpop.f32.mrb[0].mxu0
    %v2914 = vadd.f32 %v2818, %v2913
    %2915 = vmatprep.mubr.f32.mxu0 0.0
    %2916 = vmatmul.mubr.f32.gmra.mrb[0].mxu0 %v2831
    %v2917 = vpop.f32.mrb[0].mxu0
    %v2918 = vadd.f32 %v2814, %v2917
    %v2919 = vpop.f32.mrb[0].mxu0
    %v2920 = vadd.f32 %v2818, %v2919
    %2921 = vdwg.mxu0
    %v2922 = vmul.f32 %v2902, %v2902
    %v2923 = vmul.f32 %v2908, %v2908
    %v2924 = vmul.f32 %v2914, %v2914
    %v2925 = vmul.f32 %v2920, %v2920
    %v2926 = vmul.f32 %v2902, %v2922
    %v2927 = vmul.f32 %v2908, %v2923
    %v2928 = vmul.f32 %v2914, %v2924
    %v2929 = vmul.f32 %v2920, %v2925
    %v2930 = vmul.f32 %v2926, 0.044715
    %v2931 = vmul.f32 %v2927, 0.044715
    %v2932 = vmul.f32 %v2928, 0.044715
    %v2933 = vmul.f32 %v2929, 0.044715
    %v2934 = vadd.f32 %v2902, %v2930
    %v2935 = vadd.f32 %v2908, %v2931
    %v2936 = vadd.f32 %v2914, %v2932
    %v2937 = vadd.f32 %v2920, %v2933
    %v2938 = vmul.f32 %v2934, 0.7978846
    %v2939 = vmul.f32 %v2935, 0.7978846
    %v2940 = vmul.f32 %v2936, 0.7978846
    %v2941 = vmul.f32 %v2937, 0.7978846
    %v2942 = vtanh.pop %v2938
    %v2943 = vtanh.pop %v2939
    %v2944 = vtanh.pop %v2940
    %v2945 = vtanh.pop %v2941
    %v2946 = vadd.f32 %v2942, 1.0
    %v2947 = vadd.f32 %v2943, 1.0
    %v2948 = vadd.f32 %v2944, 1.0
    %v2949 = vadd.f32 %v2945, 1.0
    %v2950 = vmul.f32 %v2946, 0.5
    %v2951 = vmul.f32 %v2947, 0.5
    %v2952 = vmul.f32 %v2948, 0.5
    %v2953 = vmul.f32 %v2949, 0.5
    %v2954 = vmul.f32 %v2902, %v2950
    %v2955 = vmul.f32 %v2908, %v2951
    %v2956 = vmul.f32 %v2914, %v2952
    %v2957 = vmul.f32 %v2920, %v2953
    %v2958 = vmul.f32 %v2900, %v2954
    %v2959 = vmul.f32 %v2906, %v2955
    %v2960 = vmul.f32 %v2912, %v2956
    %v2961 = vmul.f32 %v2918, %v2957
    %v2962 = vld [vmem:[%s6] sm:$0xff]
    %v2963 = vld [vmem:[%s6 + $0x8] sm:$0xff]
    %v2964 = vld [vmem:[%s6 + $0x10] sm:$0xff]
    %v2965 = vld [vmem:[%s6 + $0x18] sm:$0xff]
    %v2966 = vld [vmem:[%s6 + $0x20] sm:$0xff]
    %v2967 = vld [vmem:[%s6 + $0x28] sm:$0xff]
    %v2968 = vld [vmem:[%s6 + $0x30] sm:$0xff]
    %v2969 = vld [vmem:[%s6 + $0x38] sm:$0xff]
    %v2970 = vld [vmem:[%s6 + $0x40] sm:$0xff]
    %v2971 = vld [vmem:[%s6 + $0x48] sm:$0xff]
    %v2972 = vld [vmem:[%s6 + $0x50] sm:$0xff]
    %v2973 = vld [vmem:[%s6 + $0x58] sm:$0xff]
    %v2974 = vld [vmem:[%s6 + $0x60] sm:$0xff]
    %v2975 = vld [vmem:[%s6 + $0x68] sm:$0xff]
    %v2976 = vld [vmem:[%s6 + $0x70] sm:$0xff]
    %v2977 = vld [vmem:[%s6 + $0x78] sm:$0xff]
    %v2978 = vlaneseq
    %v2979 = vshrl.u32 %v2978, 7
    %v2980 = vsub.s32 6, %v2979
    %v2981 = vrot.slane %v118, %v2980
    %2982 = vmatprep.subr.mxu0 0.0
    %2983 = vmatpush1.msra.mxu0 %v2962
    %2984 = vmatprep.subr.mxu0 0.0
    %2985 = vmatpush1.msra.mxu0 %v2963
    %2986 = vmatprep.subr.mxu0 0.0
    %2987 = vmatpush1.msra.mxu0 %v2964
    %2988 = vmatprep.subr.mxu0 0.0
    %2989 = vmatpush1.msra.mxu0 %v2965
    %2990 = vmatprep.subr.mxu0 0.0
    %2991 = vmatpush1.msra.mxu0 %v2966
    %2992 = vmatprep.subr.mxu0 0.0
    %2993 = vmatpush1.msra.mxu0 %v2967
    %2994 = vmatprep.subr.mxu0 0.0
    %2995 = vmatpush1.msra.mxu0 %v2968
    %2996 = vmatprep.subr.mxu0 0.0
    %2997 = vmatpush1.msra.mxu0 %v2969
    %2998 = vmatprep.subr.mxu0 0.0
    %2999 = vmatpush1.msra.mxu0 %v2970
    %3000 = vmatprep.subr.mxu0 0.0
    %3001 = vmatpush1.msra.mxu0 %v2971
    %3002 = vmatprep.subr.mxu0 0.0
    %3003 = vmatpush1.msra.mxu0 %v2972
    %3004 = vmatprep.subr.mxu0 0.0
    %3005 = vmatpush1.msra.mxu0 %v2973
    %3006 = vmatprep.subr.mxu0 0.0
    %3007 = vmatpush1.msra.mxu0 %v2974
    %3008 = vmatprep.subr.mxu0 0.0
    %3009 = vmatpush1.msra.mxu0 %v2975
    %3010 = vmatprep.subr.mxu0 0.0
    %3011 = vmatpush1.msra.mxu0 %v2976
    %3012 = vmatprep.subr.mxu0 0.0
    %3013 = vmatpush1.msra.mxu0 %v2977
    %3014 = vmatprep.subr.mxu0 0.0
    %3015 = vmatpush1.msra.mxu0 0.0
    %3016 = vmatprep.subr.mxu0 0.0
    %3017 = vmatpush1.msra.mxu0 0.0
    %3018 = vmatprep.subr.mxu0 0.0
    %3019 = vmatpush1.msra.mxu0 0.0
    %3020 = vmatprep.subr.mxu0 0.0
    %3021 = vmatpush1.msra.mxu0 0.0
    %3022 = vmatprep.subr.mxu0 0.0
    %3023 = vmatpush1.msra.mxu0 0.0
    %3024 = vmatprep.subr.mxu0 0.0
    %3025 = vmatpush1.msra.mxu0 0.0
    %3026 = vmatprep.subr.mxu0 0.0
    %3027 = vmatpush1.msra.mxu0 0.0
    %3028 = vmatprep.subr.mxu0 0.0
    %3029 = vmatpush1.msra.mxu0 0.0
    %3030 = vmatprep.subr.mxu0 0.0
    %3031 = vmatpush1.msra.mxu0 0.0
    %3032 = vmatprep.subr.mxu0 0.0
    %3033 = vmatpush1.msra.mxu0 0.0
    %3034 = vmatprep.subr.mxu0 0.0
    %3035 = vmatpush1.msra.mxu0 0.0
    %3036 = vmatprep.subr.mxu0 0.0
    %3037 = vmatpush1.msra.mxu0 0.0
    %3038 = vmatprep.subr.mxu0 0.0
    %3039 = vmatpush1.msra.mxu0 0.0
    %3040 = vmatprep.subr.mxu0 0.0
    %3041 = vmatpush1.msra.mxu0 0.0
    %3042 = vmatprep.subr.mxu0 0.0
    %3043 = vmatpush1.msra.mxu0 0.0
    %3044 = vmatprep.subr.mxu0 0.0
    %3045 = vmatpush1.msra.mxu0 0.0
    %3046 = vmatprep.mubr.f32.mxu0 0.0
    %3047 = vmatmul.mubr.f32.gmra.mrb[0].mxu0 %v2958
    %v3048 = vpop.f32.mrb[0].mxu0
    %v3049 = vadd.f32 %v2981, %v3048
    %v3050 = vpop.f32.mrb[0].mxu0
    %3051 = vmatprep.mubr.f32.mxu0 0.0
    %3052 = vmatmul.mubr.f32.gmra.mrb[0].mxu0 %v2959
    %v3053 = vpop.f32.mrb[0].mxu0
    %v3054 = vadd.f32 %v2981, %v3053
    %v3055 = vpop.f32.mrb[0].mxu0
    %3056 = vmatprep.mubr.f32.mxu0 0.0
    %3057 = vmatmul.mubr.f32.gmra.mrb[0].mxu0 %v2960
    %v3058 = vpop.f32.mrb[0].mxu0
    %v3059 = vadd.f32 %v2981, %v3058
    %v3060 = vpop.f32.mrb[0].mxu0
    %3061 = vmatprep.mubr.f32.mxu0 0.0
    %3062 = vmatmul.mubr.f32.gmra.mrb[0].mxu0 %v2961
    %v3063 = vpop.f32.mrb[0].mxu0
    %v3064 = vadd.f32 %v2981, %v3063
    %v3065 = vpop.f32.mrb[0].mxu0
    %3066 = vdwg.mxu0
    %v3067 = vadd.f32 %v2745, %v3049
    %v3068 = vadd.f32 %v2746, %v3054
    %v3069 = vadd.f32 %v2747, %v3059
    %v3070 = vadd.f32 %v2748, %v3064
    %3071 = vst.msk [vmem:[#allocation2] sm:$0xff] %vm151, %v3067
    %3072 = vst.msk [vmem:[#allocation2 + $0x8] sm:$0xff] %vm151, %v3068
    %3073 = vst.msk [vmem:[#allocation2 + $0x10] sm:$0xff] %vm151, %v3069
    %3074 = vst.msk [vmem:[#allocation2 + $0x18] sm:$0xff] %vm151, %v3070
    // Predicated region
    $region50: #{_forward_plain.1} parent=1 // pred_check
      _
    $region51: #{_forward_plain.1} parent=1 // pred_check_branch
      %3076 = sbr.rel (0) target = $region53
    $region52: #{_forward_plain.1} parent=1 // pred_region
      %s3078 = ssub.s32 512, 512
      %3079 = vsyncadd [#allocation3], %s3078
      %s3080 = sshll.u32 [#allocation2], 4
      %s3081 = int_to_ptr.vmem [resolvable:$true] %s3080
      %3086 = dma.vmem_to_hbm [thread:$0]  %s3081, 512, %s12, [#allocation3], 128, 128, 8
    $region53: #{_forward_plain.1} parent=1 // pred_fallthru
      _
    // Predicated region
    $region54: #{_forward_plain.1} parent=1 // pred_check
      _
    $region55: #{_forward_plain.1} parent=1 // pred_check_branch
      %3088 = sbr.rel (0) target = $region57
    $region56: #{_forward_plain.1} parent=1 // pred_region
      %3089 = dma.done [#allocation3], 512
    $region57: #{_forward_plain.1} parent=1 // pred_fallthru
      _
    %3090 = vsyncpa [#allocation3], 1

</llo_original>
